<compile_context>
chip_gen: v6e
topology: v6e:2x2x1
jax: 0.10.0
libtpu: 0.0.40
codegen_flags: <defaults>
</compile_context>

<pallas_src>
import functools

import jax
import jax.numpy as jnp
from jax import lax
from jax.experimental import pallas as pl
from jax.experimental.pallas import tpu as pltpu

BN_EPS = 1e-3


def _round_up(x, m):
    return (x + m - 1) // m * m


# --------------------------------------------------------------------------- #
# Fused Pallas kernel: conv1 + conv2 + conv3, each with bias + ReLU.           #
# Activations live row-flattened as (H*PW, C) planes; PW (padded plane width)  #
# is a power of two shared by all stages.  The stage-2/3 inputs are kept in a  #
# "tripled" im2col layout Z[r, kw*C + c] = plane[r + kw, c], so the tap merge  #
# over kw is a contiguous slice and each kh needs exactly one MXU matmul.      #
# --------------------------------------------------------------------------- #
def _fused_stem_kernel(x_ref, w1_ref, w2_ref, w3_ref, b1_ref, b2_ref, b3_ref,
                       o_ref, z2_ref, z3_ref, *, PW, W2, D3):
    f32 = jnp.float32
    bf16 = jnp.bfloat16
    R1 = z2_ref.shape[0]            # stage-1 output rows (= stage-2 im2col rows)
    R2B, K3 = z3_ref.shape          # stage-3 im2col buffer rows / K (= 3*Co2)
    R2 = o_ref.shape[0]             # stage-2/3 output rows
    Co1 = w1_ref.shape[1]
    Co2 = w2_ref.shape[2]

    def conv3x3(z_ref, w_ref, base):
        acc = None
        for kh in range(3):
            off = base + kh * PW
            lhs = z_ref[off:off + R2, :].astype(bf16)       # (R2, 3*Cin) bf16
            part = jnp.dot(lhs, w_ref[kh], preferred_element_type=f32)
            acc = part if acc is None else acc + part
        return acc

    # --- Stage 1: Conv2d_1a_3x3 (3x3, stride 2) ------------------------------
    # Single K=27 matmul over the prologue-built im2col; the result is written
    # into the stage-2 im2col buffer as three row-shifted channel blocks.
    acc1 = jnp.dot(x_ref[...], w1_ref[...], preferred_element_type=f32)
    z2_ref[0:R1, 0:Co1] = jnp.maximum(acc1 + b1_ref[...], 0.0)
    # Last two rows of the shifted blocks feed only masked (pad-column) outputs;
    # clear them so nothing uninitialised is ever consumed.
    z2_ref[R1 - 2:R1, Co1:3 * Co1] = jnp.zeros((2, 2 * Co1), f32)
    z2_ref[0:R1 - 1, Co1:2 * Co1] = z2_ref[1:R1, 0:Co1]
    z2_ref[0:R1 - 2, 2 * Co1:3 * Co1] = z2_ref[2:R1, 0:Co1]

    # --- Stage 2: Conv2d_2a_3x3 (3x3, valid) ----------------------------------
    acc2 = conv3x3(z2_ref, w2_ref, 0)
    # In-kernel column-validity mask (PW is a power of two -> bitwise AND).
    col = lax.broadcasted_iota(jnp.int32, (R2, Co2), 0) & (PW - 1)
    y2 = jnp.where(col < W2, jnp.maximum(acc2 + b2_ref[...], 0.0), 0.0)

    # Stage-3 "SAME" padding: zero only the border rows of the im2col buffer
    # (the interior is fully overwritten), then write y2 as three row-shifted
    # channel blocks at the interior offset D3.
    zt = D3 + R2 - 8
    z3_ref[0:D3, :] = jnp.zeros((D3, K3), f32)
    z3_ref[zt:R2B, :] = jnp.zeros((R2B - zt, K3), f32)
    z3_ref[D3:D3 + R2, 0:Co2] = y2
    z3_ref[D3 - 1:D3 - 1 + R2, Co2:2 * Co2] = z3_ref[D3:D3 + R2, 0:Co2]
    z3_ref[D3 - 2:D3 - 2 + R2, 2 * Co2:3 * Co2] = z3_ref[D3:D3 + R2, 0:Co2]

    # --- Stage 3: Conv2d_2b_3x3 (3x3, SAME) -----------------------------------
    acc3 = conv3x3(z3_ref, w3_ref, D3 - PW - 1)
    o_ref[...] = jnp.maximum(acc3 + b3_ref[...], 0.0).astype(o_ref.dtype)


# --------------------------------------------------------------------------- #
# Parameter preprocessing                                                      #
# --------------------------------------------------------------------------- #
def _fold_bn(bn):
    gamma, beta, mean, var = bn
    scale = gamma / jnp.sqrt(var + BN_EPS)
    return scale, beta - mean * scale


# --------------------------------------------------------------------------- #
# Wrapper                                                                      #
# --------------------------------------------------------------------------- #
@jax.jit
def prefeatures_pallas(x_nchw, params):
    x = x_nchw.astype(jnp.float32)
    N, C, H, W = x.shape

    # Stage output sizes.
    H1, W1 = (H - 3) // 2 + 1, (W - 3) // 2 + 1     # conv1: 3x3 stride 2 valid
    H2, W2 = H1 - 2, W1 - 2                         # conv2: valid; conv3: SAME

    # Shared padded plane width; power of two so the in-kernel mask is an AND.
    PW = max(pl.next_power_of_2(max(W1, W2 + 2)), 8)
    D3 = _round_up(PW + 1, 8)                       # stage-3 interior row offset
    R1 = H1 * PW                                    # stage-1 output rows
    R2 = H2 * PW                                    # stage-2/3 output rows
    R2B = _round_up(D3 + PW + R2, 8)                # stage-3 im2col buffer rows

    # Fold BN (eval mode) into the conv weights / per-channel bias.
    s1, b1 = _fold_bn(params["bn1"])
    s2, b2 = _fold_bn(params["bn2"])
    s3, b3 = _fold_bn(params["bn3"])
    Co1 = params["w1"].shape[-1]
    Co2 = params["w2"].shape[-1]
    Co3 = params["w3"].shape[-1]
    K1 = 9 * C
    # bf16 MXU operands; accumulation stays f32 inside the kernel.
    w1 = (params["w1"] * s1).reshape(K1, Co1).astype(jnp.bfloat16)
    w2 = (params["w2"] * s2).reshape(3, 3 * Co1, Co2).astype(jnp.bfloat16)
    w3 = (params["w3"] * s3).reshape(3, 3 * Co2, Co3).astype(jnp.bfloat16)

    # XLA prologue: im2col of the stride-2 3x3 conv (9 taps -> K1 channels),
    # padded to the shared plane width and row-flattened.
    x_nhwc = jnp.transpose(x, (0, 2, 3, 1))
    cols = [x_nhwc[:, kh:kh + 2 * H1 - 1:2, kw:kw + 2 * W1 - 1:2, :]
            for kh in range(3) for kw in range(3)]
    xcol = jnp.concatenate(cols, axis=-1)                      # (N, H1, W1, K1)
    xcol = jnp.pad(xcol, ((0, 0), (0, 0), (0, PW - W1), (0, 0)))
    xcol = xcol.reshape(N, R1, K1).astype(jnp.bfloat16)

    kernel = functools.partial(_fused_stem_kernel, PW=PW, W2=W2, D3=D3)

    out = pl.pallas_call(
        kernel,
        out_shape=jax.ShapeDtypeStruct((N, R2, Co3), jnp.float32),
        grid=(N,),
        in_specs=[
            pl.BlockSpec((None, R1, K1), lambda n: (n, 0, 0)),
            pl.BlockSpec((K1, Co1), lambda n: (0, 0)),          # constant index
            pl.BlockSpec((3, 3 * Co1, Co2), lambda n: (0, 0, 0)),  # -> fetched
            pl.BlockSpec((3, 3 * Co2, Co3), lambda n: (0, 0, 0)),  #    once
            pl.BlockSpec((1, Co1), lambda n: (0, 0)),
            pl.BlockSpec((1, Co2), lambda n: (0, 0)),
            pl.BlockSpec((1, Co3), lambda n: (0, 0)),
        ],
        out_specs=pl.BlockSpec((None, R2, Co3), lambda n: (n, 0, 0)),
        scratch_shapes=[pltpu.VMEM((R1, 3 * Co1), jnp.float32),   # stage-2 im2col
                        pltpu.VMEM((R2B, 3 * Co2), jnp.float32)], # stage-3 im2col
        compiler_params=pltpu.CompilerParams(
            dimension_semantics=("parallel",)),
    )(xcol, w1, w2, w3,
      b1.reshape(1, Co1), b2.reshape(1, Co2), b3.reshape(1, Co3))

    # XLA epilogue: crop the padded plane width and return NCHW like PyTorch.
    y = out.reshape(N, H2, PW, Co3)[:, :, :W2, :]
    return jnp.transpose(y, (0, 3, 1, 2))


# --------------------------------------------------------------------------- #
# Pure-JAX reference (for correctness check)                                   #
# --------------------------------------------------------------------------- #
def prefeatures_ref(x_nchw, params):
    x = jnp.transpose(x_nchw, (0, 2, 3, 1)).astype(jnp.float32)

    def block(x, w, bn, stride, padding):
        y = lax.conv_general_dilated(
            x, w, (stride, stride), padding,
            dimension_numbers=("NHWC", "HWIO", "NHWC"),
            precision=lax.Precision.HIGHEST)
        gamma, beta, mean, var = bn
        y = (y - mean) * gamma / jnp.sqrt(var + BN_EPS) + beta
        return jnp.maximum(y, 0.0)

    y = block(x, params["w1"], params["bn1"], 2, "VALID")
    y = block(y, params["w2"], params["bn2"], 1, "VALID")
    y = block(y, params["w3"], params["bn3"], 1, [(1, 1), (1, 1)])
    return jnp.transpose(y, (0, 3, 1, 2))


# --------------------------------------------------------------------------- #
# Deterministic synthetic parameters                                           #
# --------------------------------------------------------------------------- #
def init_params(key):
    ks = jax.random.split(key, 6)

    def conv_w(k, kh, kw, ci, co):
        return jax.random.normal(k, (kh, kw, ci, co), jnp.float32) * 0.1

    def bn(k, c):
        k1, k2, k3, k4 = jax.random.split(k, 4)
        gamma = jax.random.uniform(k1, (c,), jnp.float32, 0.5, 1.5)
        beta = jax.random.normal(k2, (c,), jnp.float32) * 0.1
        mean = jax.random.normal(k3, (c,), jnp.float32) * 0.1
        var = jax.random.uniform(k4, (c,), jnp.float32, 0.5, 1.5)
        return (gamma, beta, mean, var)

    return {
        "w1": conv_w(ks[0], 3, 3, 3, 32),  "bn1": bn(ks[1], 32),
        "w2": conv_w(ks[2], 3, 3, 32, 32), "bn2": bn(ks[3], 32),
        "w3": conv_w(ks[4], 3, 3, 32, 64), "bn3": bn(ks[5], 64),
    }


if __name__ == "__main__":
    key = jax.random.PRNGKey(0)
    kx, kp = jax.random.split(key)
    x = jax.random.normal(kx, (2, 3, 35, 35), jnp.float32)   # NCHW like PyTorch
    params = init_params(kp)

    out = prefeatures_pallas(x, params)
    out = jax.block_until_ready(out)

    ref = prefeatures_ref(x, params)
    assert out.shape == (2, 64, 15, 15), out.shape
    err = float(jnp.max(jnp.abs(out - ref)))
    # bf16 MXU operands (f32 accumulation) across three stacked convs -> 2e-2.
    assert jnp.allclose(out, ref, rtol=2e-2, atol=2e-2), err
    print("KERNEL_OK")
</pallas_src>

<mosaic_0001>
module attributes {stable_mosaic.version = 11 : i64} {
  func.func @_fused_stem_kernel(%arg0: i32, %arg1: memref<1x544x27xbf16, #tpu.memory_space<vmem>>, %arg2: memref<27x32xbf16, #tpu.memory_space<vmem>>, %arg3: memref<3x96x32xbf16, #tpu.memory_space<vmem>>, %arg4: memref<3x96x64xbf16, #tpu.memory_space<vmem>>, %arg5: memref<1x32xf32, #tpu.memory_space<vmem>>, %arg6: memref<1x32xf32, #tpu.memory_space<vmem>>, %arg7: memref<1x64xf32, #tpu.memory_space<vmem>>, %arg8: memref<1x480x64xf32, #tpu.memory_space<vmem>>, %arg9: memref<544x96xf32, #tpu.memory_space<vmem>>, %arg10: memref<552x96xf32, #tpu.memory_space<vmem>>) attributes {dimension_semantics = [#tpu.dimension_semantics<parallel>], iteration_bounds = array<i64: 2>, scalar_prefetch = 0 : i64, scratch_operands = 2 : i64, tpu.core_type = #tpu.core_type<tc>, window_params = [{transform_indices = @transform_0, window_bounds = array<i64: 1, 544, 27>}, {pipeline_mode = #tpu.pipeline_mode<synchronous>, transform_indices = @transform_1, window_bounds = array<i64: 27, 32>}, {pipeline_mode = #tpu.pipeline_mode<synchronous>, transform_indices = @transform_2, window_bounds = array<i64: 3, 96, 32>}, {pipeline_mode = #tpu.pipeline_mode<synchronous>, transform_indices = @transform_3, window_bounds = array<i64: 3, 96, 64>}, {pipeline_mode = #tpu.pipeline_mode<synchronous>, transform_indices = @transform_4, window_bounds = array<i64: 1, 32>}, {pipeline_mode = #tpu.pipeline_mode<synchronous>, transform_indices = @transform_5, window_bounds = array<i64: 1, 32>}, {pipeline_mode = #tpu.pipeline_mode<synchronous>, transform_indices = @transform_6, window_bounds = array<i64: 1, 64>}, {transform_indices = @transform_7, window_bounds = array<i64: 1, 480, 64>}]} {
    %c0 = arith.constant 0 : index
    %c0_0 = arith.constant 0 : index
    %c0_1 = arith.constant 0 : index
    %0 = vector.load %arg1[%c0, %c0_0, %c0_1] : memref<1x544x27xbf16, #tpu.memory_space<vmem>>, vector<1x544x27xbf16>
    %1 = vector.shape_cast %0 : vector<1x544x27xbf16> to vector<544x27xbf16>
    %c0_2 = arith.constant 0 : index
    %c0_3 = arith.constant 0 : index
    %2 = vector.load %arg2[%c0_2, %c0_3] : memref<27x32xbf16, #tpu.memory_space<vmem>>, vector<27x32xbf16>
    %cst = arith.constant dense<0.000000e+00> : vector<544x32xf32>
    %3 = tpu.matmul %1, %2, %cst {dimension_numbers = #tpu.dot_dimension_numbers<[1], [0], [0], [1], [0, 0, 1, 1], [], []>} : vector<544x27xbf16>, vector<27x32xbf16>, vector<544x32xf32> -> vector<544x32xf32>
    %c0_4 = arith.constant 0 : index
    %c0_5 = arith.constant 0 : index
    %4 = vector.load %arg5[%c0_4, %c0_5] : memref<1x32xf32, #tpu.memory_space<vmem>>, vector<1x32xf32>
    %5 = vector.broadcast %4 : vector<1x32xf32> to vector<544x32xf32>
    %6 = arith.addf %3, %5 : vector<544x32xf32>
    %cst_6 = arith.constant 0.000000e+00 : f32
    %7 = vector.broadcast %cst_6 : f32 to vector<544x32xf32>
    %8 = arith.maximumf %6, %7 : vector<544x32xf32>
    %c0_7 = arith.constant 0 : index
    %c0_8 = arith.constant 0 : index
    %9 = vector.load %arg9[%c0_7, %c0_8] : memref<544x96xf32, #tpu.memory_space<vmem>>, vector<544x32xf32>
    tpu.vector_store %arg9[%c0_7, %c0_8], %8 {strides = array<i32>} : memref<544x96xf32, #tpu.memory_space<vmem>>, vector<544x32xf32>,
    %cst_9 = arith.constant 0.000000e+00 : f32
    %10 = vector.broadcast %cst_9 : f32 to vector<2x64xf32>
    %c542 = arith.constant 542 : index
    %c32 = arith.constant 32 : index
    %11 = vector.load %arg9[%c542, %c32] : memref<544x96xf32, #tpu.memory_space<vmem>>, vector<2x64xf32>
    tpu.vector_store %arg9[%c542, %c32], %10 {strides = array<i32>} : memref<544x96xf32, #tpu.memory_space<vmem>>, vector<2x64xf32>,
    %c1 = arith.constant 1 : index
    %c0_10 = arith.constant 0 : index
    %12 = vector.load %arg9[%c1, %c0_10] : memref<544x96xf32, #tpu.memory_space<vmem>>, vector<543x32xf32>
    %c0_11 = arith.constant 0 : index
    %c32_12 = arith.constant 32 : index
    %13 = vector.load %arg9[%c0_11, %c32_12] : memref<544x96xf32, #tpu.memory_space<vmem>>, vector<543x32xf32>
    tpu.vector_store %arg9[%c0_11, %c32_12], %12 {strides = array<i32>} : memref<544x96xf32, #tpu.memory_space<vmem>>, vector<543x32xf32>,
    %c2 = arith.constant 2 : index
    %c0_13 = arith.constant 0 : index
    %14 = vector.load %arg9[%c2, %c0_13] : memref<544x96xf32, #tpu.memory_space<vmem>>, vector<542x32xf32>
    %c0_14 = arith.constant 0 : index
    %c64 = arith.constant 64 : index
    %15 = vector.load %arg9[%c0_14, %c64] : memref<544x96xf32, #tpu.memory_space<vmem>>, vector<542x32xf32>
    tpu.vector_store %arg9[%c0_14, %c64], %14 {strides = array<i32>} : memref<544x96xf32, #tpu.memory_space<vmem>>, vector<542x32xf32>,
    %c0_15 = arith.constant 0 : index
    %c0_16 = arith.constant 0 : index
    %16 = vector.load %arg9[%c0_15, %c0_16] : memref<544x96xf32, #tpu.memory_space<vmem>>, vector<480x96xf32>
    %17 = arith.truncf %16 : vector<480x96xf32> to vector<480x96xbf16>
    %c0_17 = arith.constant 0 : index
    %c0_18 = arith.constant 0 : index
    %c0_19 = arith.constant 0 : index
    %18 = vector.load %arg3[%c0_17, %c0_18, %c0_19] : memref<3x96x32xbf16, #tpu.memory_space<vmem>>, vector<1x96x32xbf16>
    %19 = vector.shape_cast %18 : vector<1x96x32xbf16> to vector<96x32xbf16>
    %cst_20 = arith.constant dense<0.000000e+00> : vector<480x32xf32>
    %20 = tpu.matmul %17, %19, %cst_20 {dimension_numbers = #tpu.dot_dimension_numbers<[1], [0], [0], [1], [0, 0, 1, 1], [], []>} : vector<480x96xbf16>, vector<96x32xbf16>, vector<480x32xf32> -> vector<480x32xf32>
    %c32_21 = arith.constant 32 : index
    %c0_22 = arith.constant 0 : index
    %21 = vector.load %arg9[%c32_21, %c0_22] : memref<544x96xf32, #tpu.memory_space<vmem>>, vector<480x96xf32>
    %22 = arith.truncf %21 : vector<480x96xf32> to vector<480x96xbf16>
    %c1_23 = arith.constant 1 : index
    %c0_24 = arith.constant 0 : index
    %c0_25 = arith.constant 0 : index
    %23 = vector.load %arg3[%c1_23, %c0_24, %c0_25] : memref<3x96x32xbf16, #tpu.memory_space<vmem>>, vector<1x96x32xbf16>
    %24 = vector.shape_cast %23 : vector<1x96x32xbf16> to vector<96x32xbf16>
    %cst_26 = arith.constant dense<0.000000e+00> : vector<480x32xf32>
    %25 = tpu.matmul %22, %24, %cst_26 {dimension_numbers = #tpu.dot_dimension_numbers<[1], [0], [0], [1], [0, 0, 1, 1], [], []>} : vector<480x96xbf16>, vector<96x32xbf16>, vector<480x32xf32> -> vector<480x32xf32>
    %26 = arith.addf %20, %25 : vector<480x32xf32>
    %c64_27 = arith.constant 64 : index
    %c0_28 = arith.constant 0 : index
    %27 = vector.load %arg9[%c64_27, %c0_28] : memref<544x96xf32, #tpu.memory_space<vmem>>, vector<480x96xf32>
    %28 = arith.truncf %27 : vector<480x96xf32> to vector<480x96xbf16>
    %c2_29 = arith.constant 2 : index
    %c0_30 = arith.constant 0 : index
    %c0_31 = arith.constant 0 : index
    %29 = vector.load %arg3[%c2_29, %c0_30, %c0_31] : memref<3x96x32xbf16, #tpu.memory_space<vmem>>, vector<1x96x32xbf16>
    %30 = vector.shape_cast %29 : vector<1x96x32xbf16> to vector<96x32xbf16>
    %cst_32 = arith.constant dense<0.000000e+00> : vector<480x32xf32>
    %31 = tpu.matmul %28, %30, %cst_32 {dimension_numbers = #tpu.dot_dimension_numbers<[1], [0], [0], [1], [0, 0, 1, 1], [], []>} : vector<480x96xbf16>, vector<96x32xbf16>, vector<480x32xf32> -> vector<480x32xf32>
    %32 = arith.addf %26, %31 : vector<480x32xf32>
    %33 = tpu.iota {dimensions = array<i32: 0>} : vector<480x32xi32>
    %c31_i32 = arith.constant 31 : i32
    %34 = vector.broadcast %c31_i32 : i32 to vector<480x32xi32>
    %35 = arith.andi %33, %34 : vector<480x32xi32>
    %c15_i32 = arith.constant 15 : i32
    %36 = vector.broadcast %c15_i32 : i32 to vector<480x32xi32>
    %37 = arith.cmpi slt, %35, %36 : vector<480x32xi32>
    %c0_33 = arith.constant 0 : index
    %c0_34 = arith.constant 0 : index
    %38 = vector.load %arg6[%c0_33, %c0_34] : memref<1x32xf32, #tpu.memory_space<vmem>>, vector<1x32xf32>
    %39 = vector.broadcast %38 : vector<1x32xf32> to vector<480x32xf32>
    %40 = arith.addf %32, %39 : vector<480x32xf32>
    %cst_35 = arith.constant 0.000000e+00 : f32
    %41 = vector.broadcast %cst_35 : f32 to vector<480x32xf32>
    %42 = arith.maximumf %40, %41 : vector<480x32xf32>
    %cst_36 = arith.constant 0.000000e+00 : f32
    %43 = vector.broadcast %cst_36 : f32 to vector<480x32xf32>
    %44 = arith.select %37, %42, %43 : vector<480x32xi1>, vector<480x32xf32>
    %cst_37 = arith.constant 0.000000e+00 : f32
    %45 = vector.broadcast %cst_37 : f32 to vector<40x96xf32>
    %c0_38 = arith.constant 0 : index
    %c0_39 = arith.constant 0 : index
    %46 = vector.load %arg10[%c0_38, %c0_39] : memref<552x96xf32, #tpu.memory_space<vmem>>, vector<40x96xf32>
    tpu.vector_store %arg10[%c0_38, %c0_39], %45 {strides = array<i32>} : memref<552x96xf32, #tpu.memory_space<vmem>>, vector<40x96xf32>,
    %cst_40 = arith.constant 0.000000e+00 : f32
    %47 = vector.broadcast %cst_40 : f32 to vector<40x96xf32>
    %c512 = arith.constant 512 : index
    %c0_41 = arith.constant 0 : index
    %48 = vector.load %arg10[%c512, %c0_41] : memref<552x96xf32, #tpu.memory_space<vmem>>, vector<40x96xf32>
    tpu.vector_store %arg10[%c512, %c0_41], %47 {strides = array<i32>} : memref<552x96xf32, #tpu.memory_space<vmem>>, vector<40x96xf32>,
    %c40 = arith.constant 40 : index
    %c0_42 = arith.constant 0 : index
    %49 = vector.load %arg10[%c40, %c0_42] : memref<552x96xf32, #tpu.memory_space<vmem>>, vector<480x32xf32>
    tpu.vector_store %arg10[%c40, %c0_42], %44 {strides = array<i32>} : memref<552x96xf32, #tpu.memory_space<vmem>>, vector<480x32xf32>,
    %c40_43 = arith.constant 40 : index
    %c0_44 = arith.constant 0 : index
    %50 = vector.load %arg10[%c40_43, %c0_44] : memref<552x96xf32, #tpu.memory_space<vmem>>, vector<480x32xf32>
    %c39 = arith.constant 39 : index
    %c32_45 = arith.constant 32 : index
    %51 = vector.load %arg10[%c39, %c32_45] : memref<552x96xf32, #tpu.memory_space<vmem>>, vector<480x32xf32>
    tpu.vector_store %arg10[%c39, %c32_45], %50 {strides = array<i32>} : memref<552x96xf32, #tpu.memory_space<vmem>>, vector<480x32xf32>,
    %c40_46 = arith.constant 40 : index
    %c0_47 = arith.constant 0 : index
    %52 = vector.load %arg10[%c40_46, %c0_47] : memref<552x96xf32, #tpu.memory_space<vmem>>, vector<480x32xf32>
    %c38 = arith.constant 38 : index
    %c64_48 = arith.constant 64 : index
    %53 = vector.load %arg10[%c38, %c64_48] : memref<552x96xf32, #tpu.memory_space<vmem>>, vector<480x32xf32>
    tpu.vector_store %arg10[%c38, %c64_48], %52 {strides = array<i32>} : memref<552x96xf32, #tpu.memory_space<vmem>>, vector<480x32xf32>,
    %c7 = arith.constant 7 : index
    %c0_49 = arith.constant 0 : index
    %54 = vector.load %arg10[%c7, %c0_49] : memref<552x96xf32, #tpu.memory_space<vmem>>, vector<480x96xf32>
    %55 = arith.truncf %54 : vector<480x96xf32> to vector<480x96xbf16>
    %c0_50 = arith.constant 0 : index
    %c0_51 = arith.constant 0 : index
    %c0_52 = arith.constant 0 : index
    %56 = vector.load %arg4[%c0_50, %c0_51, %c0_52] : memref<3x96x64xbf16, #tpu.memory_space<vmem>>, vector<1x96x64xbf16>
    %57 = vector.shape_cast %56 : vector<1x96x64xbf16> to vector<96x64xbf16>
    %cst_53 = arith.constant dense<0.000000e+00> : vector<480x64xf32>
    %58 = tpu.matmul %55, %57, %cst_53 {dimension_numbers = #tpu.dot_dimension_numbers<[1], [0], [0], [1], [0, 0, 1, 1], [], []>} : vector<480x96xbf16>, vector<96x64xbf16>, vector<480x64xf32> -> vector<480x64xf32>
    %c39_54 = arith.constant 39 : index
    %c0_55 = arith.constant 0 : index
    %59 = vector.load %arg10[%c39_54, %c0_55] : memref<552x96xf32, #tpu.memory_space<vmem>>, vector<480x96xf32>
    %60 = arith.truncf %59 : vector<480x96xf32> to vector<480x96xbf16>
    %c1_56 = arith.constant 1 : index
    %c0_57 = arith.constant 0 : index
    %c0_58 = arith.constant 0 : index
    %61 = vector.load %arg4[%c1_56, %c0_57, %c0_58] : memref<3x96x64xbf16, #tpu.memory_space<vmem>>, vector<1x96x64xbf16>
    %62 = vector.shape_cast %61 : vector<1x96x64xbf16> to vector<96x64xbf16>
    %cst_59 = arith.constant dense<0.000000e+00> : vector<480x64xf32>
    %63 = tpu.matmul %60, %62, %cst_59 {dimension_numbers = #tpu.dot_dimension_numbers<[1], [0], [0], [1], [0, 0, 1, 1], [], []>} : vector<480x96xbf16>, vector<96x64xbf16>, vector<480x64xf32> -> vector<480x64xf32>
    %64 = arith.addf %58, %63 : vector<480x64xf32>
    %c71 = arith.constant 71 : index
    %c0_60 = arith.constant 0 : index
    %65 = vector.load %arg10[%c71, %c0_60] : memref<552x96xf32, #tpu.memory_space<vmem>>, vector<480x96xf32>
    %66 = arith.truncf %65 : vector<480x96xf32> to vector<480x96xbf16>
    %c2_61 = arith.constant 2 : index
    %c0_62 = arith.constant 0 : index
    %c0_63 = arith.constant 0 : index
    %67 = vector.load %arg4[%c2_61, %c0_62, %c0_63] : memref<3x96x64xbf16, #tpu.memory_space<vmem>>, vector<1x96x64xbf16>
    %68 = vector.shape_cast %67 : vector<1x96x64xbf16> to vector<96x64xbf16>
    %cst_64 = arith.constant dense<0.000000e+00> : vector<480x64xf32>
    %69 = tpu.matmul %66, %68, %cst_64 {dimension_numbers = #tpu.dot_dimension_numbers<[1], [0], [0], [1], [0, 0, 1, 1], [], []>} : vector<480x96xbf16>, vector<96x64xbf16>, vector<480x64xf32> -> vector<480x64xf32>
    %70 = arith.addf %64, %69 : vector<480x64xf32>
    %c0_65 = arith.constant 0 : index
    %c0_66 = arith.constant 0 : index
    %71 = vector.load %arg7[%c0_65, %c0_66] : memref<1x64xf32, #tpu.memory_space<vmem>>, vector<1x64xf32>
    %72 = vector.broadcast %71 : vector<1x64xf32> to vector<480x64xf32>
    %73 = arith.addf %70, %72 : vector<480x64xf32>
    %cst_67 = arith.constant 0.000000e+00 : f32
    %74 = vector.broadcast %cst_67 : f32 to vector<480x64xf32>
    %75 = arith.maximumf %73, %74 : vector<480x64xf32>
    %c0_68 = arith.constant 0 : index
    %c0_69 = arith.constant 0 : index
    %c0_70 = arith.constant 0 : index
    %76 = vector.load %arg8[%c0_68, %c0_69, %c0_70] : memref<1x480x64xf32, #tpu.memory_space<vmem>>, vector<1x480x64xf32>
    %77 = vector.shape_cast %76 : vector<1x480x64xf32> to vector<480x64xf32>
    %78 = vector.shape_cast %75 : vector<480x64xf32> to vector<1x480x64xf32>
    tpu.vector_store %arg8[%c0_68, %c0_69, %c0_70], %78 {strides = array<i32>} : memref<1x480x64xf32, #tpu.memory_space<vmem>>, vector<1x480x64xf32>,
    return
  }
  func.func @transform_0(%arg0: i32) -> (i32, i32, i32) {
    %c0_i32 = arith.constant 0 : i32
    %c0_i32_0 = arith.constant 0 : i32
    %c0_i32_1 = arith.constant 0 : i32
    return %arg0, %c0_i32, %c0_i32_0 : i32, i32, i32
  }
  func.func @transform_1(%arg0: i32) -> (i32, i32) {
    %c0_i32 = arith.constant 0 : i32
    %c0_i32_0 = arith.constant 0 : i32
    %c0_i32_1 = arith.constant 0 : i32
    return %c0_i32, %c0_i32_0 : i32, i32
  }
  func.func @transform_2(%arg0: i32) -> (i32, i32, i32) {
    %c0_i32 = arith.constant 0 : i32
    %c0_i32_0 = arith.constant 0 : i32
    %c0_i32_1 = arith.constant 0 : i32
    %c0_i32_2 = arith.constant 0 : i32
    return %c0_i32, %c0_i32_0, %c0_i32_1 : i32, i32, i32
  }
  func.func @transform_3(%arg0: i32) -> (i32, i32, i32) {
    %c0_i32 = arith.constant 0 : i32
    %c0_i32_0 = arith.constant 0 : i32
    %c0_i32_1 = arith.constant 0 : i32
    %c0_i32_2 = arith.constant 0 : i32
    return %c0_i32, %c0_i32_0, %c0_i32_1 : i32, i32, i32
  }
  func.func @transform_4(%arg0: i32) -> (i32, i32) {
    %c0_i32 = arith.constant 0 : i32
    %c0_i32_0 = arith.constant 0 : i32
    %c0_i32_1 = arith.constant 0 : i32
    return %c0_i32, %c0_i32_0 : i32, i32
  }
  func.func @transform_5(%arg0: i32) -> (i32, i32) {
    %c0_i32 = arith.constant 0 : i32
    %c0_i32_0 = arith.constant 0 : i32
    %c0_i32_1 = arith.constant 0 : i32
    return %c0_i32, %c0_i32_0 : i32, i32
  }
  func.func @transform_6(%arg0: i32) -> (i32, i32) {
    %c0_i32 = arith.constant 0 : i32
    %c0_i32_0 = arith.constant 0 : i32
    %c0_i32_1 = arith.constant 0 : i32
    return %c0_i32, %c0_i32_0 : i32, i32
  }
  func.func @transform_7(%arg0: i32) -> (i32, i32, i32) {
    %c0_i32 = arith.constant 0 : i32
    %c0_i32_0 = arith.constant 0 : i32
    %c0_i32_1 = arith.constant 0 : i32
    return %arg0, %c0_i32, %c0_i32_0 : i32, i32, i32
  }
}

</mosaic_0001>

<llo_original>
// kernel: prefeatures_pallas.1
$region0: #{prefeatures_pallas.1}
  #allocation0 [shape = 'u32[]', space=smem, size = 0x4, offset = 0x4, fixed_abs, tag = 'smem constant byte address 0x4 - core index']
  #allocation1 [shape = 'u32[144,128]{1,0:T(1,128)}', space=vmem, size = 0x12000, scoped, tag = 'internal scratch']
  #allocation2 [shape = 'f32[544,96]{1,0:T(8,128)}', space=vmem, size = 0x44000, scoped, tag = 'scratch operand']
  #allocation3 [shape = 'f32[552,96]{1,0:T(8,128)}', space=vmem, size = 0x45000, scoped, tag = 'scratch operand']
  %s0 = inlined_call_operand.vmem [shape: bf16[2,544,27], index: 0, kind: input, shape index: {}]
  %s1 = inlined_call_operand.vmem [shape: bf16[27,32], index: 1, kind: input, shape index: {}]
  %s2 = inlined_call_operand.vmem [shape: bf16[3,96,32], index: 2, kind: input, shape index: {}]
  %s3 = inlined_call_operand.vmem [shape: bf16[3,96,64], index: 3, kind: input, shape index: {}]
  %s4 = inlined_call_operand.vmem [shape: f32[1,32], index: 4, kind: input, shape index: {}]
  %s5 = inlined_call_operand.vmem [shape: f32[1,32], index: 5, kind: input, shape index: {}]
  %s6 = inlined_call_operand.vmem [shape: f32[1,64], index: 6, kind: input, shape index: {}]
  %s7 = inlined_call_operand.vmem [shape: f32[2,480,64], index: 7, kind: output, shape index: {}]
  %s8 = sld [smem:[#allocation0]]
  $region61: #{prefeatures_pallas.1} parent=0
    _
  %s10 = ssub.s32 1, %s8
  %s11 = scalar_select 0, %s10, %s8
  loop: start=0, step=1, limit=4
  $region2: #{prefeatures_pallas.1} parent=0 // loop_pre_header
    _
  $region3: #{prefeatures_pallas.1} parent=0 // loop_header
    %s13 = sphi 0, %s17
    %p14 = scmp.ge.s32.totalorder %s13, 4
    %s23 = sphi 0, %s25
    %s26 = sphi 0, %s23
    %s27 = sphi 0, %s26
    %s43 = sphi 0, %s27
    %s47 = sphi 0, %s47
    %s49 = sphi 0, %s47
    %s50 = sphi 0, %s49
    %s64 = sphi 0, %s50
    %s68 = sphi 0, %s68
    %s70 = sphi 0, %s68
    %s71 = sphi 0, %s70
    %s85 = sphi 0, %s71
    %s89 = sphi 0, %s89
    %s91 = sphi 0, %s89
    %s92 = sphi 0, %s91
    %s106 = sphi 0, %s92
    %s110 = sphi 0, %s110
    %s112 = sphi 0, %s110
    %s113 = sphi 0, %s112
    %s127 = sphi 0, %s113
    %s131 = sphi 0, %s131
    %s133 = sphi 0, %s131
    %s134 = sphi 0, %s133
    %s148 = sphi 0, %s134
    %s152 = sphi 0, %s152
    %s154 = sphi 0, %s152
    %s155 = sphi 0, %s154
    %s169 = sphi 0, %s155
    %s175 = sphi 0, %s177
    %s178 = sphi 0, %s175
    %s179 = sphi 0, %s178
    %s195 = sphi 0, %s179
  $region4: #{prefeatures_pallas.1} parent=0 // loop_header_branch
    %16 = sbr.rel (%p14) target = $region8
  $region5: #{prefeatures_pallas.1} parent=0 // loop_body
    %s18 = ssub.s32 %s13, 1
    %s19 = ssub.s32 %s13, 2
    %s20 = sadd.s32 %s13, 1
    %s21 = ssub.s32 %s13, %s20
    %p22 = scmp.eq.s32.totalorder %s21, 0
    %s24 = sadd.s32 %s23, 1
    %s25 = scalar_select %p22, %s23, %s24
    %p28 = pneg %p22
    %p29 = scmp.eq.s32.totalorder %s13, 1
    %p30 = por %p28, %p29
    %p31 = scmp.ne.s32.totalorder %s23, %s26
    %p32 = scmp.eq.s32.totalorder %s13, 0
    %p33 = por %p31, %p32
    %p34 = scmp.ne.s32.totalorder %s23, %s26
    %p35 = scmp.eq.s32.totalorder %s18, 1
    %p36 = por %p34, %p35
    %p37 = scmp.ne.s32.totalorder %s26, %s27
    %p38 = scmp.eq.s32.totalorder %s18, 0
    %p39 = por %p37, %p38
    %p40 = scmp.ne.s32.totalorder %s26, %s27
    %p41 = scmp.eq.s32.totalorder %s19, 1
    %p42 = por %p40, %p41
    %p44 = scmp.ne.s32.totalorder %s27, %s43
    %p45 = scmp.eq.s32.totalorder %s19, 0
    %p46 = por %p44, %p45
    %s48 = sadd.s32 %s47, 1
    %p51 = scmp.eq.s32.totalorder %s13, 1
    %p52 = scmp.ne.s32.totalorder %s47, %s49
    %p53 = scmp.eq.s32.totalorder %s13, 0
    %p54 = por %p52, %p53
    %p55 = scmp.ne.s32.totalorder %s47, %s49
    %p56 = scmp.eq.s32.totalorder %s18, 1
    %p57 = por %p55, %p56
    %p58 = scmp.ne.s32.totalorder %s49, %s50
    %p59 = scmp.eq.s32.totalorder %s18, 0
    %p60 = por %p58, %p59
    %p61 = scmp.ne.s32.totalorder %s49, %s50
    %p62 = scmp.eq.s32.totalorder %s19, 1
    %p63 = por %p61, %p62
    %p65 = scmp.ne.s32.totalorder %s50, %s64
    %p66 = scmp.eq.s32.totalorder %s19, 0
    %p67 = por %p65, %p66
    %s69 = sadd.s32 %s68, 1
    %p72 = scmp.eq.s32.totalorder %s13, 1
    %p73 = scmp.ne.s32.totalorder %s68, %s70
    %p74 = scmp.eq.s32.totalorder %s13, 0
    %p75 = por %p73, %p74
    %p76 = scmp.ne.s32.totalorder %s68, %s70
    %p77 = scmp.eq.s32.totalorder %s18, 1
    %p78 = por %p76, %p77
    %p79 = scmp.ne.s32.totalorder %s70, %s71
    %p80 = scmp.eq.s32.totalorder %s18, 0
    %p81 = por %p79, %p80
    %p82 = scmp.ne.s32.totalorder %s70, %s71
    %p83 = scmp.eq.s32.totalorder %s19, 1
    %p84 = por %p82, %p83
    %p86 = scmp.ne.s32.totalorder %s71, %s85
    %p87 = scmp.eq.s32.totalorder %s19, 0
    %p88 = por %p86, %p87
    %s90 = sadd.s32 %s89, 1
    %p93 = scmp.eq.s32.totalorder %s13, 1
    %p94 = scmp.ne.s32.totalorder %s89, %s91
    %p95 = scmp.eq.s32.totalorder %s13, 0
    %p96 = por %p94, %p95
    %p97 = scmp.ne.s32.totalorder %s89, %s91
    %p98 = scmp.eq.s32.totalorder %s18, 1
    %p99 = por %p97, %p98
    %p100 = scmp.ne.s32.totalorder %s91, %s92
    %p101 = scmp.eq.s32.totalorder %s18, 0
    %p102 = por %p100, %p101
    %p103 = scmp.ne.s32.totalorder %s91, %s92
    %p104 = scmp.eq.s32.totalorder %s19, 1
    %p105 = por %p103, %p104
    %p107 = scmp.ne.s32.totalorder %s92, %s106
    %p108 = scmp.eq.s32.totalorder %s19, 0
    %p109 = por %p107, %p108
    %s111 = sadd.s32 %s110, 1
    %p114 = scmp.eq.s32.totalorder %s13, 1
    %p115 = scmp.ne.s32.totalorder %s110, %s112
    %p116 = scmp.eq.s32.totalorder %s13, 0
    %p117 = por %p115, %p116
    %p118 = scmp.ne.s32.totalorder %s110, %s112
    %p119 = scmp.eq.s32.totalorder %s18, 1
    %p120 = por %p118, %p119
    %p121 = scmp.ne.s32.totalorder %s112, %s113
    %p122 = scmp.eq.s32.totalorder %s18, 0
    %p123 = por %p121, %p122
    %p124 = scmp.ne.s32.totalorder %s112, %s113
    %p125 = scmp.eq.s32.totalorder %s19, 1
    %p126 = por %p124, %p125
    %p128 = scmp.ne.s32.totalorder %s113, %s127
    %p129 = scmp.eq.s32.totalorder %s19, 0
    %p130 = por %p128, %p129
    %s132 = sadd.s32 %s131, 1
    %p135 = scmp.eq.s32.totalorder %s13, 1
    %p136 = scmp.ne.s32.totalorder %s131, %s133
    %p137 = scmp.eq.s32.totalorder %s13, 0
    %p138 = por %p136, %p137
    %p139 = scmp.ne.s32.totalorder %s131, %s133
    %p140 = scmp.eq.s32.totalorder %s18, 1
    %p141 = por %p139, %p140
    %p142 = scmp.ne.s32.totalorder %s133, %s134
    %p143 = scmp.eq.s32.totalorder %s18, 0
    %p144 = por %p142, %p143
    %p145 = scmp.ne.s32.totalorder %s133, %s134
    %p146 = scmp.eq.s32.totalorder %s19, 1
    %p147 = por %p145, %p146
    %p149 = scmp.ne.s32.totalorder %s134, %s148
    %p150 = scmp.eq.s32.totalorder %s19, 0
    %p151 = por %p149, %p150
    %s153 = sadd.s32 %s152, 1
    %p156 = scmp.eq.s32.totalorder %s13, 1
    %p157 = scmp.ne.s32.totalorder %s152, %s154
    %p158 = scmp.eq.s32.totalorder %s13, 0
    %p159 = por %p157, %p158
    %p160 = scmp.ne.s32.totalorder %s152, %s154
    %p161 = scmp.eq.s32.totalorder %s18, 1
    %p162 = por %p160, %p161
    %p163 = scmp.ne.s32.totalorder %s154, %s155
    %p164 = scmp.eq.s32.totalorder %s18, 0
    %p165 = por %p163, %p164
    %p166 = scmp.ne.s32.totalorder %s154, %s155
    %p167 = scmp.eq.s32.totalorder %s19, 1
    %p168 = por %p166, %p167
    %p170 = scmp.ne.s32.totalorder %s155, %s169
    %p171 = scmp.eq.s32.totalorder %s19, 0
    %p172 = por %p170, %p171
    %s173 = ssub.s32 %s13, %s20
    %p174 = scmp.eq.s32.totalorder %s173, 0
    %s176 = sadd.s32 %s175, 1
    %s177 = scalar_select %p174, %s175, %s176
    %p180 = pneg %p174
    %p181 = scmp.eq.s32.totalorder %s13, 1
    %p182 = por %p180, %p181
    %p183 = scmp.ne.s32.totalorder %s175, %s178
    %p184 = scmp.eq.s32.totalorder %s13, 0
    %p185 = por %p183, %p184
    %p186 = scmp.ne.s32.totalorder %s175, %s178
    %p187 = scmp.eq.s32.totalorder %s18, 1
    %p188 = por %p186, %p187
    %p189 = scmp.ne.s32.totalorder %s178, %s179
    %p190 = scmp.eq.s32.totalorder %s18, 0
    %p191 = por %p189, %p190
    %p192 = scmp.ne.s32.totalorder %s178, %s179
    %p193 = scmp.eq.s32.totalorder %s19, 1
    %p194 = por %p192, %p193
    %p196 = scmp.ne.s32.totalorder %s179, %s195
    %p197 = scmp.eq.s32.totalorder %s19, 0
    %p198 = por %p196, %p197
    %p199 = scmp.le.s32.totalorder 1, %s13
    %p200 = scmp.lt.s32.totalorder %s13, 3
    %p201 = pnand %p199, %p200
    %p202 = pneg %p201
    // Predicated region
    $region9: #{prefeatures_pallas.1} parent=5 // pred_check
      _
    $region10: #{prefeatures_pallas.1} parent=5 // pred_check_branch
      %204 = sbr.rel (%p201) target = $region12
    $region11: #{prefeatures_pallas.1} parent=5 // pred_region
      %s205 = ssub.s32 %s13, 1
      // Predicated region
      $region13: #{prefeatures_pallas.1} parent=11 // pred_check
        %p206 = pneg %p60
      $region14: #{prefeatures_pallas.1} parent=11 // pred_check_branch
        %208 = sbr.rel (%p206) target = $region16
      $region15: #{prefeatures_pallas.1} parent=11 // pred_region
        _
      $region16: #{prefeatures_pallas.1} parent=11 // pred_fallthru
        _
      // Predicated region
      $region17: #{prefeatures_pallas.1} parent=11 // pred_check
        %p209 = pneg %p81
      $region18: #{prefeatures_pallas.1} parent=11 // pred_check_branch
        %211 = sbr.rel (%p209) target = $region20
      $region19: #{prefeatures_pallas.1} parent=11 // pred_region
        _
      $region20: #{prefeatures_pallas.1} parent=11 // pred_fallthru
        _
      // Predicated region
      $region21: #{prefeatures_pallas.1} parent=11 // pred_check
        %p212 = pneg %p102
      $region22: #{prefeatures_pallas.1} parent=11 // pred_check_branch
        %214 = sbr.rel (%p212) target = $region24
      $region23: #{prefeatures_pallas.1} parent=11 // pred_region
        _
      $region24: #{prefeatures_pallas.1} parent=11 // pred_fallthru
        _
      // Predicated region
      $region25: #{prefeatures_pallas.1} parent=11 // pred_check
        %p215 = pneg %p123
      $region26: #{prefeatures_pallas.1} parent=11 // pred_check_branch
        %217 = sbr.rel (%p215) target = $region28
      $region27: #{prefeatures_pallas.1} parent=11 // pred_region
        _
      $region28: #{prefeatures_pallas.1} parent=11 // pred_fallthru
        _
      // Predicated region
      $region29: #{prefeatures_pallas.1} parent=11 // pred_check
        %p218 = pneg %p144
      $region30: #{prefeatures_pallas.1} parent=11 // pred_check_branch
        %220 = sbr.rel (%p218) target = $region32
      $region31: #{prefeatures_pallas.1} parent=11 // pred_region
        _
      $region32: #{prefeatures_pallas.1} parent=11 // pred_fallthru
        _
      // Predicated region
      $region33: #{prefeatures_pallas.1} parent=11 // pred_check
        %p221 = pneg %p165
      $region34: #{prefeatures_pallas.1} parent=11 // pred_check_branch
        %223 = sbr.rel (%p221) target = $region36
      $region35: #{prefeatures_pallas.1} parent=11 // pred_region
        _
      $region36: #{prefeatures_pallas.1} parent=11 // pred_fallthru
        _
    $region12: #{prefeatures_pallas.1} parent=5 // pred_fallthru
      _
    %p224 = scmp.lt.s32.totalorder %s13, 2
    // Predicated region
    $region37: #{prefeatures_pallas.1} parent=5 // pred_check
      %p225 = pneg %p224
    $region38: #{prefeatures_pallas.1} parent=5 // pred_check_branch
      %227 = sbr.rel (%p225) target = $region40
    $region39: #{prefeatures_pallas.1} parent=5 // pred_region
      // Predicated region
      $region41: #{prefeatures_pallas.1} parent=39 // pred_check
        %p228 = pneg %p33
      $region42: #{prefeatures_pallas.1} parent=39 // pred_check_branch
        %230 = sbr.rel (%p228) target = $region44
      $region43: #{prefeatures_pallas.1} parent=39 // pred_region
        %p231 = scmp.lt.s32.totalorder %s13, 1
        %s232 = scalar_select %p231, %s13, 1
        %s233 = smul.addr %s232, 68
        %s234 = smul.addr %s233, 4
        %s235 = scalar_lea.vmem %s0, %s234
      $region44: #{prefeatures_pallas.1} parent=39 // pred_fallthru
        _
    $region40: #{prefeatures_pallas.1} parent=5 // pred_fallthru
      _
    %p236 = scmp.le.s32.totalorder 1, %s13
    %p237 = scmp.lt.s32.totalorder %s13, 3
    %p238 = pnand %p236, %p237
    %p239 = pneg %p238
    // Predicated region
    $region45: #{prefeatures_pallas.1} parent=5 // pred_check
      _
    $region46: #{prefeatures_pallas.1} parent=5 // pred_check_branch
      %241 = sbr.rel (%p238) target = $region48
    $region47: #{prefeatures_pallas.1} parent=5 // pred_region
      %s242 = ssub.s32 %s13, 1
      %p243 = scmp.lt.s32.totalorder %s18, 1
      %s244 = scalar_select %p243, %s18, 1
      %s245 = smul.addr %s244, 68
      %s246 = smul.addr %s245, 4
      %s247 = scalar_lea.vmem %s0, %s246
      %p248 = pneg %p39
      %p249 = pneg %p36
      %p250 = pneg %p60
      %p251 = pneg %p57
      %p252 = pneg %p81
      %p253 = pneg %p78
      %p254 = pneg %p102
      %p255 = pneg %p99
      %p256 = pneg %p123
      %p257 = pneg %p120
      %p258 = pneg %p144
      %p259 = pneg %p141
      %p260 = pneg %p165
      %p261 = pneg %p162
      %p262 = pneg %p191
      %p263 = pneg %p188
      %p264 = scmp.lt.s32.totalorder %s18, 1
      %s265 = scalar_select %p264, %s18, 1
      %s266 = smul.addr %s265, 60
      %s267 = smul.addr %s266, 8
      %s268 = scalar_lea.vmem %s7, %s267
      %p269 = scmp.lt.s32.totalorder %s18, 1
      %s270 = scalar_select %p269, %s18, 1
      %s271 = smul.addr %s270, 68
      %s272 = smul.addr %s271, 4
      %s273 = scalar_lea.vmem %s0, %s272
      %p274 = scmp.lt.s32.totalorder %s18, 1
      %s275 = scalar_select %p274, %s18, 1
      %s276 = smul.addr %s275, 60
      %s277 = smul.addr %s276, 8
      %s278 = scalar_lea.vmem %s7, %s277
      %v280 = vld [vmem:[%s273] sm:$0xf]
      %v281 = vld [vmem:[%s273 + $0x4] sm:$0xf]
      %v282 = vld [vmem:[%s273 + $0x8] sm:$0xf]
      %v283 = vld [vmem:[%s273 + $0xc] sm:$0xf]
      %v284 = vld [vmem:[%s273 + $0x10] sm:$0xf]
      %v285 = vld [vmem:[%s273 + $0x14] sm:$0xf]
      %v286 = vld [vmem:[%s273 + $0x18] sm:$0xf]
      %v287 = vld [vmem:[%s273 + $0x1c] sm:$0xf]
      %v288 = vld [vmem:[%s273 + $0x20] sm:$0xf]
      %v289 = vld [vmem:[%s273 + $0x24] sm:$0xf]
      %v290 = vld [vmem:[%s273 + $0x28] sm:$0xf]
      %v291 = vld [vmem:[%s273 + $0x2c] sm:$0xf]
      %v292 = vld [vmem:[%s273 + $0x30] sm:$0xf]
      %v293 = vld [vmem:[%s273 + $0x34] sm:$0xf]
      %v294 = vld [vmem:[%s273 + $0x38] sm:$0xf]
      %v295 = vld [vmem:[%s273 + $0x3c] sm:$0xf]
      %v296 = vld [vmem:[%s273 + $0x40] sm:$0xf]
      %v297 = vld [vmem:[%s273 + $0x44] sm:$0xf]
      %v298 = vld [vmem:[%s273 + $0x48] sm:$0xf]
      %v299 = vld [vmem:[%s273 + $0x4c] sm:$0xf]
      %v300 = vld [vmem:[%s273 + $0x50] sm:$0xf]
      %v301 = vld [vmem:[%s273 + $0x54] sm:$0xf]
      %v302 = vld [vmem:[%s273 + $0x58] sm:$0xf]
      %v303 = vld [vmem:[%s273 + $0x5c] sm:$0xf]
      %v304 = vld [vmem:[%s273 + $0x60] sm:$0xf]
      %v305 = vld [vmem:[%s273 + $0x64] sm:$0xf]
      %v306 = vld [vmem:[%s273 + $0x68] sm:$0xf]
      %v307 = vld [vmem:[%s273 + $0x6c] sm:$0xf]
      %v308 = vld [vmem:[%s273 + $0x70] sm:$0xf]
      %v309 = vld [vmem:[%s273 + $0x74] sm:$0xf]
      %v310 = vld [vmem:[%s273 + $0x78] sm:$0xf]
      %v311 = vld [vmem:[%s273 + $0x7c] sm:$0xf]
      %v312 = vld [vmem:[%s273 + $0x80] sm:$0xf]
      %v313 = vld [vmem:[%s273 + $0x84] sm:$0xf]
      %v314 = vld [vmem:[%s273 + $0x88] sm:$0xf]
      %v315 = vld [vmem:[%s273 + $0x8c] sm:$0xf]
      %v316 = vld [vmem:[%s273 + $0x90] sm:$0xf]
      %v317 = vld [vmem:[%s273 + $0x94] sm:$0xf]
      %v318 = vld [vmem:[%s273 + $0x98] sm:$0xf]
      %v319 = vld [vmem:[%s273 + $0x9c] sm:$0xf]
      %v320 = vld [vmem:[%s273 + $0xa0] sm:$0xf]
      %v321 = vld [vmem:[%s273 + $0xa4] sm:$0xf]
      %v322 = vld [vmem:[%s273 + $0xa8] sm:$0xf]
      %v323 = vld [vmem:[%s273 + $0xac] sm:$0xf]
      %v324 = vld [vmem:[%s273 + $0xb0] sm:$0xf]
      %v325 = vld [vmem:[%s273 + $0xb4] sm:$0xf]
      %v326 = vld [vmem:[%s273 + $0xb8] sm:$0xf]
      %v327 = vld [vmem:[%s273 + $0xbc] sm:$0xf]
      %v328 = vld [vmem:[%s273 + $0xc0] sm:$0xf]
      %v329 = vld [vmem:[%s273 + $0xc4] sm:$0xf]
      %v330 = vld [vmem:[%s273 + $0xc8] sm:$0xf]
      %v331 = vld [vmem:[%s273 + $0xcc] sm:$0xf]
      %v332 = vld [vmem:[%s273 + $0xd0] sm:$0xf]
      %v333 = vld [vmem:[%s273 + $0xd4] sm:$0xf]
      %v334 = vld [vmem:[%s273 + $0xd8] sm:$0xf]
      %v335 = vld [vmem:[%s273 + $0xdc] sm:$0xf]
      %v336 = vld [vmem:[%s273 + $0xe0] sm:$0xf]
      %v337 = vld [vmem:[%s273 + $0xe4] sm:$0xf]
      %v338 = vld [vmem:[%s273 + $0xe8] sm:$0xf]
      %v339 = vld [vmem:[%s273 + $0xec] sm:$0xf]
      %v340 = vld [vmem:[%s273 + $0xf0] sm:$0xf]
      %v341 = vld [vmem:[%s273 + $0xf4] sm:$0xf]
      %v342 = vld [vmem:[%s273 + $0xf8] sm:$0xf]
      %v343 = vld [vmem:[%s273 + $0xfc] sm:$0xf]
      %v344 = vld [vmem:[%s273 + $0x100] sm:$0xf]
      %v345 = vld [vmem:[%s273 + $0x104] sm:$0xf]
      %v346 = vld [vmem:[%s273 + $0x108] sm:$0xf]
      %v347 = vld [vmem:[%s273 + $0x10c] sm:$0xf]
      %v348 = vld [vmem:[%s1] sm:$0xf]
      %v349 = vld [vmem:[%s1 + $0x4] sm:$0xf]
      %v350 = vld [vmem:[%s1 + $0x8] sm:$0xf]
      %v351 = vld [vmem:[%s1 + $0xc] sm:$0x3]
      %v352 = vld [vmem:[%s4] sm:$0x1]
      %v354 = vlaneseq
      %v355 = vshrl.u32 %v354, 7
      %v356 = vsub.s32 0, %v355
      %v357 = vrot.slane %v352, %v356
      %v427 = vunpack.c.l.b16 %v280
      %v428 = vunpack.c.l.b16 %v281
      %v429 = vunpack.c.l.b16 %v282
      %v430 = vunpack.c.l.b16 %v283
      %v431 = vunpack.c.l.b16 %v284
      %v432 = vunpack.c.l.b16 %v285
      %v433 = vunpack.c.l.b16 %v286
      %v434 = vunpack.c.l.b16 %v287
      %v435 = vunpack.c.l.b16 %v288
      %v436 = vunpack.c.l.b16 %v289
      %v437 = vunpack.c.l.b16 %v290
      %v438 = vunpack.c.l.b16 %v291
      %v439 = vunpack.c.l.b16 %v292
      %v440 = vunpack.c.l.b16 %v293
      %v441 = vunpack.c.l.b16 %v294
      %v442 = vunpack.c.l.b16 %v295
      %v443 = vunpack.c.l.b16 %v296
      %v444 = vunpack.c.l.b16 %v297
      %v445 = vunpack.c.l.b16 %v298
      %v446 = vunpack.c.l.b16 %v299
      %v447 = vunpack.c.l.b16 %v300
      %v448 = vunpack.c.l.b16 %v301
      %v449 = vunpack.c.l.b16 %v302
      %v450 = vunpack.c.l.b16 %v303
      %v451 = vunpack.c.l.b16 %v304
      %v452 = vunpack.c.l.b16 %v305
      %v453 = vunpack.c.l.b16 %v306
      %v454 = vunpack.c.l.b16 %v307
      %v455 = vunpack.c.l.b16 %v308
      %v456 = vunpack.c.l.b16 %v309
      %v457 = vunpack.c.l.b16 %v310
      %v458 = vunpack.c.l.b16 %v311
      %v459 = vunpack.c.l.b16 %v312
      %v460 = vunpack.c.l.b16 %v313
      %v461 = vunpack.c.l.b16 %v314
      %v462 = vunpack.c.l.b16 %v315
      %v463 = vunpack.c.l.b16 %v316
      %v464 = vunpack.c.l.b16 %v317
      %v465 = vunpack.c.l.b16 %v318
      %v466 = vunpack.c.l.b16 %v319
      %v467 = vunpack.c.l.b16 %v320
      %v468 = vunpack.c.l.b16 %v321
      %v469 = vunpack.c.l.b16 %v322
      %v470 = vunpack.c.l.b16 %v323
      %v471 = vunpack.c.l.b16 %v324
      %v472 = vunpack.c.l.b16 %v325
      %v473 = vunpack.c.l.b16 %v326
      %v474 = vunpack.c.l.b16 %v327
      %v475 = vunpack.c.l.b16 %v328
      %v476 = vunpack.c.l.b16 %v329
      %v477 = vunpack.c.l.b16 %v330
      %v478 = vunpack.c.l.b16 %v331
      %v479 = vunpack.c.l.b16 %v332
      %v480 = vunpack.c.l.b16 %v333
      %v481 = vunpack.c.l.b16 %v334
      %v482 = vunpack.c.l.b16 %v335
      %v483 = vunpack.c.l.b16 %v336
      %v484 = vunpack.c.l.b16 %v337
      %v485 = vunpack.c.l.b16 %v338
      %v486 = vunpack.c.l.b16 %v339
      %v487 = vunpack.c.l.b16 %v340
      %v488 = vunpack.c.l.b16 %v341
      %v489 = vunpack.c.l.b16 %v342
      %v490 = vunpack.c.l.b16 %v343
      %v491 = vunpack.c.l.b16 %v344
      %v492 = vunpack.c.l.b16 %v345
      %v493 = vunpack.c.l.b16 %v346
      %v494 = vunpack.c.l.b16 %v347
      %v495 = vpack.c.b16 %v428, %v427
      %v496 = vpack.c.b16 %v430, %v429
      %v497 = vpack.c.b16 %v432, %v431
      %v498 = vpack.c.b16 %v434, %v433
      %v499 = vpack.c.b16 %v436, %v435
      %v500 = vpack.c.b16 %v438, %v437
      %v501 = vpack.c.b16 %v440, %v439
      %v502 = vpack.c.b16 %v442, %v441
      %v503 = vpack.c.b16 %v444, %v443
      %v504 = vpack.c.b16 %v446, %v445
      %v505 = vpack.c.b16 %v448, %v447
      %v506 = vpack.c.b16 %v450, %v449
      %v507 = vpack.c.b16 %v452, %v451
      %v508 = vpack.c.b16 %v454, %v453
      %v509 = vpack.c.b16 %v456, %v455
      %v510 = vpack.c.b16 %v458, %v457
      %v511 = vpack.c.b16 %v460, %v459
      %v512 = vpack.c.b16 %v462, %v461
      %v513 = vpack.c.b16 %v464, %v463
      %v514 = vpack.c.b16 %v466, %v465
      %v515 = vpack.c.b16 %v468, %v467
      %v516 = vpack.c.b16 %v470, %v469
      %v517 = vpack.c.b16 %v472, %v471
      %v518 = vpack.c.b16 %v474, %v473
      %v519 = vpack.c.b16 %v476, %v475
      %v520 = vpack.c.b16 %v478, %v477
      %v521 = vpack.c.b16 %v480, %v479
      %v522 = vpack.c.b16 %v482, %v481
      %v523 = vpack.c.b16 %v484, %v483
      %v524 = vpack.c.b16 %v486, %v485
      %v525 = vpack.c.b16 %v488, %v487
      %v526 = vpack.c.b16 %v490, %v489
      %v527 = vpack.c.b16 %v492, %v491
      %v528 = vpack.c.b16 %v494, %v493
      %v533 = vunpack.c.l.b16 %v348
      %v534 = vunpack.c.l.b16 %v349
      %v535 = vunpack.c.l.b16 %v350
      %v536 = vunpack.c.l.b16 %v351
      %v537 = vpack.c.b16 %v534, %v533
      %v538 = vpack.c.b16 %v536, %v535
      %vm540 = vcmask 220160
      %v542 = vsel %vm540, %v495, 0
      %v545 = vsel %vm540, %v496, 0
      %v548 = vsel %vm540, %v497, 0
      %v551 = vsel %vm540, %v498, 0
      %v554 = vsel %vm540, %v499, 0
      %v557 = vsel %vm540, %v500, 0
      %v560 = vsel %vm540, %v501, 0
      %v563 = vsel %vm540, %v502, 0
      %v566 = vsel %vm540, %v503, 0
      %v569 = vsel %vm540, %v504, 0
      %v572 = vsel %vm540, %v505, 0
      %v575 = vsel %vm540, %v506, 0
      %v578 = vsel %vm540, %v507, 0
      %v581 = vsel %vm540, %v508, 0
      %v584 = vsel %vm540, %v509, 0
      %v587 = vsel %vm540, %v510, 0
      %v590 = vsel %vm540, %v511, 0
      %v593 = vsel %vm540, %v512, 0
      %v596 = vsel %vm540, %v513, 0
      %v599 = vsel %vm540, %v514, 0
      %v602 = vsel %vm540, %v515, 0
      %v605 = vsel %vm540, %v516, 0
      %v608 = vsel %vm540, %v517, 0
      %v611 = vsel %vm540, %v518, 0
      %v614 = vsel %vm540, %v519, 0
      %v617 = vsel %vm540, %v520, 0
      %v620 = vsel %vm540, %v521, 0
      %v623 = vsel %vm540, %v522, 0
      %v626 = vsel %vm540, %v523, 0
      %v629 = vsel %vm540, %v524, 0
      %v632 = vsel %vm540, %v525, 0
      %v635 = vsel %vm540, %v526, 0
      %v638 = vsel %vm540, %v527, 0
      %v641 = vsel %vm540, %v528, 0
      %vm643 = vcmask 1044480
      %vm644 = vcmask 1045504
      %v645 = vsel %vm643, 4294967295, 65535
      %v646 = vsel %vm644, %v645, 0
      %v648 = vand.u32 %v538, %v646
      %650 = vmatprep.subr.bf16.mxu0 0
      %651 = vmatpush1.bf16.msra.mxu0 0
      %652 = vmatprep.subr.bf16.mxu0 0
      %653 = vmatpush1.bf16.msra.mxu0 0
      %654 = vmatprep.subr.bf16.mxu0 0
      %655 = vmatpush1.bf16.msra.mxu0 0
      %656 = vmatprep.subr.bf16.mxu0 0
      %657 = vmatpush1.bf16.msra.mxu0 0
      %658 = vmatprep.subr.bf16.mxu0 0
      %659 = vmatpush1.bf16.msra.mxu0 0
      %660 = vmatprep.subr.bf16.mxu0 0
      %661 = vmatpush1.bf16.msra.mxu0 0
      %662 = vmatprep.subr.bf16.mxu0 0
      %663 = vmatpush1.bf16.msra.mxu0 %v648
      %664 = vmatprep.subr.bf16.mxu0 0
      %665 = vmatpush1.bf16.msra.mxu0 %v537
      %666 = vmatprep.subr.bf16.mxu0 0
      %667 = vmatpush2.bf16.msra.mxu0 0
      %668 = vmatprep.subr.bf16.mxu0 0
      %669 = vmatpush2.bf16.msra.mxu0 0
      %670 = vmatprep.subr.bf16.mxu0 0
      %671 = vmatpush2.bf16.msra.mxu0 0
      %672 = vmatprep.subr.bf16.mxu0 0
      %673 = vmatpush2.bf16.msra.mxu0 0
      %674 = vmatprep.subr.bf16.mxu0 0
      %675 = vmatpush2.bf16.msra.mxu0 0
      %676 = vmatprep.subr.bf16.mxu0 0
      %677 = vmatpush2.bf16.msra.mxu0 0
      %678 = vmatprep.subr.bf16.mxu0 0
      %679 = vmatpush2.bf16.msra.mxu0 0
      %680 = vmatprep.subr.bf16.mxu0 0
      %681 = vmatpush2.bf16.msra.mxu0 0
      %682 = vmatprep.mubr.bf16.mxu0 0
      %683 = vmatmul.mubr.bf16.gmra.mxu0 %v542
      %v684 = vpop.f32.mrf.mxu0
      %v685 = vadd.f32 %v357, %v684
      %v686 = vpop.f32.mrf.mxu0
      %v687 = vpop.f32.mrf.mxu0
      %v688 = vadd.f32 %v357, %v687
      %v689 = vpop.f32.mrf.mxu0
      %690 = vmatprep.mubr.bf16.mxu0 0
      %691 = vmatmul.mubr.bf16.gmra.mxu0 %v545
      %v692 = vpop.f32.mrf.mxu0
      %v693 = vadd.f32 %v357, %v692
      %v694 = vpop.f32.mrf.mxu0
      %v695 = vpop.f32.mrf.mxu0
      %v696 = vadd.f32 %v357, %v695
      %v697 = vpop.f32.mrf.mxu0
      %698 = vmatprep.mubr.bf16.mxu0 0
      %699 = vmatmul.mubr.bf16.gmra.mxu0 %v548
      %v700 = vpop.f32.mrf.mxu0
      %v701 = vadd.f32 %v357, %v700
      %v702 = vpop.f32.mrf.mxu0
      %v703 = vpop.f32.mrf.mxu0
      %v704 = vadd.f32 %v357, %v703
      %v705 = vpop.f32.mrf.mxu0
      %706 = vmatprep.mubr.bf16.mxu0 0
      %707 = vmatmul.mubr.bf16.gmra.mxu0 %v551
      %v708 = vpop.f32.mrf.mxu0
      %v709 = vadd.f32 %v357, %v708
      %v710 = vpop.f32.mrf.mxu0
      %v711 = vpop.f32.mrf.mxu0
      %v712 = vadd.f32 %v357, %v711
      %v713 = vpop.f32.mrf.mxu0
      %714 = vmatprep.mubr.bf16.mxu0 0
      %715 = vmatmul.mubr.bf16.gmra.mxu0 %v554
      %v716 = vpop.f32.mrf.mxu0
      %v717 = vadd.f32 %v357, %v716
      %v718 = vpop.f32.mrf.mxu0
      %v719 = vpop.f32.mrf.mxu0
      %v720 = vadd.f32 %v357, %v719
      %v721 = vpop.f32.mrf.mxu0
      %722 = vmatprep.mubr.bf16.mxu0 0
      %723 = vmatmul.mubr.bf16.gmra.mxu0 %v557
      %v724 = vpop.f32.mrf.mxu0
      %v725 = vadd.f32 %v357, %v724
      %v726 = vpop.f32.mrf.mxu0
      %v727 = vpop.f32.mrf.mxu0
      %v728 = vadd.f32 %v357, %v727
      %v729 = vpop.f32.mrf.mxu0
      %730 = vmatprep.mubr.bf16.mxu0 0
      %731 = vmatmul.mubr.bf16.gmra.mxu0 %v560
      %v732 = vpop.f32.mrf.mxu0
      %v733 = vadd.f32 %v357, %v732
      %v734 = vpop.f32.mrf.mxu0
      %v735 = vpop.f32.mrf.mxu0
      %v736 = vadd.f32 %v357, %v735
      %v737 = vpop.f32.mrf.mxu0
      %738 = vmatprep.mubr.bf16.mxu0 0
      %739 = vmatmul.mubr.bf16.gmra.mxu0 %v563
      %v740 = vpop.f32.mrf.mxu0
      %v741 = vadd.f32 %v357, %v740
      %v742 = vpop.f32.mrf.mxu0
      %v743 = vpop.f32.mrf.mxu0
      %v744 = vadd.f32 %v357, %v743
      %v745 = vpop.f32.mrf.mxu0
      %746 = vmatprep.mubr.bf16.mxu0 0
      %747 = vmatmul.mubr.bf16.gmra.mxu0 %v566
      %v748 = vpop.f32.mrf.mxu0
      %v749 = vadd.f32 %v357, %v748
      %v750 = vpop.f32.mrf.mxu0
      %v751 = vpop.f32.mrf.mxu0
      %v752 = vadd.f32 %v357, %v751
      %v753 = vpop.f32.mrf.mxu0
      %754 = vmatprep.mubr.bf16.mxu0 0
      %755 = vmatmul.mubr.bf16.gmra.mxu0 %v569
      %v756 = vpop.f32.mrf.mxu0
      %v757 = vadd.f32 %v357, %v756
      %v758 = vpop.f32.mrf.mxu0
      %v759 = vpop.f32.mrf.mxu0
      %v760 = vadd.f32 %v357, %v759
      %v761 = vpop.f32.mrf.mxu0
      %762 = vmatprep.mubr.bf16.mxu0 0
      %763 = vmatmul.mubr.bf16.gmra.mxu0 %v572
      %v764 = vpop.f32.mrf.mxu0
      %v765 = vadd.f32 %v357, %v764
      %v766 = vpop.f32.mrf.mxu0
      %v767 = vpop.f32.mrf.mxu0
      %v768 = vadd.f32 %v357, %v767
      %v769 = vpop.f32.mrf.mxu0
      %770 = vmatprep.mubr.bf16.mxu0 0
      %771 = vmatmul.mubr.bf16.gmra.mxu0 %v575
      %v772 = vpop.f32.mrf.mxu0
      %v773 = vadd.f32 %v357, %v772
      %v774 = vpop.f32.mrf.mxu0
      %v775 = vpop.f32.mrf.mxu0
      %v776 = vadd.f32 %v357, %v775
      %v777 = vpop.f32.mrf.mxu0
      %778 = vmatprep.mubr.bf16.mxu0 0
      %779 = vmatmul.mubr.bf16.gmra.mxu0 %v578
      %v780 = vpop.f32.mrf.mxu0
      %v781 = vadd.f32 %v357, %v780
      %v782 = vpop.f32.mrf.mxu0
      %v783 = vpop.f32.mrf.mxu0
      %v784 = vadd.f32 %v357, %v783
      %v785 = vpop.f32.mrf.mxu0
      %786 = vmatprep.mubr.bf16.mxu0 0
      %787 = vmatmul.mubr.bf16.gmra.mxu0 %v581
      %v788 = vpop.f32.mrf.mxu0
      %v789 = vadd.f32 %v357, %v788
      %v790 = vpop.f32.mrf.mxu0
      %v791 = vpop.f32.mrf.mxu0
      %v792 = vadd.f32 %v357, %v791
      %v793 = vpop.f32.mrf.mxu0
      %794 = vmatprep.mubr.bf16.mxu0 0
      %795 = vmatmul.mubr.bf16.gmra.mxu0 %v584
      %v796 = vpop.f32.mrf.mxu0
      %v797 = vadd.f32 %v357, %v796
      %v798 = vpop.f32.mrf.mxu0
      %v799 = vpop.f32.mrf.mxu0
      %v800 = vadd.f32 %v357, %v799
      %v801 = vpop.f32.mrf.mxu0
      %802 = vmatprep.mubr.bf16.mxu0 0
      %803 = vmatmul.mubr.bf16.gmra.mxu0 %v587
      %v804 = vpop.f32.mrf.mxu0
      %v805 = vadd.f32 %v357, %v804
      %v806 = vpop.f32.mrf.mxu0
      %v807 = vpop.f32.mrf.mxu0
      %v808 = vadd.f32 %v357, %v807
      %v809 = vpop.f32.mrf.mxu0
      %810 = vmatprep.mubr.bf16.mxu0 0
      %811 = vmatmul.mubr.bf16.gmra.mxu0 %v590
      %v812 = vpop.f32.mrf.mxu0
      %v813 = vadd.f32 %v357, %v812
      %v814 = vpop.f32.mrf.mxu0
      %v815 = vpop.f32.mrf.mxu0
      %v816 = vadd.f32 %v357, %v815
      %v817 = vpop.f32.mrf.mxu0
      %818 = vmatprep.mubr.bf16.mxu0 0
      %819 = vmatmul.mubr.bf16.gmra.mxu0 %v593
      %v820 = vpop.f32.mrf.mxu0
      %v821 = vadd.f32 %v357, %v820
      %v822 = vpop.f32.mrf.mxu0
      %v823 = vpop.f32.mrf.mxu0
      %v824 = vadd.f32 %v357, %v823
      %v825 = vpop.f32.mrf.mxu0
      %826 = vmatprep.mubr.bf16.mxu0 0
      %827 = vmatmul.mubr.bf16.gmra.mxu0 %v596
      %v828 = vpop.f32.mrf.mxu0
      %v829 = vadd.f32 %v357, %v828
      %v830 = vpop.f32.mrf.mxu0
      %v831 = vpop.f32.mrf.mxu0
      %v832 = vadd.f32 %v357, %v831
      %v833 = vpop.f32.mrf.mxu0
      %834 = vmatprep.mubr.bf16.mxu0 0
      %835 = vmatmul.mubr.bf16.gmra.mxu0 %v599
      %v836 = vpop.f32.mrf.mxu0
      %v837 = vadd.f32 %v357, %v836
      %v838 = vpop.f32.mrf.mxu0
      %v839 = vpop.f32.mrf.mxu0
      %v840 = vadd.f32 %v357, %v839
      %v841 = vpop.f32.mrf.mxu0
      %842 = vmatprep.mubr.bf16.mxu0 0
      %843 = vmatmul.mubr.bf16.gmra.mxu0 %v602
      %v844 = vpop.f32.mrf.mxu0
      %v845 = vadd.f32 %v357, %v844
      %v846 = vpop.f32.mrf.mxu0
      %v847 = vpop.f32.mrf.mxu0
      %v848 = vadd.f32 %v357, %v847
      %v849 = vpop.f32.mrf.mxu0
      %850 = vmatprep.mubr.bf16.mxu0 0
      %851 = vmatmul.mubr.bf16.gmra.mxu0 %v605
      %v852 = vpop.f32.mrf.mxu0
      %v853 = vadd.f32 %v357, %v852
      %v854 = vpop.f32.mrf.mxu0
      %v855 = vpop.f32.mrf.mxu0
      %v856 = vadd.f32 %v357, %v855
      %v857 = vpop.f32.mrf.mxu0
      %858 = vmatprep.mubr.bf16.mxu0 0
      %859 = vmatmul.mubr.bf16.gmra.mxu0 %v608
      %v860 = vpop.f32.mrf.mxu0
      %v861 = vadd.f32 %v357, %v860
      %v862 = vpop.f32.mrf.mxu0
      %v863 = vpop.f32.mrf.mxu0
      %v864 = vadd.f32 %v357, %v863
      %v865 = vpop.f32.mrf.mxu0
      %866 = vmatprep.mubr.bf16.mxu0 0
      %867 = vmatmul.mubr.bf16.gmra.mxu0 %v611
      %v868 = vpop.f32.mrf.mxu0
      %v869 = vadd.f32 %v357, %v868
      %v870 = vpop.f32.mrf.mxu0
      %v871 = vpop.f32.mrf.mxu0
      %v872 = vadd.f32 %v357, %v871
      %v873 = vpop.f32.mrf.mxu0
      %874 = vmatprep.mubr.bf16.mxu0 0
      %875 = vmatmul.mubr.bf16.gmra.mxu0 %v614
      %v876 = vpop.f32.mrf.mxu0
      %v877 = vadd.f32 %v357, %v876
      %v878 = vpop.f32.mrf.mxu0
      %v879 = vpop.f32.mrf.mxu0
      %v880 = vadd.f32 %v357, %v879
      %v881 = vpop.f32.mrf.mxu0
      %882 = vmatprep.mubr.bf16.mxu0 0
      %883 = vmatmul.mubr.bf16.gmra.mxu0 %v617
      %v884 = vpop.f32.mrf.mxu0
      %v885 = vadd.f32 %v357, %v884
      %v886 = vpop.f32.mrf.mxu0
      %v887 = vpop.f32.mrf.mxu0
      %v888 = vadd.f32 %v357, %v887
      %v889 = vpop.f32.mrf.mxu0
      %890 = vmatprep.mubr.bf16.mxu0 0
      %891 = vmatmul.mubr.bf16.gmra.mxu0 %v620
      %v892 = vpop.f32.mrf.mxu0
      %v893 = vadd.f32 %v357, %v892
      %v894 = vpop.f32.mrf.mxu0
      %v895 = vpop.f32.mrf.mxu0
      %v896 = vadd.f32 %v357, %v895
      %v897 = vpop.f32.mrf.mxu0
      %898 = vmatprep.mubr.bf16.mxu0 0
      %899 = vmatmul.mubr.bf16.gmra.mxu0 %v623
      %v900 = vpop.f32.mrf.mxu0
      %v901 = vadd.f32 %v357, %v900
      %v902 = vpop.f32.mrf.mxu0
      %v903 = vpop.f32.mrf.mxu0
      %v904 = vadd.f32 %v357, %v903
      %v905 = vpop.f32.mrf.mxu0
      %906 = vmatprep.mubr.bf16.mxu0 0
      %907 = vmatmul.mubr.bf16.gmra.mxu0 %v626
      %v908 = vpop.f32.mrf.mxu0
      %v909 = vadd.f32 %v357, %v908
      %v910 = vpop.f32.mrf.mxu0
      %v911 = vpop.f32.mrf.mxu0
      %v912 = vadd.f32 %v357, %v911
      %v913 = vpop.f32.mrf.mxu0
      %914 = vmatprep.mubr.bf16.mxu0 0
      %915 = vmatmul.mubr.bf16.gmra.mxu0 %v629
      %v916 = vpop.f32.mrf.mxu0
      %v917 = vadd.f32 %v357, %v916
      %v918 = vpop.f32.mrf.mxu0
      %v919 = vpop.f32.mrf.mxu0
      %v920 = vadd.f32 %v357, %v919
      %v921 = vpop.f32.mrf.mxu0
      %922 = vmatprep.mubr.bf16.mxu0 0
      %923 = vmatmul.mubr.bf16.gmra.mxu0 %v632
      %v924 = vpop.f32.mrf.mxu0
      %v925 = vadd.f32 %v357, %v924
      %v926 = vpop.f32.mrf.mxu0
      %v927 = vpop.f32.mrf.mxu0
      %v928 = vadd.f32 %v357, %v927
      %v929 = vpop.f32.mrf.mxu0
      %930 = vmatprep.mubr.bf16.mxu0 0
      %931 = vmatmul.mubr.bf16.gmra.mxu0 %v635
      %v932 = vpop.f32.mrf.mxu0
      %v933 = vadd.f32 %v357, %v932
      %v934 = vpop.f32.mrf.mxu0
      %v935 = vpop.f32.mrf.mxu0
      %v936 = vadd.f32 %v357, %v935
      %v937 = vpop.f32.mrf.mxu0
      %938 = vmatprep.mubr.bf16.mxu0 0
      %939 = vmatmul.mubr.bf16.gmra.mxu0 %v638
      %v940 = vpop.f32.mrf.mxu0
      %v941 = vadd.f32 %v357, %v940
      %v942 = vpop.f32.mrf.mxu0
      %v943 = vpop.f32.mrf.mxu0
      %v944 = vadd.f32 %v357, %v943
      %v945 = vpop.f32.mrf.mxu0
      %946 = vmatprep.mubr.bf16.mxu0 0
      %947 = vmatmul.mubr.bf16.gmra.mxu0 %v641
      %v948 = vpop.f32.mrf.mxu0
      %v949 = vadd.f32 %v357, %v948
      %v950 = vpop.f32.mrf.mxu0
      %v951 = vpop.f32.mrf.mxu0
      %v952 = vadd.f32 %v357, %v951
      %v953 = vpop.f32.mrf.mxu0
      %954 = vdwg.mxu0
      %v955 = vmax.f32 %v685, 0.0
      %v956 = vmax.f32 %v688, 0.0
      %v957 = vmax.f32 %v693, 0.0
      %v958 = vmax.f32 %v696, 0.0
      %v959 = vmax.f32 %v701, 0.0
      %v960 = vmax.f32 %v704, 0.0
      %v961 = vmax.f32 %v709, 0.0
      %v962 = vmax.f32 %v712, 0.0
      %v963 = vmax.f32 %v717, 0.0
      %v964 = vmax.f32 %v720, 0.0
      %v965 = vmax.f32 %v725, 0.0
      %v966 = vmax.f32 %v728, 0.0
      %v967 = vmax.f32 %v733, 0.0
      %v968 = vmax.f32 %v736, 0.0
      %v969 = vmax.f32 %v741, 0.0
      %v970 = vmax.f32 %v744, 0.0
      %v971 = vmax.f32 %v749, 0.0
      %v972 = vmax.f32 %v752, 0.0
      %v973 = vmax.f32 %v757, 0.0
      %v974 = vmax.f32 %v760, 0.0
      %v975 = vmax.f32 %v765, 0.0
      %v976 = vmax.f32 %v768, 0.0
      %v977 = vmax.f32 %v773, 0.0
      %v978 = vmax.f32 %v776, 0.0
      %v979 = vmax.f32 %v781, 0.0
      %v980 = vmax.f32 %v784, 0.0
      %v981 = vmax.f32 %v789, 0.0
      %v982 = vmax.f32 %v792, 0.0
      %v983 = vmax.f32 %v797, 0.0
      %v984 = vmax.f32 %v800, 0.0
      %v985 = vmax.f32 %v805, 0.0
      %v986 = vmax.f32 %v808, 0.0
      %v987 = vmax.f32 %v813, 0.0
      %v988 = vmax.f32 %v816, 0.0
      %v989 = vmax.f32 %v821, 0.0
      %v990 = vmax.f32 %v824, 0.0
      %v991 = vmax.f32 %v829, 0.0
      %v992 = vmax.f32 %v832, 0.0
      %v993 = vmax.f32 %v837, 0.0
      %v994 = vmax.f32 %v840, 0.0
      %v995 = vmax.f32 %v845, 0.0
      %v996 = vmax.f32 %v848, 0.0
      %v997 = vmax.f32 %v853, 0.0
      %v998 = vmax.f32 %v856, 0.0
      %v999 = vmax.f32 %v861, 0.0
      %v1000 = vmax.f32 %v864, 0.0
      %v1001 = vmax.f32 %v869, 0.0
      %v1002 = vmax.f32 %v872, 0.0
      %v1003 = vmax.f32 %v877, 0.0
      %v1004 = vmax.f32 %v880, 0.0
      %v1005 = vmax.f32 %v885, 0.0
      %v1006 = vmax.f32 %v888, 0.0
      %v1007 = vmax.f32 %v893, 0.0
      %v1008 = vmax.f32 %v896, 0.0
      %v1009 = vmax.f32 %v901, 0.0
      %v1010 = vmax.f32 %v904, 0.0
      %v1011 = vmax.f32 %v909, 0.0
      %v1012 = vmax.f32 %v912, 0.0
      %v1013 = vmax.f32 %v917, 0.0
      %v1014 = vmax.f32 %v920, 0.0
      %v1015 = vmax.f32 %v925, 0.0
      %v1016 = vmax.f32 %v928, 0.0
      %v1017 = vmax.f32 %v933, 0.0
      %v1018 = vmax.f32 %v936, 0.0
      %v1019 = vmax.f32 %v941, 0.0
      %v1020 = vmax.f32 %v944, 0.0
      %v1021 = vmax.f32 %v949, 0.0
      %v1022 = vmax.f32 %v952, 0.0
      %vm1023 = vcmask 261120
      %1024 = vst.msk [vmem:[#allocation2] sm:$0xff] %vm1023, %v955
      %1025 = vst.msk [vmem:[#allocation2 + $0x8] sm:$0xff] %vm1023, %v956
      %1026 = vst.msk [vmem:[#allocation2 + $0x10] sm:$0xff] %vm1023, %v957
      %1027 = vst.msk [vmem:[#allocation2 + $0x18] sm:$0xff] %vm1023, %v958
      %1028 = vst.msk [vmem:[#allocation2 + $0x20] sm:$0xff] %vm1023, %v959
      %1029 = vst.msk [vmem:[#allocation2 + $0x28] sm:$0xff] %vm1023, %v960
      %1030 = vst.msk [vmem:[#allocation2 + $0x30] sm:$0xff] %vm1023, %v961
      %1031 = vst.msk [vmem:[#allocation2 + $0x38] sm:$0xff] %vm1023, %v962
      %1032 = vst.msk [vmem:[#allocation2 + $0x40] sm:$0xff] %vm1023, %v963
      %1033 = vst.msk [vmem:[#allocation2 + $0x48] sm:$0xff] %vm1023, %v964
      %1034 = vst.msk [vmem:[#allocation2 + $0x50] sm:$0xff] %vm1023, %v965
      %1035 = vst.msk [vmem:[#allocation2 + $0x58] sm:$0xff] %vm1023, %v966
      %1036 = vst.msk [vmem:[#allocation2 + $0x60] sm:$0xff] %vm1023, %v967
      %1037 = vst.msk [vmem:[#allocation2 + $0x68] sm:$0xff] %vm1023, %v968
      %1038 = vst.msk [vmem:[#allocation2 + $0x70] sm:$0xff] %vm1023, %v969
      %1039 = vst.msk [vmem:[#allocation2 + $0x78] sm:$0xff] %vm1023, %v970
      %1040 = vst.msk [vmem:[#allocation2 + $0x80] sm:$0xff] %vm1023, %v971
      %1041 = vst.msk [vmem:[#allocation2 + $0x88] sm:$0xff] %vm1023, %v972
      %1042 = vst.msk [vmem:[#allocation2 + $0x90] sm:$0xff] %vm1023, %v973
      %1043 = vst.msk [vmem:[#allocation2 + $0x98] sm:$0xff] %vm1023, %v974
      %1044 = vst.msk [vmem:[#allocation2 + $0xa0] sm:$0xff] %vm1023, %v975
      %1045 = vst.msk [vmem:[#allocation2 + $0xa8] sm:$0xff] %vm1023, %v976
      %1046 = vst.msk [vmem:[#allocation2 + $0xb0] sm:$0xff] %vm1023, %v977
      %1047 = vst.msk [vmem:[#allocation2 + $0xb8] sm:$0xff] %vm1023, %v978
      %1048 = vst.msk [vmem:[#allocation2 + $0xc0] sm:$0xff] %vm1023, %v979
      %1049 = vst.msk [vmem:[#allocation2 + $0xc8] sm:$0xff] %vm1023, %v980
      %1050 = vst.msk [vmem:[#allocation2 + $0xd0] sm:$0xff] %vm1023, %v981
      %1051 = vst.msk [vmem:[#allocation2 + $0xd8] sm:$0xff] %vm1023, %v982
      %1052 = vst.msk [vmem:[#allocation2 + $0xe0] sm:$0xff] %vm1023, %v983
      %1053 = vst.msk [vmem:[#allocation2 + $0xe8] sm:$0xff] %vm1023, %v984
      %1054 = vst.msk [vmem:[#allocation2 + $0xf0] sm:$0xff] %vm1023, %v985
      %1055 = vst.msk [vmem:[#allocation2 + $0xf8] sm:$0xff] %vm1023, %v986
      %1056 = vst.msk [vmem:[#allocation2 + $0x100] sm:$0xff] %vm1023, %v987
      %1057 = vst.msk [vmem:[#allocation2 + $0x108] sm:$0xff] %vm1023, %v988
      %1058 = vst.msk [vmem:[#allocation2 + $0x110] sm:$0xff] %vm1023, %v989
      %1059 = vst.msk [vmem:[#allocation2 + $0x118] sm:$0xff] %vm1023, %v990
      %1060 = vst.msk [vmem:[#allocation2 + $0x120] sm:$0xff] %vm1023, %v991
      %1061 = vst.msk [vmem:[#allocation2 + $0x128] sm:$0xff] %vm1023, %v992
      %1062 = vst.msk [vmem:[#allocation2 + $0x130] sm:$0xff] %vm1023, %v993
      %1063 = vst.msk [vmem:[#allocation2 + $0x138] sm:$0xff] %vm1023, %v994
      %1064 = vst.msk [vmem:[#allocation2 + $0x140] sm:$0xff] %vm1023, %v995
      %1065 = vst.msk [vmem:[#allocation2 + $0x148] sm:$0xff] %vm1023, %v996
      %1066 = vst.msk [vmem:[#allocation2 + $0x150] sm:$0xff] %vm1023, %v997
      %1067 = vst.msk [vmem:[#allocation2 + $0x158] sm:$0xff] %vm1023, %v998
      %1068 = vst.msk [vmem:[#allocation2 + $0x160] sm:$0xff] %vm1023, %v999
      %1069 = vst.msk [vmem:[#allocation2 + $0x168] sm:$0xff] %vm1023, %v1000
      %1070 = vst.msk [vmem:[#allocation2 + $0x170] sm:$0xff] %vm1023, %v1001
      %1071 = vst.msk [vmem:[#allocation2 + $0x178] sm:$0xff] %vm1023, %v1002
      %1072 = vst.msk [vmem:[#allocation2 + $0x180] sm:$0xff] %vm1023, %v1003
      %1073 = vst.msk [vmem:[#allocation2 + $0x188] sm:$0xff] %vm1023, %v1004
      %1074 = vst.msk [vmem:[#allocation2 + $0x190] sm:$0xff] %vm1023, %v1005
      %1075 = vst.msk [vmem:[#allocation2 + $0x198] sm:$0xff] %vm1023, %v1006
      %1076 = vst.msk [vmem:[#allocation2 + $0x1a0] sm:$0xff] %vm1023, %v1007
      %1077 = vst.msk [vmem:[#allocation2 + $0x1a8] sm:$0xff] %vm1023, %v1008
      %1078 = vst.msk [vmem:[#allocation2 + $0x1b0] sm:$0xff] %vm1023, %v1009
      %1079 = vst.msk [vmem:[#allocation2 + $0x1b8] sm:$0xff] %vm1023, %v1010
      %1080 = vst.msk [vmem:[#allocation2 + $0x1c0] sm:$0xff] %vm1023, %v1011
      %1081 = vst.msk [vmem:[#allocation2 + $0x1c8] sm:$0xff] %vm1023, %v1012
      %1082 = vst.msk [vmem:[#allocation2 + $0x1d0] sm:$0xff] %vm1023, %v1013
      %1083 = vst.msk [vmem:[#allocation2 + $0x1d8] sm:$0xff] %vm1023, %v1014
      %1084 = vst.msk [vmem:[#allocation2 + $0x1e0] sm:$0xff] %vm1023, %v1015
      %1085 = vst.msk [vmem:[#allocation2 + $0x1e8] sm:$0xff] %vm1023, %v1016
      %1086 = vst.msk [vmem:[#allocation2 + $0x1f0] sm:$0xff] %vm1023, %v1017
      %1087 = vst.msk [vmem:[#allocation2 + $0x1f8] sm:$0xff] %vm1023, %v1018
      %1088 = vst.msk [vmem:[#allocation2 + $0x200] sm:$0xff] %vm1023, %v1019
      %1089 = vst.msk [vmem:[#allocation2 + $0x208] sm:$0xff] %vm1023, %v1020
      %1090 = vst.msk [vmem:[#allocation2 + $0x210] sm:$0xff] %vm1023, %v1021
      %1091 = vst.msk [vmem:[#allocation2 + $0x218] sm:$0xff] %vm1023, %v1022
      %vm1092 = vcmask 779520
      %1093 = vst.msk [vmem:[#allocation2 + $0x21e] sm:$0x3] %vm1092, 0.0
      %v1094 = vld [vmem:[#allocation2 + $0x1] sm:$0xff]
      %v1095 = vld [vmem:[#allocation2 + $0x9] sm:$0xff]
      %v1096 = vld [vmem:[#allocation2 + $0x11] sm:$0xff]
      %v1097 = vld [vmem:[#allocation2 + $0x19] sm:$0xff]
      %v1098 = vld [vmem:[#allocation2 + $0x21] sm:$0xff]
      %v1099 = vld [vmem:[#allocation2 + $0x29] sm:$0xff]
      %v1100 = vld [vmem:[#allocation2 + $0x31] sm:$0xff]
      %v1101 = vld [vmem:[#allocation2 + $0x39] sm:$0xff]
      %v1102 = vld [vmem:[#allocation2 + $0x41] sm:$0xff]
      %v1103 = vld [vmem:[#allocation2 + $0x49] sm:$0xff]
      %v1104 = vld [vmem:[#allocation2 + $0x51] sm:$0xff]
      %v1105 = vld [vmem:[#allocation2 + $0x59] sm:$0xff]
      %v1106 = vld [vmem:[#allocation2 + $0x61] sm:$0xff]
      %v1107 = vld [vmem:[#allocation2 + $0x69] sm:$0xff]
      %v1108 = vld [vmem:[#allocation2 + $0x71] sm:$0xff]
      %v1109 = vld [vmem:[#allocation2 + $0x79] sm:$0xff]
      %v1110 = vld [vmem:[#allocation2 + $0x81] sm:$0xff]
      %v1111 = vld [vmem:[#allocation2 + $0x89] sm:$0xff]
      %v1112 = vld [vmem:[#allocation2 + $0x91] sm:$0xff]
      %v1113 = vld [vmem:[#allocation2 + $0x99] sm:$0xff]
      %v1114 = vld [vmem:[#allocation2 + $0xa1] sm:$0xff]
      %v1115 = vld [vmem:[#allocation2 + $0xa9] sm:$0xff]
      %v1116 = vld [vmem:[#allocation2 + $0xb1] sm:$0xff]
      %v1117 = vld [vmem:[#allocation2 + $0xb9] sm:$0xff]
      %v1118 = vld [vmem:[#allocation2 + $0xc1] sm:$0xff]
      %v1119 = vld [vmem:[#allocation2 + $0xc9] sm:$0xff]
      %v1120 = vld [vmem:[#allocation2 + $0xd1] sm:$0xff]
      %v1121 = vld [vmem:[#allocation2 + $0xd9] sm:$0xff]
      %v1122 = vld [vmem:[#allocation2 + $0xe1] sm:$0xff]
      %v1123 = vld [vmem:[#allocation2 + $0xe9] sm:$0xff]
      %v1124 = vld [vmem:[#allocation2 + $0xf1] sm:$0xff]
      %v1125 = vld [vmem:[#allocation2 + $0xf9] sm:$0xff]
      %v1126 = vld [vmem:[#allocation2 + $0x101] sm:$0xff]
      %v1127 = vld [vmem:[#allocation2 + $0x109] sm:$0xff]
      %v1128 = vld [vmem:[#allocation2 + $0x111] sm:$0xff]
      %v1129 = vld [vmem:[#allocation2 + $0x119] sm:$0xff]
      %v1130 = vld [vmem:[#allocation2 + $0x121] sm:$0xff]
      %v1131 = vld [vmem:[#allocation2 + $0x129] sm:$0xff]
      %v1132 = vld [vmem:[#allocation2 + $0x131] sm:$0xff]
      %v1133 = vld [vmem:[#allocation2 + $0x139] sm:$0xff]
      %v1134 = vld [vmem:[#allocation2 + $0x141] sm:$0xff]
      %v1135 = vld [vmem:[#allocation2 + $0x149] sm:$0xff]
      %v1136 = vld [vmem:[#allocation2 + $0x151] sm:$0xff]
      %v1137 = vld [vmem:[#allocation2 + $0x159] sm:$0xff]
      %v1138 = vld [vmem:[#allocation2 + $0x161] sm:$0xff]
      %v1139 = vld [vmem:[#allocation2 + $0x169] sm:$0xff]
      %v1140 = vld [vmem:[#allocation2 + $0x171] sm:$0xff]
      %v1141 = vld [vmem:[#allocation2 + $0x179] sm:$0xff]
      %v1142 = vld [vmem:[#allocation2 + $0x181] sm:$0xff]
      %v1143 = vld [vmem:[#allocation2 + $0x189] sm:$0xff]
      %v1144 = vld [vmem:[#allocation2 + $0x191] sm:$0xff]
      %v1145 = vld [vmem:[#allocation2 + $0x199] sm:$0xff]
      %v1146 = vld [vmem:[#allocation2 + $0x1a1] sm:$0xff]
      %v1147 = vld [vmem:[#allocation2 + $0x1a9] sm:$0xff]
      %v1148 = vld [vmem:[#allocation2 + $0x1b1] sm:$0xff]
      %v1149 = vld [vmem:[#allocation2 + $0x1b9] sm:$0xff]
      %v1150 = vld [vmem:[#allocation2 + $0x1c1] sm:$0xff]
      %v1151 = vld [vmem:[#allocation2 + $0x1c9] sm:$0xff]
      %v1152 = vld [vmem:[#allocation2 + $0x1d1] sm:$0xff]
      %v1153 = vld [vmem:[#allocation2 + $0x1d9] sm:$0xff]
      %v1154 = vld [vmem:[#allocation2 + $0x1e1] sm:$0xff]
      %v1155 = vld [vmem:[#allocation2 + $0x1e9] sm:$0xff]
      %v1156 = vld [vmem:[#allocation2 + $0x1f1] sm:$0xff]
      %v1157 = vld [vmem:[#allocation2 + $0x1f9] sm:$0xff]
      %v1158 = vld [vmem:[#allocation2 + $0x201] sm:$0xff]
      %v1159 = vld [vmem:[#allocation2 + $0x209] sm:$0xff]
      %v1160 = vld [vmem:[#allocation2 + $0x211] sm:$0xff]
      %v1161 = vld [vmem:[#allocation2 + $0x219] sm:$0x7f]
      %1230 = vrot.lane.b32.xlu0 %v1094, 32
      %v1231 = vpop.permute.xlu0 %1230
      %1232 = vrot.lane.b32.xlu0 %v1095, 32
      %v1233 = vpop.permute.xlu0 %1232
      %1234 = vrot.lane.b32.xlu0 %v1096, 32
      %v1235 = vpop.permute.xlu0 %1234
      %1236 = vrot.lane.b32.xlu0 %v1097, 32
      %v1237 = vpop.permute.xlu0 %1236
      %1238 = vrot.lane.b32.xlu0 %v1098, 32
      %v1239 = vpop.permute.xlu0 %1238
      %1240 = vrot.lane.b32.xlu0 %v1099, 32
      %v1241 = vpop.permute.xlu0 %1240
      %1242 = vrot.lane.b32.xlu0 %v1100, 32
      %v1243 = vpop.permute.xlu0 %1242
      %1244 = vrot.lane.b32.xlu0 %v1101, 32
      %v1245 = vpop.permute.xlu0 %1244
      %1246 = vrot.lane.b32.xlu0 %v1102, 32
      %v1247 = vpop.permute.xlu0 %1246
      %1248 = vrot.lane.b32.xlu0 %v1103, 32
      %v1249 = vpop.permute.xlu0 %1248
      %1250 = vrot.lane.b32.xlu0 %v1104, 32
      %v1251 = vpop.permute.xlu0 %1250
      %1252 = vrot.lane.b32.xlu0 %v1105, 32
      %v1253 = vpop.permute.xlu0 %1252
      %1254 = vrot.lane.b32.xlu0 %v1106, 32
      %v1255 = vpop.permute.xlu0 %1254
      %1256 = vrot.lane.b32.xlu0 %v1107, 32
      %v1257 = vpop.permute.xlu0 %1256
      %1258 = vrot.lane.b32.xlu0 %v1108, 32
      %v1259 = vpop.permute.xlu0 %1258
      %1260 = vrot.lane.b32.xlu0 %v1109, 32
      %v1261 = vpop.permute.xlu0 %1260
      %1262 = vrot.lane.b32.xlu0 %v1110, 32
      %v1263 = vpop.permute.xlu0 %1262
      %1264 = vrot.lane.b32.xlu0 %v1111, 32
      %v1265 = vpop.permute.xlu0 %1264
      %1266 = vrot.lane.b32.xlu0 %v1112, 32
      %v1267 = vpop.permute.xlu0 %1266
      %1268 = vrot.lane.b32.xlu0 %v1113, 32
      %v1269 = vpop.permute.xlu0 %1268
      %1270 = vrot.lane.b32.xlu0 %v1114, 32
      %v1271 = vpop.permute.xlu0 %1270
      %1272 = vrot.lane.b32.xlu0 %v1115, 32
      %v1273 = vpop.permute.xlu0 %1272
      %1274 = vrot.lane.b32.xlu0 %v1116, 32
      %v1275 = vpop.permute.xlu0 %1274
      %1276 = vrot.lane.b32.xlu0 %v1117, 32
      %v1277 = vpop.permute.xlu0 %1276
      %1278 = vrot.lane.b32.xlu0 %v1118, 32
      %v1279 = vpop.permute.xlu0 %1278
      %1280 = vrot.lane.b32.xlu0 %v1119, 32
      %v1281 = vpop.permute.xlu0 %1280
      %1282 = vrot.lane.b32.xlu0 %v1120, 32
      %v1283 = vpop.permute.xlu0 %1282
      %1284 = vrot.lane.b32.xlu0 %v1121, 32
      %v1285 = vpop.permute.xlu0 %1284
      %1286 = vrot.lane.b32.xlu0 %v1122, 32
      %v1287 = vpop.permute.xlu0 %1286
      %1288 = vrot.lane.b32.xlu0 %v1123, 32
      %v1289 = vpop.permute.xlu0 %1288
      %1290 = vrot.lane.b32.xlu0 %v1124, 32
      %v1291 = vpop.permute.xlu0 %1290
      %1292 = vrot.lane.b32.xlu0 %v1125, 32
      %v1293 = vpop.permute.xlu0 %1292
      %1294 = vrot.lane.b32.xlu0 %v1126, 32
      %v1295 = vpop.permute.xlu0 %1294
      %1296 = vrot.lane.b32.xlu0 %v1127, 32
      %v1297 = vpop.permute.xlu0 %1296
      %1298 = vrot.lane.b32.xlu0 %v1128, 32
      %v1299 = vpop.permute.xlu0 %1298
      %1300 = vrot.lane.b32.xlu0 %v1129, 32
      %v1301 = vpop.permute.xlu0 %1300
      %1302 = vrot.lane.b32.xlu0 %v1130, 32
      %v1303 = vpop.permute.xlu0 %1302
      %1304 = vrot.lane.b32.xlu0 %v1131, 32
      %v1305 = vpop.permute.xlu0 %1304
      %1306 = vrot.lane.b32.xlu0 %v1132, 32
      %v1307 = vpop.permute.xlu0 %1306
      %1308 = vrot.lane.b32.xlu0 %v1133, 32
      %v1309 = vpop.permute.xlu0 %1308
      %1310 = vrot.lane.b32.xlu0 %v1134, 32
      %v1311 = vpop.permute.xlu0 %1310
      %1312 = vrot.lane.b32.xlu0 %v1135, 32
      %v1313 = vpop.permute.xlu0 %1312
      %1314 = vrot.lane.b32.xlu0 %v1136, 32
      %v1315 = vpop.permute.xlu0 %1314
      %1316 = vrot.lane.b32.xlu0 %v1137, 32
      %v1317 = vpop.permute.xlu0 %1316
      %1318 = vrot.lane.b32.xlu0 %v1138, 32
      %v1319 = vpop.permute.xlu0 %1318
      %1320 = vrot.lane.b32.xlu0 %v1139, 32
      %v1321 = vpop.permute.xlu0 %1320
      %1322 = vrot.lane.b32.xlu0 %v1140, 32
      %v1323 = vpop.permute.xlu0 %1322
      %1324 = vrot.lane.b32.xlu0 %v1141, 32
      %v1325 = vpop.permute.xlu0 %1324
      %1326 = vrot.lane.b32.xlu0 %v1142, 32
      %v1327 = vpop.permute.xlu0 %1326
      %1328 = vrot.lane.b32.xlu0 %v1143, 32
      %v1329 = vpop.permute.xlu0 %1328
      %1330 = vrot.lane.b32.xlu0 %v1144, 32
      %v1331 = vpop.permute.xlu0 %1330
      %1332 = vrot.lane.b32.xlu0 %v1145, 32
      %v1333 = vpop.permute.xlu0 %1332
      %1334 = vrot.lane.b32.xlu0 %v1146, 32
      %v1335 = vpop.permute.xlu0 %1334
      %1336 = vrot.lane.b32.xlu0 %v1147, 32
      %v1337 = vpop.permute.xlu0 %1336
      %1338 = vrot.lane.b32.xlu0 %v1148, 32
      %v1339 = vpop.permute.xlu0 %1338
      %1340 = vrot.lane.b32.xlu0 %v1149, 32
      %v1341 = vpop.permute.xlu0 %1340
      %1342 = vrot.lane.b32.xlu0 %v1150, 32
      %v1343 = vpop.permute.xlu0 %1342
      %1344 = vrot.lane.b32.xlu0 %v1151, 32
      %v1345 = vpop.permute.xlu0 %1344
      %1346 = vrot.lane.b32.xlu0 %v1152, 32
      %v1347 = vpop.permute.xlu0 %1346
      %1348 = vrot.lane.b32.xlu0 %v1153, 32
      %v1349 = vpop.permute.xlu0 %1348
      %1350 = vrot.lane.b32.xlu0 %v1154, 32
      %v1351 = vpop.permute.xlu0 %1350
      %1352 = vrot.lane.b32.xlu0 %v1155, 32
      %v1353 = vpop.permute.xlu0 %1352
      %1354 = vrot.lane.b32.xlu0 %v1156, 32
      %v1355 = vpop.permute.xlu0 %1354
      %1356 = vrot.lane.b32.xlu0 %v1157, 32
      %v1357 = vpop.permute.xlu0 %1356
      %1358 = vrot.lane.b32.xlu0 %v1158, 32
      %v1359 = vpop.permute.xlu0 %1358
      %1360 = vrot.lane.b32.xlu0 %v1159, 32
      %v1361 = vpop.permute.xlu0 %1360
      %1362 = vrot.lane.b32.xlu0 %v1160, 32
      %v1363 = vpop.permute.xlu0 %1362
      %1364 = vrot.lane.b32.xlu0 %v1161, 32
      %v1365 = vpop.permute.xlu0 %1364
      %vm1434 = vcmask 523520
      %1435 = vst.msk [vmem:[#allocation2] sm:$0xff] %vm1434, %v1231
      %1436 = vst.msk [vmem:[#allocation2 + $0x8] sm:$0xff] %vm1434, %v1233
      %1437 = vst.msk [vmem:[#allocation2 + $0x10] sm:$0xff] %vm1434, %v1235
      %1438 = vst.msk [vmem:[#allocation2 + $0x18] sm:$0xff] %vm1434, %v1237
      %1439 = vst.msk [vmem:[#allocation2 + $0x20] sm:$0xff] %vm1434, %v1239
      %1440 = vst.msk [vmem:[#allocation2 + $0x28] sm:$0xff] %vm1434, %v1241
      %1441 = vst.msk [vmem:[#allocation2 + $0x30] sm:$0xff] %vm1434, %v1243
      %1442 = vst.msk [vmem:[#allocation2 + $0x38] sm:$0xff] %vm1434, %v1245
      %1443 = vst.msk [vmem:[#allocation2 + $0x40] sm:$0xff] %vm1434, %v1247
      %1444 = vst.msk [vmem:[#allocation2 + $0x48] sm:$0xff] %vm1434, %v1249
      %1445 = vst.msk [vmem:[#allocation2 + $0x50] sm:$0xff] %vm1434, %v1251
      %1446 = vst.msk [vmem:[#allocation2 + $0x58] sm:$0xff] %vm1434, %v1253
      %1447 = vst.msk [vmem:[#allocation2 + $0x60] sm:$0xff] %vm1434, %v1255
      %1448 = vst.msk [vmem:[#allocation2 + $0x68] sm:$0xff] %vm1434, %v1257
      %1449 = vst.msk [vmem:[#allocation2 + $0x70] sm:$0xff] %vm1434, %v1259
      %1450 = vst.msk [vmem:[#allocation2 + $0x78] sm:$0xff] %vm1434, %v1261
      %1451 = vst.msk [vmem:[#allocation2 + $0x80] sm:$0xff] %vm1434, %v1263
      %1452 = vst.msk [vmem:[#allocation2 + $0x88] sm:$0xff] %vm1434, %v1265
      %1453 = vst.msk [vmem:[#allocation2 + $0x90] sm:$0xff] %vm1434, %v1267
      %1454 = vst.msk [vmem:[#allocation2 + $0x98] sm:$0xff] %vm1434, %v1269
      %1455 = vst.msk [vmem:[#allocation2 + $0xa0] sm:$0xff] %vm1434, %v1271
      %1456 = vst.msk [vmem:[#allocation2 + $0xa8] sm:$0xff] %vm1434, %v1273
      %1457 = vst.msk [vmem:[#allocation2 + $0xb0] sm:$0xff] %vm1434, %v1275
      %1458 = vst.msk [vmem:[#allocation2 + $0xb8] sm:$0xff] %vm1434, %v1277
      %1459 = vst.msk [vmem:[#allocation2 + $0xc0] sm:$0xff] %vm1434, %v1279
      %1460 = vst.msk [vmem:[#allocation2 + $0xc8] sm:$0xff] %vm1434, %v1281
      %1461 = vst.msk [vmem:[#allocation2 + $0xd0] sm:$0xff] %vm1434, %v1283
      %1462 = vst.msk [vmem:[#allocation2 + $0xd8] sm:$0xff] %vm1434, %v1285
      %1463 = vst.msk [vmem:[#allocation2 + $0xe0] sm:$0xff] %vm1434, %v1287
      %1464 = vst.msk [vmem:[#allocation2 + $0xe8] sm:$0xff] %vm1434, %v1289
      %1465 = vst.msk [vmem:[#allocation2 + $0xf0] sm:$0xff] %vm1434, %v1291
      %1466 = vst.msk [vmem:[#allocation2 + $0xf8] sm:$0xff] %vm1434, %v1293
      %1467 = vst.msk [vmem:[#allocation2 + $0x100] sm:$0xff] %vm1434, %v1295
      %1468 = vst.msk [vmem:[#allocation2 + $0x108] sm:$0xff] %vm1434, %v1297
      %1469 = vst.msk [vmem:[#allocation2 + $0x110] sm:$0xff] %vm1434, %v1299
      %1470 = vst.msk [vmem:[#allocation2 + $0x118] sm:$0xff] %vm1434, %v1301
      %1471 = vst.msk [vmem:[#allocation2 + $0x120] sm:$0xff] %vm1434, %v1303
      %1472 = vst.msk [vmem:[#allocation2 + $0x128] sm:$0xff] %vm1434, %v1305
      %1473 = vst.msk [vmem:[#allocation2 + $0x130] sm:$0xff] %vm1434, %v1307
      %1474 = vst.msk [vmem:[#allocation2 + $0x138] sm:$0xff] %vm1434, %v1309
      %1475 = vst.msk [vmem:[#allocation2 + $0x140] sm:$0xff] %vm1434, %v1311
      %1476 = vst.msk [vmem:[#allocation2 + $0x148] sm:$0xff] %vm1434, %v1313
      %1477 = vst.msk [vmem:[#allocation2 + $0x150] sm:$0xff] %vm1434, %v1315
      %1478 = vst.msk [vmem:[#allocation2 + $0x158] sm:$0xff] %vm1434, %v1317
      %1479 = vst.msk [vmem:[#allocation2 + $0x160] sm:$0xff] %vm1434, %v1319
      %1480 = vst.msk [vmem:[#allocation2 + $0x168] sm:$0xff] %vm1434, %v1321
      %1481 = vst.msk [vmem:[#allocation2 + $0x170] sm:$0xff] %vm1434, %v1323
      %1482 = vst.msk [vmem:[#allocation2 + $0x178] sm:$0xff] %vm1434, %v1325
      %1483 = vst.msk [vmem:[#allocation2 + $0x180] sm:$0xff] %vm1434, %v1327
      %1484 = vst.msk [vmem:[#allocation2 + $0x188] sm:$0xff] %vm1434, %v1329
      %1485 = vst.msk [vmem:[#allocation2 + $0x190] sm:$0xff] %vm1434, %v1331
      %1486 = vst.msk [vmem:[#allocation2 + $0x198] sm:$0xff] %vm1434, %v1333
      %1487 = vst.msk [vmem:[#allocation2 + $0x1a0] sm:$0xff] %vm1434, %v1335
      %1488 = vst.msk [vmem:[#allocation2 + $0x1a8] sm:$0xff] %vm1434, %v1337
      %1489 = vst.msk [vmem:[#allocation2 + $0x1b0] sm:$0xff] %vm1434, %v1339
      %1490 = vst.msk [vmem:[#allocation2 + $0x1b8] sm:$0xff] %vm1434, %v1341
      %1491 = vst.msk [vmem:[#allocation2 + $0x1c0] sm:$0xff] %vm1434, %v1343
      %1492 = vst.msk [vmem:[#allocation2 + $0x1c8] sm:$0xff] %vm1434, %v1345
      %1493 = vst.msk [vmem:[#allocation2 + $0x1d0] sm:$0xff] %vm1434, %v1347
      %1494 = vst.msk [vmem:[#allocation2 + $0x1d8] sm:$0xff] %vm1434, %v1349
      %1495 = vst.msk [vmem:[#allocation2 + $0x1e0] sm:$0xff] %vm1434, %v1351
      %1496 = vst.msk [vmem:[#allocation2 + $0x1e8] sm:$0xff] %vm1434, %v1353
      %1497 = vst.msk [vmem:[#allocation2 + $0x1f0] sm:$0xff] %vm1434, %v1355
      %1498 = vst.msk [vmem:[#allocation2 + $0x1f8] sm:$0xff] %vm1434, %v1357
      %1499 = vst.msk [vmem:[#allocation2 + $0x200] sm:$0xff] %vm1434, %v1359
      %1500 = vst.msk [vmem:[#allocation2 + $0x208] sm:$0xff] %vm1434, %v1361
      %1501 = vst.msk [vmem:[#allocation2 + $0x210] sm:$0xff] %vm1434, %v1363
      %vm1502 = vcmask 522496
      %1503 = vst.msk [vmem:[#allocation2 + $0x218] sm:$0x7f] %vm1502, %v1365
      %v1504 = vld [vmem:[#allocation2 + $0x2] sm:$0xff]
      %v1505 = vld [vmem:[#allocation2 + $0xa] sm:$0xff]
      %v1506 = vld [vmem:[#allocation2 + $0x12] sm:$0xff]
      %v1507 = vld [vmem:[#allocation2 + $0x1a] sm:$0xff]
      %v1508 = vld [vmem:[#allocation2 + $0x22] sm:$0xff]
      %v1509 = vld [vmem:[#allocation2 + $0x2a] sm:$0xff]
      %v1510 = vld [vmem:[#allocation2 + $0x32] sm:$0xff]
      %v1511 = vld [vmem:[#allocation2 + $0x3a] sm:$0xff]
      %v1512 = vld [vmem:[#allocation2 + $0x42] sm:$0xff]
      %v1513 = vld [vmem:[#allocation2 + $0x4a] sm:$0xff]
      %v1514 = vld [vmem:[#allocation2 + $0x52] sm:$0xff]
      %v1515 = vld [vmem:[#allocation2 + $0x5a] sm:$0xff]
      %v1516 = vld [vmem:[#allocation2 + $0x62] sm:$0xff]
      %v1517 = vld [vmem:[#allocation2 + $0x6a] sm:$0xff]
      %v1518 = vld [vmem:[#allocation2 + $0x72] sm:$0xff]
      %v1519 = vld [vmem:[#allocation2 + $0x7a] sm:$0xff]
      %v1520 = vld [vmem:[#allocation2 + $0x82] sm:$0xff]
      %v1521 = vld [vmem:[#allocation2 + $0x8a] sm:$0xff]
      %v1522 = vld [vmem:[#allocation2 + $0x92] sm:$0xff]
      %v1523 = vld [vmem:[#allocation2 + $0x9a] sm:$0xff]
      %v1524 = vld [vmem:[#allocation2 + $0xa2] sm:$0xff]
      %v1525 = vld [vmem:[#allocation2 + $0xaa] sm:$0xff]
      %v1526 = vld [vmem:[#allocation2 + $0xb2] sm:$0xff]
      %v1527 = vld [vmem:[#allocation2 + $0xba] sm:$0xff]
      %v1528 = vld [vmem:[#allocation2 + $0xc2] sm:$0xff]
      %v1529 = vld [vmem:[#allocation2 + $0xca] sm:$0xff]
      %v1530 = vld [vmem:[#allocation2 + $0xd2] sm:$0xff]
      %v1531 = vld [vmem:[#allocation2 + $0xda] sm:$0xff]
      %v1532 = vld [vmem:[#allocation2 + $0xe2] sm:$0xff]
      %v1533 = vld [vmem:[#allocation2 + $0xea] sm:$0xff]
      %v1534 = vld [vmem:[#allocation2 + $0xf2] sm:$0xff]
      %v1535 = vld [vmem:[#allocation2 + $0xfa] sm:$0xff]
      %v1536 = vld [vmem:[#allocation2 + $0x102] sm:$0xff]
      %v1537 = vld [vmem:[#allocation2 + $0x10a] sm:$0xff]
      %v1538 = vld [vmem:[#allocation2 + $0x112] sm:$0xff]
      %v1539 = vld [vmem:[#allocation2 + $0x11a] sm:$0xff]
      %v1540 = vld [vmem:[#allocation2 + $0x122] sm:$0xff]
      %v1541 = vld [vmem:[#allocation2 + $0x12a] sm:$0xff]
      %v1542 = vld [vmem:[#allocation2 + $0x132] sm:$0xff]
      %v1543 = vld [vmem:[#allocation2 + $0x13a] sm:$0xff]
      %v1544 = vld [vmem:[#allocation2 + $0x142] sm:$0xff]
      %v1545 = vld [vmem:[#allocation2 + $0x14a] sm:$0xff]
      %v1546 = vld [vmem:[#allocation2 + $0x152] sm:$0xff]
      %v1547 = vld [vmem:[#allocation2 + $0x15a] sm:$0xff]
      %v1548 = vld [vmem:[#allocation2 + $0x162] sm:$0xff]
      %v1549 = vld [vmem:[#allocation2 + $0x16a] sm:$0xff]
      %v1550 = vld [vmem:[#allocation2 + $0x172] sm:$0xff]
      %v1551 = vld [vmem:[#allocation2 + $0x17a] sm:$0xff]
      %v1552 = vld [vmem:[#allocation2 + $0x182] sm:$0xff]
      %v1553 = vld [vmem:[#allocation2 + $0x18a] sm:$0xff]
      %v1554 = vld [vmem:[#allocation2 + $0x192] sm:$0xff]
      %v1555 = vld [vmem:[#allocation2 + $0x19a] sm:$0xff]
      %v1556 = vld [vmem:[#allocation2 + $0x1a2] sm:$0xff]
      %v1557 = vld [vmem:[#allocation2 + $0x1aa] sm:$0xff]
      %v1558 = vld [vmem:[#allocation2 + $0x1b2] sm:$0xff]
      %v1559 = vld [vmem:[#allocation2 + $0x1ba] sm:$0xff]
      %v1560 = vld [vmem:[#allocation2 + $0x1c2] sm:$0xff]
      %v1561 = vld [vmem:[#allocation2 + $0x1ca] sm:$0xff]
      %v1562 = vld [vmem:[#allocation2 + $0x1d2] sm:$0xff]
      %v1563 = vld [vmem:[#allocation2 + $0x1da] sm:$0xff]
      %v1564 = vld [vmem:[#allocation2 + $0x1e2] sm:$0xff]
      %v1565 = vld [vmem:[#allocation2 + $0x1ea] sm:$0xff]
      %v1566 = vld [vmem:[#allocation2 + $0x1f2] sm:$0xff]
      %v1567 = vld [vmem:[#allocation2 + $0x1fa] sm:$0xff]
      %v1568 = vld [vmem:[#allocation2 + $0x202] sm:$0xff]
      %v1569 = vld [vmem:[#allocation2 + $0x20a] sm:$0xff]
      %v1570 = vld [vmem:[#allocation2 + $0x212] sm:$0xff]
      %v1571 = vld [vmem:[#allocation2 + $0x21a] sm:$0x3f]
      %1640 = vrot.lane.b32.xlu0 %v1504, 64
      %v1641 = vpop.permute.xlu0 %1640
      %1642 = vrot.lane.b32.xlu0 %v1505, 64
      %v1643 = vpop.permute.xlu0 %1642
      %1644 = vrot.lane.b32.xlu0 %v1506, 64
      %v1645 = vpop.permute.xlu0 %1644
      %1646 = vrot.lane.b32.xlu0 %v1507, 64
      %v1647 = vpop.permute.xlu0 %1646
      %1648 = vrot.lane.b32.xlu0 %v1508, 64
      %v1649 = vpop.permute.xlu0 %1648
      %1650 = vrot.lane.b32.xlu0 %v1509, 64
      %v1651 = vpop.permute.xlu0 %1650
      %1652 = vrot.lane.b32.xlu0 %v1510, 64
      %v1653 = vpop.permute.xlu0 %1652
      %1654 = vrot.lane.b32.xlu0 %v1511, 64
      %v1655 = vpop.permute.xlu0 %1654
      %1656 = vrot.lane.b32.xlu0 %v1512, 64
      %v1657 = vpop.permute.xlu0 %1656
      %1658 = vrot.lane.b32.xlu0 %v1513, 64
      %v1659 = vpop.permute.xlu0 %1658
      %1660 = vrot.lane.b32.xlu0 %v1514, 64
      %v1661 = vpop.permute.xlu0 %1660
      %1662 = vrot.lane.b32.xlu0 %v1515, 64
      %v1663 = vpop.permute.xlu0 %1662
      %1664 = vrot.lane.b32.xlu0 %v1516, 64
      %v1665 = vpop.permute.xlu0 %1664
      %1666 = vrot.lane.b32.xlu0 %v1517, 64
      %v1667 = vpop.permute.xlu0 %1666
      %1668 = vrot.lane.b32.xlu0 %v1518, 64
      %v1669 = vpop.permute.xlu0 %1668
      %1670 = vrot.lane.b32.xlu0 %v1519, 64
      %v1671 = vpop.permute.xlu0 %1670
      %1672 = vrot.lane.b32.xlu0 %v1520, 64
      %v1673 = vpop.permute.xlu0 %1672
      %1674 = vrot.lane.b32.xlu0 %v1521, 64
      %v1675 = vpop.permute.xlu0 %1674
      %1676 = vrot.lane.b32.xlu0 %v1522, 64
      %v1677 = vpop.permute.xlu0 %1676
      %1678 = vrot.lane.b32.xlu0 %v1523, 64
      %v1679 = vpop.permute.xlu0 %1678
      %1680 = vrot.lane.b32.xlu0 %v1524, 64
      %v1681 = vpop.permute.xlu0 %1680
      %1682 = vrot.lane.b32.xlu0 %v1525, 64
      %v1683 = vpop.permute.xlu0 %1682
      %1684 = vrot.lane.b32.xlu0 %v1526, 64
      %v1685 = vpop.permute.xlu0 %1684
      %1686 = vrot.lane.b32.xlu0 %v1527, 64
      %v1687 = vpop.permute.xlu0 %1686
      %1688 = vrot.lane.b32.xlu0 %v1528, 64
      %v1689 = vpop.permute.xlu0 %1688
      %1690 = vrot.lane.b32.xlu0 %v1529, 64
      %v1691 = vpop.permute.xlu0 %1690
      %1692 = vrot.lane.b32.xlu0 %v1530, 64
      %v1693 = vpop.permute.xlu0 %1692
      %1694 = vrot.lane.b32.xlu0 %v1531, 64
      %v1695 = vpop.permute.xlu0 %1694
      %1696 = vrot.lane.b32.xlu0 %v1532, 64
      %v1697 = vpop.permute.xlu0 %1696
      %1698 = vrot.lane.b32.xlu0 %v1533, 64
      %v1699 = vpop.permute.xlu0 %1698
      %1700 = vrot.lane.b32.xlu0 %v1534, 64
      %v1701 = vpop.permute.xlu0 %1700
      %1702 = vrot.lane.b32.xlu0 %v1535, 64
      %v1703 = vpop.permute.xlu0 %1702
      %1704 = vrot.lane.b32.xlu0 %v1536, 64
      %v1705 = vpop.permute.xlu0 %1704
      %1706 = vrot.lane.b32.xlu0 %v1537, 64
      %v1707 = vpop.permute.xlu0 %1706
      %1708 = vrot.lane.b32.xlu0 %v1538, 64
      %v1709 = vpop.permute.xlu0 %1708
      %1710 = vrot.lane.b32.xlu0 %v1539, 64
      %v1711 = vpop.permute.xlu0 %1710
      %1712 = vrot.lane.b32.xlu0 %v1540, 64
      %v1713 = vpop.permute.xlu0 %1712
      %1714 = vrot.lane.b32.xlu0 %v1541, 64
      %v1715 = vpop.permute.xlu0 %1714
      %1716 = vrot.lane.b32.xlu0 %v1542, 64
      %v1717 = vpop.permute.xlu0 %1716
      %1718 = vrot.lane.b32.xlu0 %v1543, 64
      %v1719 = vpop.permute.xlu0 %1718
      %1720 = vrot.lane.b32.xlu0 %v1544, 64
      %v1721 = vpop.permute.xlu0 %1720
      %1722 = vrot.lane.b32.xlu0 %v1545, 64
      %v1723 = vpop.permute.xlu0 %1722
      %1724 = vrot.lane.b32.xlu0 %v1546, 64
      %v1725 = vpop.permute.xlu0 %1724
      %1726 = vrot.lane.b32.xlu0 %v1547, 64
      %v1727 = vpop.permute.xlu0 %1726
      %1728 = vrot.lane.b32.xlu0 %v1548, 64
      %v1729 = vpop.permute.xlu0 %1728
      %1730 = vrot.lane.b32.xlu0 %v1549, 64
      %v1731 = vpop.permute.xlu0 %1730
      %1732 = vrot.lane.b32.xlu0 %v1550, 64
      %v1733 = vpop.permute.xlu0 %1732
      %1734 = vrot.lane.b32.xlu0 %v1551, 64
      %v1735 = vpop.permute.xlu0 %1734
      %1736 = vrot.lane.b32.xlu0 %v1552, 64
      %v1737 = vpop.permute.xlu0 %1736
      %1738 = vrot.lane.b32.xlu0 %v1553, 64
      %v1739 = vpop.permute.xlu0 %1738
      %1740 = vrot.lane.b32.xlu0 %v1554, 64
      %v1741 = vpop.permute.xlu0 %1740
      %1742 = vrot.lane.b32.xlu0 %v1555, 64
      %v1743 = vpop.permute.xlu0 %1742
      %1744 = vrot.lane.b32.xlu0 %v1556, 64
      %v1745 = vpop.permute.xlu0 %1744
      %1746 = vrot.lane.b32.xlu0 %v1557, 64
      %v1747 = vpop.permute.xlu0 %1746
      %1748 = vrot.lane.b32.xlu0 %v1558, 64
      %v1749 = vpop.permute.xlu0 %1748
      %1750 = vrot.lane.b32.xlu0 %v1559, 64
      %v1751 = vpop.permute.xlu0 %1750
      %1752 = vrot.lane.b32.xlu0 %v1560, 64
      %v1753 = vpop.permute.xlu0 %1752
      %1754 = vrot.lane.b32.xlu0 %v1561, 64
      %v1755 = vpop.permute.xlu0 %1754
      %1756 = vrot.lane.b32.xlu0 %v1562, 64
      %v1757 = vpop.permute.xlu0 %1756
      %1758 = vrot.lane.b32.xlu0 %v1563, 64
      %v1759 = vpop.permute.xlu0 %1758
      %1760 = vrot.lane.b32.xlu0 %v1564, 64
      %v1761 = vpop.permute.xlu0 %1760
      %1762 = vrot.lane.b32.xlu0 %v1565, 64
      %v1763 = vpop.permute.xlu0 %1762
      %1764 = vrot.lane.b32.xlu0 %v1566, 64
      %v1765 = vpop.permute.xlu0 %1764
      %1766 = vrot.lane.b32.xlu0 %v1567, 64
      %v1767 = vpop.permute.xlu0 %1766
      %1768 = vrot.lane.b32.xlu0 %v1568, 64
      %v1769 = vpop.permute.xlu0 %1768
      %1770 = vrot.lane.b32.xlu0 %v1569, 64
      %v1771 = vpop.permute.xlu0 %1770
      %1772 = vrot.lane.b32.xlu0 %v1570, 64
      %v1773 = vpop.permute.xlu0 %1772
      %1774 = vrot.lane.b32.xlu0 %v1571, 64
      %v1775 = vpop.permute.xlu0 %1774
      %vm1844 = vcmask 785920
      %1845 = vst.msk [vmem:[#allocation2] sm:$0xff] %vm1844, %v1641
      %1846 = vst.msk [vmem:[#allocation2 + $0x8] sm:$0xff] %vm1844, %v1643
      %1847 = vst.msk [vmem:[#allocation2 + $0x10] sm:$0xff] %vm1844, %v1645
      %1848 = vst.msk [vmem:[#allocation2 + $0x18] sm:$0xff] %vm1844, %v1647
      %1849 = vst.msk [vmem:[#allocation2 + $0x20] sm:$0xff] %vm1844, %v1649
      %1850 = vst.msk [vmem:[#allocation2 + $0x28] sm:$0xff] %vm1844, %v1651
      %1851 = vst.msk [vmem:[#allocation2 + $0x30] sm:$0xff] %vm1844, %v1653
      %1852 = vst.msk [vmem:[#allocation2 + $0x38] sm:$0xff] %vm1844, %v1655
      %1853 = vst.msk [vmem:[#allocation2 + $0x40] sm:$0xff] %vm1844, %v1657
      %1854 = vst.msk [vmem:[#allocation2 + $0x48] sm:$0xff] %vm1844, %v1659
      %1855 = vst.msk [vmem:[#allocation2 + $0x50] sm:$0xff] %vm1844, %v1661
      %1856 = vst.msk [vmem:[#allocation2 + $0x58] sm:$0xff] %vm1844, %v1663
      %1857 = vst.msk [vmem:[#allocation2 + $0x60] sm:$0xff] %vm1844, %v1665
      %1858 = vst.msk [vmem:[#allocation2 + $0x68] sm:$0xff] %vm1844, %v1667
      %1859 = vst.msk [vmem:[#allocation2 + $0x70] sm:$0xff] %vm1844, %v1669
      %1860 = vst.msk [vmem:[#allocation2 + $0x78] sm:$0xff] %vm1844, %v1671
      %1861 = vst.msk [vmem:[#allocation2 + $0x80] sm:$0xff] %vm1844, %v1673
      %1862 = vst.msk [vmem:[#allocation2 + $0x88] sm:$0xff] %vm1844, %v1675
      %1863 = vst.msk [vmem:[#allocation2 + $0x90] sm:$0xff] %vm1844, %v1677
      %1864 = vst.msk [vmem:[#allocation2 + $0x98] sm:$0xff] %vm1844, %v1679
      %1865 = vst.msk [vmem:[#allocation2 + $0xa0] sm:$0xff] %vm1844, %v1681
      %1866 = vst.msk [vmem:[#allocation2 + $0xa8] sm:$0xff] %vm1844, %v1683
      %1867 = vst.msk [vmem:[#allocation2 + $0xb0] sm:$0xff] %vm1844, %v1685
      %1868 = vst.msk [vmem:[#allocation2 + $0xb8] sm:$0xff] %vm1844, %v1687
      %1869 = vst.msk [vmem:[#allocation2 + $0xc0] sm:$0xff] %vm1844, %v1689
      %1870 = vst.msk [vmem:[#allocation2 + $0xc8] sm:$0xff] %vm1844, %v1691
      %1871 = vst.msk [vmem:[#allocation2 + $0xd0] sm:$0xff] %vm1844, %v1693
      %1872 = vst.msk [vmem:[#allocation2 + $0xd8] sm:$0xff] %vm1844, %v1695
      %1873 = vst.msk [vmem:[#allocation2 + $0xe0] sm:$0xff] %vm1844, %v1697
      %1874 = vst.msk [vmem:[#allocation2 + $0xe8] sm:$0xff] %vm1844, %v1699
      %1875 = vst.msk [vmem:[#allocation2 + $0xf0] sm:$0xff] %vm1844, %v1701
      %1876 = vst.msk [vmem:[#allocation2 + $0xf8] sm:$0xff] %vm1844, %v1703
      %1877 = vst.msk [vmem:[#allocation2 + $0x100] sm:$0xff] %vm1844, %v1705
      %1878 = vst.msk [vmem:[#allocation2 + $0x108] sm:$0xff] %vm1844, %v1707
      %1879 = vst.msk [vmem:[#allocation2 + $0x110] sm:$0xff] %vm1844, %v1709
      %1880 = vst.msk [vmem:[#allocation2 + $0x118] sm:$0xff] %vm1844, %v1711
      %1881 = vst.msk [vmem:[#allocation2 + $0x120] sm:$0xff] %vm1844, %v1713
      %1882 = vst.msk [vmem:[#allocation2 + $0x128] sm:$0xff] %vm1844, %v1715
      %1883 = vst.msk [vmem:[#allocation2 + $0x130] sm:$0xff] %vm1844, %v1717
      %1884 = vst.msk [vmem:[#allocation2 + $0x138] sm:$0xff] %vm1844, %v1719
      %1885 = vst.msk [vmem:[#allocation2 + $0x140] sm:$0xff] %vm1844, %v1721
      %1886 = vst.msk [vmem:[#allocation2 + $0x148] sm:$0xff] %vm1844, %v1723
      %1887 = vst.msk [vmem:[#allocation2 + $0x150] sm:$0xff] %vm1844, %v1725
      %1888 = vst.msk [vmem:[#allocation2 + $0x158] sm:$0xff] %vm1844, %v1727
      %1889 = vst.msk [vmem:[#allocation2 + $0x160] sm:$0xff] %vm1844, %v1729
      %1890 = vst.msk [vmem:[#allocation2 + $0x168] sm:$0xff] %vm1844, %v1731
      %1891 = vst.msk [vmem:[#allocation2 + $0x170] sm:$0xff] %vm1844, %v1733
      %1892 = vst.msk [vmem:[#allocation2 + $0x178] sm:$0xff] %vm1844, %v1735
      %1893 = vst.msk [vmem:[#allocation2 + $0x180] sm:$0xff] %vm1844, %v1737
      %1894 = vst.msk [vmem:[#allocation2 + $0x188] sm:$0xff] %vm1844, %v1739
      %1895 = vst.msk [vmem:[#allocation2 + $0x190] sm:$0xff] %vm1844, %v1741
      %1896 = vst.msk [vmem:[#allocation2 + $0x198] sm:$0xff] %vm1844, %v1743
      %1897 = vst.msk [vmem:[#allocation2 + $0x1a0] sm:$0xff] %vm1844, %v1745
      %1898 = vst.msk [vmem:[#allocation2 + $0x1a8] sm:$0xff] %vm1844, %v1747
      %1899 = vst.msk [vmem:[#allocation2 + $0x1b0] sm:$0xff] %vm1844, %v1749
      %1900 = vst.msk [vmem:[#allocation2 + $0x1b8] sm:$0xff] %vm1844, %v1751
      %1901 = vst.msk [vmem:[#allocation2 + $0x1c0] sm:$0xff] %vm1844, %v1753
      %1902 = vst.msk [vmem:[#allocation2 + $0x1c8] sm:$0xff] %vm1844, %v1755
      %1903 = vst.msk [vmem:[#allocation2 + $0x1d0] sm:$0xff] %vm1844, %v1757
      %1904 = vst.msk [vmem:[#allocation2 + $0x1d8] sm:$0xff] %vm1844, %v1759
      %1905 = vst.msk [vmem:[#allocation2 + $0x1e0] sm:$0xff] %vm1844, %v1761
      %1906 = vst.msk [vmem:[#allocation2 + $0x1e8] sm:$0xff] %vm1844, %v1763
      %1907 = vst.msk [vmem:[#allocation2 + $0x1f0] sm:$0xff] %vm1844, %v1765
      %1908 = vst.msk [vmem:[#allocation2 + $0x1f8] sm:$0xff] %vm1844, %v1767
      %1909 = vst.msk [vmem:[#allocation2 + $0x200] sm:$0xff] %vm1844, %v1769
      %1910 = vst.msk [vmem:[#allocation2 + $0x208] sm:$0xff] %vm1844, %v1771
      %1911 = vst.msk [vmem:[#allocation2 + $0x210] sm:$0xff] %vm1844, %v1773
      %vm1912 = vcmask 783872
      %1913 = vst.msk [vmem:[#allocation2 + $0x218] sm:$0x3f] %vm1912, %v1775
      %v1914 = vld [vmem:[#allocation2] sm:$0xff]
      %v1915 = vld [vmem:[#allocation2 + $0x8] sm:$0xff]
      %v1916 = vld [vmem:[#allocation2 + $0x10] sm:$0xff]
      %v1917 = vld [vmem:[#allocation2 + $0x18] sm:$0xff]
      %v1918 = vld [vmem:[#allocation2 + $0x20] sm:$0xff]
      %v1919 = vld [vmem:[#allocation2 + $0x28] sm:$0xff]
      %v1920 = vld [vmem:[#allocation2 + $0x30] sm:$0xff]
      %v1921 = vld [vmem:[#allocation2 + $0x38] sm:$0xff]
      %v1922 = vld [vmem:[#allocation2 + $0x40] sm:$0xff]
      %v1923 = vld [vmem:[#allocation2 + $0x48] sm:$0xff]
      %v1924 = vld [vmem:[#allocation2 + $0x50] sm:$0xff]
      %v1925 = vld [vmem:[#allocation2 + $0x58] sm:$0xff]
      %v1926 = vld [vmem:[#allocation2 + $0x60] sm:$0xff]
      %v1927 = vld [vmem:[#allocation2 + $0x68] sm:$0xff]
      %v1928 = vld [vmem:[#allocation2 + $0x70] sm:$0xff]
      %v1929 = vld [vmem:[#allocation2 + $0x78] sm:$0xff]
      %v1930 = vld [vmem:[#allocation2 + $0x80] sm:$0xff]
      %v1931 = vld [vmem:[#allocation2 + $0x88] sm:$0xff]
      %v1932 = vld [vmem:[#allocation2 + $0x90] sm:$0xff]
      %v1933 = vld [vmem:[#allocation2 + $0x98] sm:$0xff]
      %v1934 = vld [vmem:[#allocation2 + $0xa0] sm:$0xff]
      %v1935 = vld [vmem:[#allocation2 + $0xa8] sm:$0xff]
      %v1936 = vld [vmem:[#allocation2 + $0xb0] sm:$0xff]
      %v1937 = vld [vmem:[#allocation2 + $0xb8] sm:$0xff]
      %v1938 = vld [vmem:[#allocation2 + $0xc0] sm:$0xff]
      %v1939 = vld [vmem:[#allocation2 + $0xc8] sm:$0xff]
      %v1940 = vld [vmem:[#allocation2 + $0xd0] sm:$0xff]
      %v1941 = vld [vmem:[#allocation2 + $0xd8] sm:$0xff]
      %v1942 = vld [vmem:[#allocation2 + $0xe0] sm:$0xff]
      %v1943 = vld [vmem:[#allocation2 + $0xe8] sm:$0xff]
      %v1944 = vld [vmem:[#allocation2 + $0xf0] sm:$0xff]
      %v1945 = vld [vmem:[#allocation2 + $0xf8] sm:$0xff]
      %v1946 = vld [vmem:[#allocation2 + $0x100] sm:$0xff]
      %v1947 = vld [vmem:[#allocation2 + $0x108] sm:$0xff]
      %v1948 = vld [vmem:[#allocation2 + $0x110] sm:$0xff]
      %v1949 = vld [vmem:[#allocation2 + $0x118] sm:$0xff]
      %v1950 = vld [vmem:[#allocation2 + $0x120] sm:$0xff]
      %v1951 = vld [vmem:[#allocation2 + $0x128] sm:$0xff]
      %v1952 = vld [vmem:[#allocation2 + $0x130] sm:$0xff]
      %v1953 = vld [vmem:[#allocation2 + $0x138] sm:$0xff]
      %v1954 = vld [vmem:[#allocation2 + $0x140] sm:$0xff]
      %v1955 = vld [vmem:[#allocation2 + $0x148] sm:$0xff]
      %v1956 = vld [vmem:[#allocation2 + $0x150] sm:$0xff]
      %v1957 = vld [vmem:[#allocation2 + $0x158] sm:$0xff]
      %v1958 = vld [vmem:[#allocation2 + $0x160] sm:$0xff]
      %v1959 = vld [vmem:[#allocation2 + $0x168] sm:$0xff]
      %v1960 = vld [vmem:[#allocation2 + $0x170] sm:$0xff]
      %v1961 = vld [vmem:[#allocation2 + $0x178] sm:$0xff]
      %v1962 = vld [vmem:[#allocation2 + $0x180] sm:$0xff]
      %v1963 = vld [vmem:[#allocation2 + $0x188] sm:$0xff]
      %v1964 = vld [vmem:[#allocation2 + $0x190] sm:$0xff]
      %v1965 = vld [vmem:[#allocation2 + $0x198] sm:$0xff]
      %v1966 = vld [vmem:[#allocation2 + $0x1a0] sm:$0xff]
      %v1967 = vld [vmem:[#allocation2 + $0x1a8] sm:$0xff]
      %v1968 = vld [vmem:[#allocation2 + $0x1b0] sm:$0xff]
      %v1969 = vld [vmem:[#allocation2 + $0x1b8] sm:$0xff]
      %v1970 = vld [vmem:[#allocation2 + $0x1c0] sm:$0xff]
      %v1971 = vld [vmem:[#allocation2 + $0x1c8] sm:$0xff]
      %v1972 = vld [vmem:[#allocation2 + $0x1d0] sm:$0xff]
      %v1973 = vld [vmem:[#allocation2 + $0x1d8] sm:$0xff]
      %v1974 = vpack.c.bf16 %v1915, %v1914
      %v1975 = vpack.c.bf16 %v1917, %v1916
      %v1976 = vpack.c.bf16 %v1919, %v1918
      %v1977 = vpack.c.bf16 %v1921, %v1920
      %v1978 = vpack.c.bf16 %v1923, %v1922
      %v1979 = vpack.c.bf16 %v1925, %v1924
      %v1980 = vpack.c.bf16 %v1927, %v1926
      %v1981 = vpack.c.bf16 %v1929, %v1928
      %v1982 = vpack.c.bf16 %v1931, %v1930
      %v1983 = vpack.c.bf16 %v1933, %v1932
      %v1984 = vpack.c.bf16 %v1935, %v1934
      %v1985 = vpack.c.bf16 %v1937, %v1936
      %v1986 = vpack.c.bf16 %v1939, %v1938
      %v1987 = vpack.c.bf16 %v1941, %v1940
      %v1988 = vpack.c.bf16 %v1943, %v1942
      %v1989 = vpack.c.bf16 %v1945, %v1944
      %v1990 = vpack.c.bf16 %v1947, %v1946
      %v1991 = vpack.c.bf16 %v1949, %v1948
      %v1992 = vpack.c.bf16 %v1951, %v1950
      %v1993 = vpack.c.bf16 %v1953, %v1952
      %v1994 = vpack.c.bf16 %v1955, %v1954
      %v1995 = vpack.c.bf16 %v1957, %v1956
      %v1996 = vpack.c.bf16 %v1959, %v1958
      %v1997 = vpack.c.bf16 %v1961, %v1960
      %v1998 = vpack.c.bf16 %v1963, %v1962
      %v1999 = vpack.c.bf16 %v1965, %v1964
      %v2000 = vpack.c.bf16 %v1967, %v1966
      %v2001 = vpack.c.bf16 %v1969, %v1968
      %v2002 = vpack.c.bf16 %v1971, %v1970
      %v2003 = vpack.c.bf16 %v1973, %v1972
      %v2004 = vld [vmem:[%s2] sm:$0xf]
      %v2005 = vld [vmem:[%s2 + $0x4] sm:$0xf]
      %v2006 = vld [vmem:[%s2 + $0x8] sm:$0xf]
      %v2007 = vld [vmem:[%s2 + $0xc] sm:$0xf]
      %v2008 = vld [vmem:[%s2 + $0x10] sm:$0xf]
      %v2009 = vld [vmem:[%s2 + $0x14] sm:$0xf]
      %v2010 = vld [vmem:[%s2 + $0x18] sm:$0xf]
      %v2011 = vld [vmem:[%s2 + $0x1c] sm:$0xf]
      %v2012 = vld [vmem:[%s2 + $0x20] sm:$0xf]
      %v2013 = vld [vmem:[%s2 + $0x24] sm:$0xf]
      %v2014 = vld [vmem:[%s2 + $0x28] sm:$0xf]
      %v2015 = vld [vmem:[%s2 + $0x2c] sm:$0xf]
      %v2016 = vld [vmem:[#allocation2 + $0x1e0] sm:$0xff]
      %v2017 = vld [vmem:[#allocation2 + $0x1e8] sm:$0xff]
      %v2018 = vld [vmem:[#allocation2 + $0x1f0] sm:$0xff]
      %v2019 = vld [vmem:[#allocation2 + $0x1f8] sm:$0xff]
      %v2020 = vpack.c.bf16 %v2017, %v2016
      %v2021 = vpack.c.bf16 %v2019, %v2018
      %s2022 = scalar_lea.vmem %s2, 48
      %v2023 = vld [vmem:[%s2022] sm:$0xf]
      %v2024 = vld [vmem:[%s2022 + $0x4] sm:$0xf]
      %v2025 = vld [vmem:[%s2022 + $0x8] sm:$0xf]
      %v2026 = vld [vmem:[%s2022 + $0xc] sm:$0xf]
      %v2027 = vld [vmem:[%s2022 + $0x10] sm:$0xf]
      %v2028 = vld [vmem:[%s2022 + $0x14] sm:$0xf]
      %v2029 = vld [vmem:[%s2022 + $0x18] sm:$0xf]
      %v2030 = vld [vmem:[%s2022 + $0x1c] sm:$0xf]
      %v2031 = vld [vmem:[%s2022 + $0x20] sm:$0xf]
      %v2032 = vld [vmem:[%s2022 + $0x24] sm:$0xf]
      %v2033 = vld [vmem:[%s2022 + $0x28] sm:$0xf]
      %v2034 = vld [vmem:[%s2022 + $0x2c] sm:$0xf]
      %v2047 = vunpack.c.l.b16 %v2023
      %v2048 = vunpack.c.l.b16 %v2024
      %v2049 = vunpack.c.l.b16 %v2025
      %v2050 = vunpack.c.l.b16 %v2026
      %v2051 = vunpack.c.l.b16 %v2027
      %v2052 = vunpack.c.l.b16 %v2028
      %v2053 = vunpack.c.l.b16 %v2029
      %v2054 = vunpack.c.l.b16 %v2030
      %v2055 = vunpack.c.l.b16 %v2031
      %v2056 = vunpack.c.l.b16 %v2032
      %v2057 = vunpack.c.l.b16 %v2033
      %v2058 = vunpack.c.l.b16 %v2034
      %v2059 = vpack.c.b16 %v2048, %v2047
      %v2060 = vpack.c.b16 %v2050, %v2049
      %v2061 = vpack.c.b16 %v2052, %v2051
      %v2062 = vpack.c.b16 %v2054, %v2053
      %v2063 = vpack.c.b16 %v2056, %v2055
      %v2064 = vpack.c.b16 %v2058, %v2057
      %vm2071 = vcmask 785408
      %v2073 = vsel %vm2071, %v1976, 0
      %v2076 = vsel %vm2071, %v1977, 0
      %v2079 = vsel %vm2071, %v1978, 0
      %v2082 = vsel %vm2071, %v1979, 0
      %v2085 = vsel %vm2071, %v1980, 0
      %v2088 = vsel %vm2071, %v1981, 0
      %v2091 = vsel %vm2071, %v1982, 0
      %v2094 = vsel %vm2071, %v1983, 0
      %v2097 = vsel %vm2071, %v1984, 0
      %v2100 = vsel %vm2071, %v1985, 0
      %v2103 = vsel %vm2071, %v1986, 0
      %v2106 = vsel %vm2071, %v1987, 0
      %v2109 = vsel %vm2071, %v1988, 0
      %v2112 = vsel %vm2071, %v1989, 0
      %v2115 = vsel %vm2071, %v1990, 0
      %v2118 = vsel %vm2071, %v1991, 0
      %v2121 = vsel %vm2071, %v1992, 0
      %v2124 = vsel %vm2071, %v1993, 0
      %v2127 = vsel %vm2071, %v1994, 0
      %v2130 = vsel %vm2071, %v1995, 0
      %v2133 = vsel %vm2071, %v1996, 0
      %v2136 = vsel %vm2071, %v1997, 0
      %v2139 = vsel %vm2071, %v1998, 0
      %v2142 = vsel %vm2071, %v1999, 0
      %v2145 = vsel %vm2071, %v2000, 0
      %v2148 = vsel %vm2071, %v2001, 0
      %v2151 = vsel %vm2071, %v2002, 0
      %v2154 = vsel %vm2071, %v2003, 0
      %v2157 = vsel %vm2071, %v2020, 0
      %v2160 = vsel %vm2071, %v2021, 0
      %2162 = vmatprep.subr.bf16.mxu0 0
      %2163 = vmatpush1.bf16.msra.mxu0 0
      %2164 = vmatprep.subr.bf16.mxu0 0
      %2165 = vmatpush1.bf16.msra.mxu0 0
      %2166 = vmatprep.subr.bf16.mxu0 0
      %2167 = vmatpush1.bf16.msra.mxu0 %v2064
      %2168 = vmatprep.subr.bf16.mxu0 0
      %2169 = vmatpush1.bf16.msra.mxu0 %v2063
      %2170 = vmatprep.subr.bf16.mxu0 0
      %2171 = vmatpush1.bf16.msra.mxu0 %v2062
      %2172 = vmatprep.subr.bf16.mxu0 0
      %2173 = vmatpush1.bf16.msra.mxu0 %v2061
      %2174 = vmatprep.subr.bf16.mxu0 0
      %2175 = vmatpush1.bf16.msra.mxu0 %v2060
      %2176 = vmatprep.subr.bf16.mxu0 0
      %2177 = vmatpush1.bf16.msra.mxu0 %v2059
      %2178 = vmatprep.subr.bf16.mxu0 0
      %2179 = vmatpush2.bf16.msra.mxu0 0
      %2180 = vmatprep.subr.bf16.mxu0 0
      %2181 = vmatpush2.bf16.msra.mxu0 0
      %2182 = vmatprep.subr.bf16.mxu0 0
      %2183 = vmatpush2.bf16.msra.mxu0 0
      %2184 = vmatprep.subr.bf16.mxu0 0
      %2185 = vmatpush2.bf16.msra.mxu0 0
      %2186 = vmatprep.subr.bf16.mxu0 0
      %2187 = vmatpush2.bf16.msra.mxu0 0
      %2188 = vmatprep.subr.bf16.mxu0 0
      %2189 = vmatpush2.bf16.msra.mxu0 0
      %2190 = vmatprep.subr.bf16.mxu0 0
      %2191 = vmatpush2.bf16.msra.mxu0 0
      %2192 = vmatprep.subr.bf16.mxu0 0
      %2193 = vmatpush2.bf16.msra.mxu0 0
      %2194 = vmatprep.mubr.bf16.mxu0 0
      %2195 = vmatmul.mubr.bf16.gmra.mxu0 %v2073
      %v2196 = vpop.f32.mrf.mxu0
      %v2197 = vadd.f32 0.0, %v2196
      %v2198 = vpop.f32.mrf.mxu0
      %v2199 = vpop.f32.mrf.mxu0
      %v2200 = vadd.f32 0.0, %v2199
      %v2201 = vpop.f32.mrf.mxu0
      %2202 = vmatprep.mubr.bf16.mxu0 0
      %2203 = vmatmul.mubr.bf16.gmra.mxu0 %v2076
      %v2204 = vpop.f32.mrf.mxu0
      %v2205 = vadd.f32 0.0, %v2204
      %v2206 = vpop.f32.mrf.mxu0
      %v2207 = vpop.f32.mrf.mxu0
      %v2208 = vadd.f32 0.0, %v2207
      %v2209 = vpop.f32.mrf.mxu0
      %2210 = vmatprep.mubr.bf16.mxu0 0
      %2211 = vmatmul.mubr.bf16.gmra.mxu0 %v2079
      %v2212 = vpop.f32.mrf.mxu0
      %v2213 = vadd.f32 0.0, %v2212
      %v2214 = vpop.f32.mrf.mxu0
      %v2215 = vpop.f32.mrf.mxu0
      %v2216 = vadd.f32 0.0, %v2215
      %v2217 = vpop.f32.mrf.mxu0
      %2218 = vmatprep.mubr.bf16.mxu0 0
      %2219 = vmatmul.mubr.bf16.gmra.mxu0 %v2082
      %v2220 = vpop.f32.mrf.mxu0
      %v2221 = vadd.f32 0.0, %v2220
      %v2222 = vpop.f32.mrf.mxu0
      %v2223 = vpop.f32.mrf.mxu0
      %v2224 = vadd.f32 0.0, %v2223
      %v2225 = vpop.f32.mrf.mxu0
      %2226 = vmatprep.mubr.bf16.mxu0 0
      %2227 = vmatmul.mubr.bf16.gmra.mxu0 %v2085
      %v2228 = vpop.f32.mrf.mxu0
      %v2229 = vadd.f32 0.0, %v2228
      %v2230 = vpop.f32.mrf.mxu0
      %v2231 = vpop.f32.mrf.mxu0
      %v2232 = vadd.f32 0.0, %v2231
      %v2233 = vpop.f32.mrf.mxu0
      %2234 = vmatprep.mubr.bf16.mxu0 0
      %2235 = vmatmul.mubr.bf16.gmra.mxu0 %v2088
      %v2236 = vpop.f32.mrf.mxu0
      %v2237 = vadd.f32 0.0, %v2236
      %v2238 = vpop.f32.mrf.mxu0
      %v2239 = vpop.f32.mrf.mxu0
      %v2240 = vadd.f32 0.0, %v2239
      %v2241 = vpop.f32.mrf.mxu0
      %2242 = vmatprep.mubr.bf16.mxu0 0
      %2243 = vmatmul.mubr.bf16.gmra.mxu0 %v2091
      %v2244 = vpop.f32.mrf.mxu0
      %v2245 = vadd.f32 0.0, %v2244
      %v2246 = vpop.f32.mrf.mxu0
      %v2247 = vpop.f32.mrf.mxu0
      %v2248 = vadd.f32 0.0, %v2247
      %v2249 = vpop.f32.mrf.mxu0
      %2250 = vmatprep.mubr.bf16.mxu0 0
      %2251 = vmatmul.mubr.bf16.gmra.mxu0 %v2094
      %v2252 = vpop.f32.mrf.mxu0
      %v2253 = vadd.f32 0.0, %v2252
      %v2254 = vpop.f32.mrf.mxu0
      %v2255 = vpop.f32.mrf.mxu0
      %v2256 = vadd.f32 0.0, %v2255
      %v2257 = vpop.f32.mrf.mxu0
      %2258 = vmatprep.mubr.bf16.mxu0 0
      %2259 = vmatmul.mubr.bf16.gmra.mxu0 %v2097
      %v2260 = vpop.f32.mrf.mxu0
      %v2261 = vadd.f32 0.0, %v2260
      %v2262 = vpop.f32.mrf.mxu0
      %v2263 = vpop.f32.mrf.mxu0
      %v2264 = vadd.f32 0.0, %v2263
      %v2265 = vpop.f32.mrf.mxu0
      %2266 = vmatprep.mubr.bf16.mxu0 0
      %2267 = vmatmul.mubr.bf16.gmra.mxu0 %v2100
      %v2268 = vpop.f32.mrf.mxu0
      %v2269 = vadd.f32 0.0, %v2268
      %v2270 = vpop.f32.mrf.mxu0
      %v2271 = vpop.f32.mrf.mxu0
      %v2272 = vadd.f32 0.0, %v2271
      %v2273 = vpop.f32.mrf.mxu0
      %2274 = vmatprep.mubr.bf16.mxu0 0
      %2275 = vmatmul.mubr.bf16.gmra.mxu0 %v2103
      %v2276 = vpop.f32.mrf.mxu0
      %v2277 = vadd.f32 0.0, %v2276
      %v2278 = vpop.f32.mrf.mxu0
      %v2279 = vpop.f32.mrf.mxu0
      %v2280 = vadd.f32 0.0, %v2279
      %v2281 = vpop.f32.mrf.mxu0
      %2282 = vmatprep.mubr.bf16.mxu0 0
      %2283 = vmatmul.mubr.bf16.gmra.mxu0 %v2106
      %v2284 = vpop.f32.mrf.mxu0
      %v2285 = vadd.f32 0.0, %v2284
      %v2286 = vpop.f32.mrf.mxu0
      %v2287 = vpop.f32.mrf.mxu0
      %v2288 = vadd.f32 0.0, %v2287
      %v2289 = vpop.f32.mrf.mxu0
      %2290 = vmatprep.mubr.bf16.mxu0 0
      %2291 = vmatmul.mubr.bf16.gmra.mxu0 %v2109
      %v2292 = vpop.f32.mrf.mxu0
      %v2293 = vadd.f32 0.0, %v2292
      %v2294 = vpop.f32.mrf.mxu0
      %v2295 = vpop.f32.mrf.mxu0
      %v2296 = vadd.f32 0.0, %v2295
      %v2297 = vpop.f32.mrf.mxu0
      %2298 = vmatprep.mubr.bf16.mxu0 0
      %2299 = vmatmul.mubr.bf16.gmra.mxu0 %v2112
      %v2300 = vpop.f32.mrf.mxu0
      %v2301 = vadd.f32 0.0, %v2300
      %v2302 = vpop.f32.mrf.mxu0
      %v2303 = vpop.f32.mrf.mxu0
      %v2304 = vadd.f32 0.0, %v2303
      %v2305 = vpop.f32.mrf.mxu0
      %2306 = vmatprep.mubr.bf16.mxu0 0
      %2307 = vmatmul.mubr.bf16.gmra.mxu0 %v2115
      %v2308 = vpop.f32.mrf.mxu0
      %v2309 = vadd.f32 0.0, %v2308
      %v2310 = vpop.f32.mrf.mxu0
      %v2311 = vpop.f32.mrf.mxu0
      %v2312 = vadd.f32 0.0, %v2311
      %v2313 = vpop.f32.mrf.mxu0
      %2314 = vmatprep.mubr.bf16.mxu0 0
      %2315 = vmatmul.mubr.bf16.gmra.mxu0 %v2118
      %v2316 = vpop.f32.mrf.mxu0
      %v2317 = vadd.f32 0.0, %v2316
      %v2318 = vpop.f32.mrf.mxu0
      %v2319 = vpop.f32.mrf.mxu0
      %v2320 = vadd.f32 0.0, %v2319
      %v2321 = vpop.f32.mrf.mxu0
      %2322 = vmatprep.mubr.bf16.mxu0 0
      %2323 = vmatmul.mubr.bf16.gmra.mxu0 %v2121
      %v2324 = vpop.f32.mrf.mxu0
      %v2325 = vadd.f32 0.0, %v2324
      %v2326 = vpop.f32.mrf.mxu0
      %v2327 = vpop.f32.mrf.mxu0
      %v2328 = vadd.f32 0.0, %v2327
      %v2329 = vpop.f32.mrf.mxu0
      %2330 = vmatprep.mubr.bf16.mxu0 0
      %2331 = vmatmul.mubr.bf16.gmra.mxu0 %v2124
      %v2332 = vpop.f32.mrf.mxu0
      %v2333 = vadd.f32 0.0, %v2332
      %v2334 = vpop.f32.mrf.mxu0
      %v2335 = vpop.f32.mrf.mxu0
      %v2336 = vadd.f32 0.0, %v2335
      %v2337 = vpop.f32.mrf.mxu0
      %2338 = vmatprep.mubr.bf16.mxu0 0
      %2339 = vmatmul.mubr.bf16.gmra.mxu0 %v2127
      %v2340 = vpop.f32.mrf.mxu0
      %v2341 = vadd.f32 0.0, %v2340
      %v2342 = vpop.f32.mrf.mxu0
      %v2343 = vpop.f32.mrf.mxu0
      %v2344 = vadd.f32 0.0, %v2343
      %v2345 = vpop.f32.mrf.mxu0
      %2346 = vmatprep.mubr.bf16.mxu0 0
      %2347 = vmatmul.mubr.bf16.gmra.mxu0 %v2130
      %v2348 = vpop.f32.mrf.mxu0
      %v2349 = vadd.f32 0.0, %v2348
      %v2350 = vpop.f32.mrf.mxu0
      %v2351 = vpop.f32.mrf.mxu0
      %v2352 = vadd.f32 0.0, %v2351
      %v2353 = vpop.f32.mrf.mxu0
      %2354 = vmatprep.mubr.bf16.mxu0 0
      %2355 = vmatmul.mubr.bf16.gmra.mxu0 %v2133
      %v2356 = vpop.f32.mrf.mxu0
      %v2357 = vadd.f32 0.0, %v2356
      %v2358 = vpop.f32.mrf.mxu0
      %v2359 = vpop.f32.mrf.mxu0
      %v2360 = vadd.f32 0.0, %v2359
      %v2361 = vpop.f32.mrf.mxu0
      %2362 = vmatprep.mubr.bf16.mxu0 0
      %2363 = vmatmul.mubr.bf16.gmra.mxu0 %v2136
      %v2364 = vpop.f32.mrf.mxu0
      %v2365 = vadd.f32 0.0, %v2364
      %v2366 = vpop.f32.mrf.mxu0
      %v2367 = vpop.f32.mrf.mxu0
      %v2368 = vadd.f32 0.0, %v2367
      %v2369 = vpop.f32.mrf.mxu0
      %2370 = vmatprep.mubr.bf16.mxu0 0
      %2371 = vmatmul.mubr.bf16.gmra.mxu0 %v2139
      %v2372 = vpop.f32.mrf.mxu0
      %v2373 = vadd.f32 0.0, %v2372
      %v2374 = vpop.f32.mrf.mxu0
      %v2375 = vpop.f32.mrf.mxu0
      %v2376 = vadd.f32 0.0, %v2375
      %v2377 = vpop.f32.mrf.mxu0
      %2378 = vmatprep.mubr.bf16.mxu0 0
      %2379 = vmatmul.mubr.bf16.gmra.mxu0 %v2142
      %v2380 = vpop.f32.mrf.mxu0
      %v2381 = vadd.f32 0.0, %v2380
      %v2382 = vpop.f32.mrf.mxu0
      %v2383 = vpop.f32.mrf.mxu0
      %v2384 = vadd.f32 0.0, %v2383
      %v2385 = vpop.f32.mrf.mxu0
      %2386 = vmatprep.mubr.bf16.mxu0 0
      %2387 = vmatmul.mubr.bf16.gmra.mxu0 %v2145
      %v2388 = vpop.f32.mrf.mxu0
      %v2389 = vadd.f32 0.0, %v2388
      %v2390 = vpop.f32.mrf.mxu0
      %v2391 = vpop.f32.mrf.mxu0
      %v2392 = vadd.f32 0.0, %v2391
      %v2393 = vpop.f32.mrf.mxu0
      %2394 = vmatprep.mubr.bf16.mxu0 0
      %2395 = vmatmul.mubr.bf16.gmra.mxu0 %v2148
      %v2396 = vpop.f32.mrf.mxu0
      %v2397 = vadd.f32 0.0, %v2396
      %v2398 = vpop.f32.mrf.mxu0
      %v2399 = vpop.f32.mrf.mxu0
      %v2400 = vadd.f32 0.0, %v2399
      %v2401 = vpop.f32.mrf.mxu0
      %2402 = vmatprep.mubr.bf16.mxu0 0
      %2403 = vmatmul.mubr.bf16.gmra.mxu0 %v2151
      %v2404 = vpop.f32.mrf.mxu0
      %v2405 = vadd.f32 0.0, %v2404
      %v2406 = vpop.f32.mrf.mxu0
      %v2407 = vpop.f32.mrf.mxu0
      %v2408 = vadd.f32 0.0, %v2407
      %v2409 = vpop.f32.mrf.mxu0
      %2410 = vmatprep.mubr.bf16.mxu0 0
      %2411 = vmatmul.mubr.bf16.gmra.mxu0 %v2154
      %v2412 = vpop.f32.mrf.mxu0
      %v2413 = vadd.f32 0.0, %v2412
      %v2414 = vpop.f32.mrf.mxu0
      %v2415 = vpop.f32.mrf.mxu0
      %v2416 = vadd.f32 0.0, %v2415
      %v2417 = vpop.f32.mrf.mxu0
      %2418 = vmatprep.mubr.bf16.mxu0 0
      %2419 = vmatmul.mubr.bf16.gmra.mxu0 %v2157
      %v2420 = vpop.f32.mrf.mxu0
      %v2421 = vadd.f32 0.0, %v2420
      %v2422 = vpop.f32.mrf.mxu0
      %v2423 = vpop.f32.mrf.mxu0
      %v2424 = vadd.f32 0.0, %v2423
      %v2425 = vpop.f32.mrf.mxu0
      %2426 = vmatprep.mubr.bf16.mxu0 0
      %2427 = vmatmul.mubr.bf16.gmra.mxu0 %v2160
      %v2428 = vpop.f32.mrf.mxu0
      %v2429 = vadd.f32 0.0, %v2428
      %v2430 = vpop.f32.mrf.mxu0
      %v2431 = vpop.f32.mrf.mxu0
      %v2432 = vadd.f32 0.0, %v2431
      %v2433 = vpop.f32.mrf.mxu0
      %2434 = vdwg.mxu0
      %v2447 = vunpack.c.l.b16 %v2004
      %v2448 = vunpack.c.l.b16 %v2005
      %v2449 = vunpack.c.l.b16 %v2006
      %v2450 = vunpack.c.l.b16 %v2007
      %v2451 = vunpack.c.l.b16 %v2008
      %v2452 = vunpack.c.l.b16 %v2009
      %v2453 = vunpack.c.l.b16 %v2010
      %v2454 = vunpack.c.l.b16 %v2011
      %v2455 = vunpack.c.l.b16 %v2012
      %v2456 = vunpack.c.l.b16 %v2013
      %v2457 = vunpack.c.l.b16 %v2014
      %v2458 = vunpack.c.l.b16 %v2015
      %v2459 = vpack.c.b16 %v2448, %v2447
      %v2460 = vpack.c.b16 %v2450, %v2449
      %v2461 = vpack.c.b16 %v2452, %v2451
      %v2462 = vpack.c.b16 %v2454, %v2453
      %v2463 = vpack.c.b16 %v2456, %v2455
      %v2464 = vpack.c.b16 %v2458, %v2457
      %v2472 = vsel %vm2071, %v1974, 0
      %v2475 = vsel %vm2071, %v1975, 0
      %2477 = vmatprep.subr.bf16.mxu0 0
      %2478 = vmatpush1.bf16.msra.mxu0 0
      %2479 = vmatprep.subr.bf16.mxu0 0
      %2480 = vmatpush1.bf16.msra.mxu0 0
      %2481 = vmatprep.subr.bf16.mxu0 0
      %2482 = vmatpush1.bf16.msra.mxu0 %v2464
      %2483 = vmatprep.subr.bf16.mxu0 0
      %2484 = vmatpush1.bf16.msra.mxu0 %v2463
      %2485 = vmatprep.subr.bf16.mxu0 0
      %2486 = vmatpush1.bf16.msra.mxu0 %v2462
      %2487 = vmatprep.subr.bf16.mxu0 0
      %2488 = vmatpush1.bf16.msra.mxu0 %v2461
      %2489 = vmatprep.subr.bf16.mxu0 0
      %2490 = vmatpush1.bf16.msra.mxu0 %v2460
      %2491 = vmatprep.subr.bf16.mxu0 0
      %2492 = vmatpush1.bf16.msra.mxu0 %v2459
      %2493 = vmatprep.subr.bf16.mxu0 0
      %2494 = vmatpush2.bf16.msra.mxu0 0
      %2495 = vmatprep.subr.bf16.mxu0 0
      %2496 = vmatpush2.bf16.msra.mxu0 0
      %2497 = vmatprep.subr.bf16.mxu0 0
      %2498 = vmatpush2.bf16.msra.mxu0 0
      %2499 = vmatprep.subr.bf16.mxu0 0
      %2500 = vmatpush2.bf16.msra.mxu0 0
      %2501 = vmatprep.subr.bf16.mxu0 0
      %2502 = vmatpush2.bf16.msra.mxu0 0
      %2503 = vmatprep.subr.bf16.mxu0 0
      %2504 = vmatpush2.bf16.msra.mxu0 0
      %2505 = vmatprep.subr.bf16.mxu0 0
      %2506 = vmatpush2.bf16.msra.mxu0 0
      %2507 = vmatprep.subr.bf16.mxu0 0
      %2508 = vmatpush2.bf16.msra.mxu0 0
      %2509 = vmatprep.mubr.bf16.mxu0 0
      %2510 = vmatmul.mubr.bf16.gmra.mxu0 %v2472
      %v2511 = vpop.f32.mrf.mxu0
      %v2512 = vadd.f32 %v2197, %v2511
      %v2513 = vpop.f32.mrf.mxu0
      %v2514 = vpop.f32.mrf.mxu0
      %v2515 = vadd.f32 %v2200, %v2514
      %v2516 = vpop.f32.mrf.mxu0
      %2517 = vmatprep.mubr.bf16.mxu0 0
      %2518 = vmatmul.mubr.bf16.gmra.mxu0 %v2475
      %v2519 = vpop.f32.mrf.mxu0
      %v2520 = vadd.f32 %v2205, %v2519
      %v2521 = vpop.f32.mrf.mxu0
      %v2522 = vpop.f32.mrf.mxu0
      %v2523 = vadd.f32 %v2208, %v2522
      %v2524 = vpop.f32.mrf.mxu0
      %2525 = vmatprep.mubr.bf16.mxu0 0
      %2526 = vmatmul.mubr.bf16.gmra.mxu0 %v2073
      %v2527 = vpop.f32.mrf.mxu0
      %v2528 = vadd.f32 %v2213, %v2527
      %v2529 = vpop.f32.mrf.mxu0
      %v2530 = vpop.f32.mrf.mxu0
      %v2531 = vadd.f32 %v2216, %v2530
      %v2532 = vpop.f32.mrf.mxu0
      %2533 = vmatprep.mubr.bf16.mxu0 0
      %2534 = vmatmul.mubr.bf16.gmra.mxu0 %v2076
      %v2535 = vpop.f32.mrf.mxu0
      %v2536 = vadd.f32 %v2221, %v2535
      %v2537 = vpop.f32.mrf.mxu0
      %v2538 = vpop.f32.mrf.mxu0
      %v2539 = vadd.f32 %v2224, %v2538
      %v2540 = vpop.f32.mrf.mxu0
      %2541 = vmatprep.mubr.bf16.mxu0 0
      %2542 = vmatmul.mubr.bf16.gmra.mxu0 %v2079
      %v2543 = vpop.f32.mrf.mxu0
      %v2544 = vadd.f32 %v2229, %v2543
      %v2545 = vpop.f32.mrf.mxu0
      %v2546 = vpop.f32.mrf.mxu0
      %v2547 = vadd.f32 %v2232, %v2546
      %v2548 = vpop.f32.mrf.mxu0
      %2549 = vmatprep.mubr.bf16.mxu0 0
      %2550 = vmatmul.mubr.bf16.gmra.mxu0 %v2082
      %v2551 = vpop.f32.mrf.mxu0
      %v2552 = vadd.f32 %v2237, %v2551
      %v2553 = vpop.f32.mrf.mxu0
      %v2554 = vpop.f32.mrf.mxu0
      %v2555 = vadd.f32 %v2240, %v2554
      %v2556 = vpop.f32.mrf.mxu0
      %2557 = vmatprep.mubr.bf16.mxu0 0
      %2558 = vmatmul.mubr.bf16.gmra.mxu0 %v2085
      %v2559 = vpop.f32.mrf.mxu0
      %v2560 = vadd.f32 %v2245, %v2559
      %v2561 = vpop.f32.mrf.mxu0
      %v2562 = vpop.f32.mrf.mxu0
      %v2563 = vadd.f32 %v2248, %v2562
      %v2564 = vpop.f32.mrf.mxu0
      %2565 = vmatprep.mubr.bf16.mxu0 0
      %2566 = vmatmul.mubr.bf16.gmra.mxu0 %v2088
      %v2567 = vpop.f32.mrf.mxu0
      %v2568 = vadd.f32 %v2253, %v2567
      %v2569 = vpop.f32.mrf.mxu0
      %v2570 = vpop.f32.mrf.mxu0
      %v2571 = vadd.f32 %v2256, %v2570
      %v2572 = vpop.f32.mrf.mxu0
      %2573 = vmatprep.mubr.bf16.mxu0 0
      %2574 = vmatmul.mubr.bf16.gmra.mxu0 %v2091
      %v2575 = vpop.f32.mrf.mxu0
      %v2576 = vadd.f32 %v2261, %v2575
      %v2577 = vpop.f32.mrf.mxu0
      %v2578 = vpop.f32.mrf.mxu0
      %v2579 = vadd.f32 %v2264, %v2578
      %v2580 = vpop.f32.mrf.mxu0
      %2581 = vmatprep.mubr.bf16.mxu0 0
      %2582 = vmatmul.mubr.bf16.gmra.mxu0 %v2094
      %v2583 = vpop.f32.mrf.mxu0
      %v2584 = vadd.f32 %v2269, %v2583
      %v2585 = vpop.f32.mrf.mxu0
      %v2586 = vpop.f32.mrf.mxu0
      %v2587 = vadd.f32 %v2272, %v2586
      %v2588 = vpop.f32.mrf.mxu0
      %2589 = vmatprep.mubr.bf16.mxu0 0
      %2590 = vmatmul.mubr.bf16.gmra.mxu0 %v2097
      %v2591 = vpop.f32.mrf.mxu0
      %v2592 = vadd.f32 %v2277, %v2591
      %v2593 = vpop.f32.mrf.mxu0
      %v2594 = vpop.f32.mrf.mxu0
      %v2595 = vadd.f32 %v2280, %v2594
      %v2596 = vpop.f32.mrf.mxu0
      %2597 = vmatprep.mubr.bf16.mxu0 0
      %2598 = vmatmul.mubr.bf16.gmra.mxu0 %v2100
      %v2599 = vpop.f32.mrf.mxu0
      %v2600 = vadd.f32 %v2285, %v2599
      %v2601 = vpop.f32.mrf.mxu0
      %v2602 = vpop.f32.mrf.mxu0
      %v2603 = vadd.f32 %v2288, %v2602
      %v2604 = vpop.f32.mrf.mxu0
      %2605 = vmatprep.mubr.bf16.mxu0 0
      %2606 = vmatmul.mubr.bf16.gmra.mxu0 %v2103
      %v2607 = vpop.f32.mrf.mxu0
      %v2608 = vadd.f32 %v2293, %v2607
      %v2609 = vpop.f32.mrf.mxu0
      %v2610 = vpop.f32.mrf.mxu0
      %v2611 = vadd.f32 %v2296, %v2610
      %v2612 = vpop.f32.mrf.mxu0
      %2613 = vmatprep.mubr.bf16.mxu0 0
      %2614 = vmatmul.mubr.bf16.gmra.mxu0 %v2106
      %v2615 = vpop.f32.mrf.mxu0
      %v2616 = vadd.f32 %v2301, %v2615
      %v2617 = vpop.f32.mrf.mxu0
      %v2618 = vpop.f32.mrf.mxu0
      %v2619 = vadd.f32 %v2304, %v2618
      %v2620 = vpop.f32.mrf.mxu0
      %2621 = vmatprep.mubr.bf16.mxu0 0
      %2622 = vmatmul.mubr.bf16.gmra.mxu0 %v2109
      %v2623 = vpop.f32.mrf.mxu0
      %v2624 = vadd.f32 %v2309, %v2623
      %v2625 = vpop.f32.mrf.mxu0
      %v2626 = vpop.f32.mrf.mxu0
      %v2627 = vadd.f32 %v2312, %v2626
      %v2628 = vpop.f32.mrf.mxu0
      %2629 = vmatprep.mubr.bf16.mxu0 0
      %2630 = vmatmul.mubr.bf16.gmra.mxu0 %v2112
      %v2631 = vpop.f32.mrf.mxu0
      %v2632 = vadd.f32 %v2317, %v2631
      %v2633 = vpop.f32.mrf.mxu0
      %v2634 = vpop.f32.mrf.mxu0
      %v2635 = vadd.f32 %v2320, %v2634
      %v2636 = vpop.f32.mrf.mxu0
      %2637 = vmatprep.mubr.bf16.mxu0 0
      %2638 = vmatmul.mubr.bf16.gmra.mxu0 %v2115
      %v2639 = vpop.f32.mrf.mxu0
      %v2640 = vadd.f32 %v2325, %v2639
      %v2641 = vpop.f32.mrf.mxu0
      %v2642 = vpop.f32.mrf.mxu0
      %v2643 = vadd.f32 %v2328, %v2642
      %v2644 = vpop.f32.mrf.mxu0
      %2645 = vmatprep.mubr.bf16.mxu0 0
      %2646 = vmatmul.mubr.bf16.gmra.mxu0 %v2118
      %v2647 = vpop.f32.mrf.mxu0
      %v2648 = vadd.f32 %v2333, %v2647
      %v2649 = vpop.f32.mrf.mxu0
      %v2650 = vpop.f32.mrf.mxu0
      %v2651 = vadd.f32 %v2336, %v2650
      %v2652 = vpop.f32.mrf.mxu0
      %2653 = vmatprep.mubr.bf16.mxu0 0
      %2654 = vmatmul.mubr.bf16.gmra.mxu0 %v2121
      %v2655 = vpop.f32.mrf.mxu0
      %v2656 = vadd.f32 %v2341, %v2655
      %v2657 = vpop.f32.mrf.mxu0
      %v2658 = vpop.f32.mrf.mxu0
      %v2659 = vadd.f32 %v2344, %v2658
      %v2660 = vpop.f32.mrf.mxu0
      %2661 = vmatprep.mubr.bf16.mxu0 0
      %2662 = vmatmul.mubr.bf16.gmra.mxu0 %v2124
      %v2663 = vpop.f32.mrf.mxu0
      %v2664 = vadd.f32 %v2349, %v2663
      %v2665 = vpop.f32.mrf.mxu0
      %v2666 = vpop.f32.mrf.mxu0
      %v2667 = vadd.f32 %v2352, %v2666
      %v2668 = vpop.f32.mrf.mxu0
      %2669 = vmatprep.mubr.bf16.mxu0 0
      %2670 = vmatmul.mubr.bf16.gmra.mxu0 %v2127
      %v2671 = vpop.f32.mrf.mxu0
      %v2672 = vadd.f32 %v2357, %v2671
      %v2673 = vpop.f32.mrf.mxu0
      %v2674 = vpop.f32.mrf.mxu0
      %v2675 = vadd.f32 %v2360, %v2674
      %v2676 = vpop.f32.mrf.mxu0
      %2677 = vmatprep.mubr.bf16.mxu0 0
      %2678 = vmatmul.mubr.bf16.gmra.mxu0 %v2130
      %v2679 = vpop.f32.mrf.mxu0
      %v2680 = vadd.f32 %v2365, %v2679
      %v2681 = vpop.f32.mrf.mxu0
      %v2682 = vpop.f32.mrf.mxu0
      %v2683 = vadd.f32 %v2368, %v2682
      %v2684 = vpop.f32.mrf.mxu0
      %2685 = vmatprep.mubr.bf16.mxu0 0
      %2686 = vmatmul.mubr.bf16.gmra.mxu0 %v2133
      %v2687 = vpop.f32.mrf.mxu0
      %v2688 = vadd.f32 %v2373, %v2687
      %v2689 = vpop.f32.mrf.mxu0
      %v2690 = vpop.f32.mrf.mxu0
      %v2691 = vadd.f32 %v2376, %v2690
      %v2692 = vpop.f32.mrf.mxu0
      %2693 = vmatprep.mubr.bf16.mxu0 0
      %2694 = vmatmul.mubr.bf16.gmra.mxu0 %v2136
      %v2695 = vpop.f32.mrf.mxu0
      %v2696 = vadd.f32 %v2381, %v2695
      %v2697 = vpop.f32.mrf.mxu0
      %v2698 = vpop.f32.mrf.mxu0
      %v2699 = vadd.f32 %v2384, %v2698
      %v2700 = vpop.f32.mrf.mxu0
      %2701 = vmatprep.mubr.bf16.mxu0 0
      %2702 = vmatmul.mubr.bf16.gmra.mxu0 %v2139
      %v2703 = vpop.f32.mrf.mxu0
      %v2704 = vadd.f32 %v2389, %v2703
      %v2705 = vpop.f32.mrf.mxu0
      %v2706 = vpop.f32.mrf.mxu0
      %v2707 = vadd.f32 %v2392, %v2706
      %v2708 = vpop.f32.mrf.mxu0
      %2709 = vmatprep.mubr.bf16.mxu0 0
      %2710 = vmatmul.mubr.bf16.gmra.mxu0 %v2142
      %v2711 = vpop.f32.mrf.mxu0
      %v2712 = vadd.f32 %v2397, %v2711
      %v2713 = vpop.f32.mrf.mxu0
      %v2714 = vpop.f32.mrf.mxu0
      %v2715 = vadd.f32 %v2400, %v2714
      %v2716 = vpop.f32.mrf.mxu0
      %2717 = vmatprep.mubr.bf16.mxu0 0
      %2718 = vmatmul.mubr.bf16.gmra.mxu0 %v2145
      %v2719 = vpop.f32.mrf.mxu0
      %v2720 = vadd.f32 %v2405, %v2719
      %v2721 = vpop.f32.mrf.mxu0
      %v2722 = vpop.f32.mrf.mxu0
      %v2723 = vadd.f32 %v2408, %v2722
      %v2724 = vpop.f32.mrf.mxu0
      %2725 = vmatprep.mubr.bf16.mxu0 0
      %2726 = vmatmul.mubr.bf16.gmra.mxu0 %v2148
      %v2727 = vpop.f32.mrf.mxu0
      %v2728 = vadd.f32 %v2413, %v2727
      %v2729 = vpop.f32.mrf.mxu0
      %v2730 = vpop.f32.mrf.mxu0
      %v2731 = vadd.f32 %v2416, %v2730
      %v2732 = vpop.f32.mrf.mxu0
      %2733 = vmatprep.mubr.bf16.mxu0 0
      %2734 = vmatmul.mubr.bf16.gmra.mxu0 %v2151
      %v2735 = vpop.f32.mrf.mxu0
      %v2736 = vadd.f32 %v2421, %v2735
      %v2737 = vpop.f32.mrf.mxu0
      %v2738 = vpop.f32.mrf.mxu0
      %v2739 = vadd.f32 %v2424, %v2738
      %v2740 = vpop.f32.mrf.mxu0
      %2741 = vmatprep.mubr.bf16.mxu0 0
      %2742 = vmatmul.mubr.bf16.gmra.mxu0 %v2154
      %v2743 = vpop.f32.mrf.mxu0
      %v2744 = vadd.f32 %v2429, %v2743
      %v2745 = vpop.f32.mrf.mxu0
      %v2746 = vpop.f32.mrf.mxu0
      %v2747 = vadd.f32 %v2432, %v2746
      %v2748 = vpop.f32.mrf.mxu0
      %2749 = vdwg.mxu0
      %v2750 = vld [vmem:[#allocation2 + $0x40] sm:$0xff]
      %v2751 = vld [vmem:[#allocation2 + $0x48] sm:$0xff]
      %v2752 = vld [vmem:[#allocation2 + $0x50] sm:$0xff]
      %v2753 = vld [vmem:[#allocation2 + $0x58] sm:$0xff]
      %v2754 = vld [vmem:[#allocation2 + $0x60] sm:$0xff]
      %v2755 = vld [vmem:[#allocation2 + $0x68] sm:$0xff]
      %v2756 = vld [vmem:[#allocation2 + $0x70] sm:$0xff]
      %v2757 = vld [vmem:[#allocation2 + $0x78] sm:$0xff]
      %v2758 = vld [vmem:[#allocation2 + $0x80] sm:$0xff]
      %v2759 = vld [vmem:[#allocation2 + $0x88] sm:$0xff]
      %v2760 = vld [vmem:[#allocation2 + $0x90] sm:$0xff]
      %v2761 = vld [vmem:[#allocation2 + $0x98] sm:$0xff]
      %v2762 = vld [vmem:[#allocation2 + $0xa0] sm:$0xff]
      %v2763 = vld [vmem:[#allocation2 + $0xa8] sm:$0xff]
      %v2764 = vld [vmem:[#allocation2 + $0xb0] sm:$0xff]
      %v2765 = vld [vmem:[#allocation2 + $0xb8] sm:$0xff]
      %v2766 = vld [vmem:[#allocation2 + $0xc0] sm:$0xff]
      %v2767 = vld [vmem:[#allocation2 + $0xc8] sm:$0xff]
      %v2768 = vld [vmem:[#allocation2 + $0xd0] sm:$0xff]
      %v2769 = vld [vmem:[#allocation2 + $0xd8] sm:$0xff]
      %v2770 = vld [vmem:[#allocation2 + $0xe0] sm:$0xff]
      %v2771 = vld [vmem:[#allocation2 + $0xe8] sm:$0xff]
      %v2772 = vld [vmem:[#allocation2 + $0xf0] sm:$0xff]
      %v2773 = vld [vmem:[#allocation2 + $0xf8] sm:$0xff]
      %v2774 = vld [vmem:[#allocation2 + $0x100] sm:$0xff]
      %v2775 = vld [vmem:[#allocation2 + $0x108] sm:$0xff]
      %v2776 = vld [vmem:[#allocation2 + $0x110] sm:$0xff]
      %v2777 = vld [vmem:[#allocation2 + $0x118] sm:$0xff]
      %v2778 = vld [vmem:[#allocation2 + $0x120] sm:$0xff]
      %v2779 = vld [vmem:[#allocation2 + $0x128] sm:$0xff]
      %v2780 = vld [vmem:[#allocation2 + $0x130] sm:$0xff]
      %v2781 = vld [vmem:[#allocation2 + $0x138] sm:$0xff]
      %v2782 = vld [vmem:[#allocation2 + $0x140] sm:$0xff]
      %v2783 = vld [vmem:[#allocation2 + $0x148] sm:$0xff]
      %v2784 = vld [vmem:[#allocation2 + $0x150] sm:$0xff]
      %v2785 = vld [vmem:[#allocation2 + $0x158] sm:$0xff]
      %v2786 = vld [vmem:[#allocation2 + $0x160] sm:$0xff]
      %v2787 = vld [vmem:[#allocation2 + $0x168] sm:$0xff]
      %v2788 = vld [vmem:[#allocation2 + $0x170] sm:$0xff]
      %v2789 = vld [vmem:[#allocation2 + $0x178] sm:$0xff]
      %v2790 = vld [vmem:[#allocation2 + $0x180] sm:$0xff]
      %v2791 = vld [vmem:[#allocation2 + $0x188] sm:$0xff]
      %v2792 = vld [vmem:[#allocation2 + $0x190] sm:$0xff]
      %v2793 = vld [vmem:[#allocation2 + $0x198] sm:$0xff]
      %v2794 = vld [vmem:[#allocation2 + $0x1a0] sm:$0xff]
      %v2795 = vld [vmem:[#allocation2 + $0x1a8] sm:$0xff]
      %v2796 = vld [vmem:[#allocation2 + $0x1b0] sm:$0xff]
      %v2797 = vld [vmem:[#allocation2 + $0x1b8] sm:$0xff]
      %v2798 = vld [vmem:[#allocation2 + $0x1c0] sm:$0xff]
      %v2799 = vld [vmem:[#allocation2 + $0x1c8] sm:$0xff]
      %v2800 = vld [vmem:[#allocation2 + $0x1d0] sm:$0xff]
      %v2801 = vld [vmem:[#allocation2 + $0x1d8] sm:$0xff]
      %v2802 = vld [vmem:[#allocation2 + $0x1e0] sm:$0xff]
      %v2803 = vld [vmem:[#allocation2 + $0x1e8] sm:$0xff]
      %v2804 = vld [vmem:[#allocation2 + $0x1f0] sm:$0xff]
      %v2805 = vld [vmem:[#allocation2 + $0x1f8] sm:$0xff]
      %v2806 = vld [vmem:[#allocation2 + $0x200] sm:$0xff]
      %v2807 = vld [vmem:[#allocation2 + $0x208] sm:$0xff]
      %v2808 = vld [vmem:[#allocation2 + $0x210] sm:$0xff]
      %v2809 = vld [vmem:[#allocation2 + $0x218] sm:$0xff]
      %v2810 = vpack.c.bf16 %v2751, %v2750
      %v2811 = vpack.c.bf16 %v2753, %v2752
      %v2812 = vpack.c.bf16 %v2755, %v2754
      %v2813 = vpack.c.bf16 %v2757, %v2756
      %v2814 = vpack.c.bf16 %v2759, %v2758
      %v2815 = vpack.c.bf16 %v2761, %v2760
      %v2816 = vpack.c.bf16 %v2763, %v2762
      %v2817 = vpack.c.bf16 %v2765, %v2764
      %v2818 = vpack.c.bf16 %v2767, %v2766
      %v2819 = vpack.c.bf16 %v2769, %v2768
      %v2820 = vpack.c.bf16 %v2771, %v2770
      %v2821 = vpack.c.bf16 %v2773, %v2772
      %v2822 = vpack.c.bf16 %v2775, %v2774
      %v2823 = vpack.c.bf16 %v2777, %v2776
      %v2824 = vpack.c.bf16 %v2779, %v2778
      %v2825 = vpack.c.bf16 %v2781, %v2780
      %v2826 = vpack.c.bf16 %v2783, %v2782
      %v2827 = vpack.c.bf16 %v2785, %v2784
      %v2828 = vpack.c.bf16 %v2787, %v2786
      %v2829 = vpack.c.bf16 %v2789, %v2788
      %v2830 = vpack.c.bf16 %v2791, %v2790
      %v2831 = vpack.c.bf16 %v2793, %v2792
      %v2832 = vpack.c.bf16 %v2795, %v2794
      %v2833 = vpack.c.bf16 %v2797, %v2796
      %v2834 = vpack.c.bf16 %v2799, %v2798
      %v2835 = vpack.c.bf16 %v2801, %v2800
      %v2836 = vpack.c.bf16 %v2803, %v2802
      %v2837 = vpack.c.bf16 %v2805, %v2804
      %v2838 = vpack.c.bf16 %v2807, %v2806
      %v2839 = vpack.c.bf16 %v2809, %v2808
      %s2840 = scalar_lea.vmem %s2, 96
      %v2841 = vld [vmem:[%s2840] sm:$0xf]
      %v2842 = vld [vmem:[%s2840 + $0x4] sm:$0xf]
      %v2843 = vld [vmem:[%s2840 + $0x8] sm:$0xf]
      %v2844 = vld [vmem:[%s2840 + $0xc] sm:$0xf]
      %v2845 = vld [vmem:[%s2840 + $0x10] sm:$0xf]
      %v2846 = vld [vmem:[%s2840 + $0x14] sm:$0xf]
      %v2847 = vld [vmem:[%s2840 + $0x18] sm:$0xf]
      %v2848 = vld [vmem:[%s2840 + $0x1c] sm:$0xf]
      %v2849 = vld [vmem:[%s2840 + $0x20] sm:$0xf]
      %v2850 = vld [vmem:[%s2840 + $0x24] sm:$0xf]
      %v2851 = vld [vmem:[%s2840 + $0x28] sm:$0xf]
      %v2852 = vld [vmem:[%s2840 + $0x2c] sm:$0xf]
      %v2865 = vunpack.c.l.b16 %v2841
      %v2866 = vunpack.c.l.b16 %v2842
      %v2867 = vunpack.c.l.b16 %v2843
      %v2868 = vunpack.c.l.b16 %v2844
      %v2869 = vunpack.c.l.b16 %v2845
      %v2870 = vunpack.c.l.b16 %v2846
      %v2871 = vunpack.c.l.b16 %v2847
      %v2872 = vunpack.c.l.b16 %v2848
      %v2873 = vunpack.c.l.b16 %v2849
      %v2874 = vunpack.c.l.b16 %v2850
      %v2875 = vunpack.c.l.b16 %v2851
      %v2876 = vunpack.c.l.b16 %v2852
      %v2877 = vpack.c.b16 %v2866, %v2865
      %v2878 = vpack.c.b16 %v2868, %v2867
      %v2879 = vpack.c.b16 %v2870, %v2869
      %v2880 = vpack.c.b16 %v2872, %v2871
      %v2881 = vpack.c.b16 %v2874, %v2873
      %v2882 = vpack.c.b16 %v2876, %v2875
      %v2890 = vsel %vm2071, %v2810, 0
      %v2893 = vsel %vm2071, %v2811, 0
      %v2896 = vsel %vm2071, %v2812, 0
      %v2899 = vsel %vm2071, %v2813, 0
      %v2902 = vsel %vm2071, %v2814, 0
      %v2905 = vsel %vm2071, %v2815, 0
      %v2908 = vsel %vm2071, %v2816, 0
      %v2911 = vsel %vm2071, %v2817, 0
      %v2914 = vsel %vm2071, %v2818, 0
      %v2917 = vsel %vm2071, %v2819, 0
      %v2920 = vsel %vm2071, %v2820, 0
      %v2923 = vsel %vm2071, %v2821, 0
      %v2926 = vsel %vm2071, %v2822, 0
      %v2929 = vsel %vm2071, %v2823, 0
      %v2932 = vsel %vm2071, %v2824, 0
      %v2935 = vsel %vm2071, %v2825, 0
      %v2938 = vsel %vm2071, %v2826, 0
      %v2941 = vsel %vm2071, %v2827, 0
      %v2944 = vsel %vm2071, %v2828, 0
      %v2947 = vsel %vm2071, %v2829, 0
      %v2950 = vsel %vm2071, %v2830, 0
      %v2953 = vsel %vm2071, %v2831, 0
      %v2956 = vsel %vm2071, %v2832, 0
      %v2959 = vsel %vm2071, %v2833, 0
      %v2962 = vsel %vm2071, %v2834, 0
      %v2965 = vsel %vm2071, %v2835, 0
      %v2968 = vsel %vm2071, %v2836, 0
      %v2971 = vsel %vm2071, %v2837, 0
      %v2974 = vsel %vm2071, %v2838, 0
      %v2977 = vsel %vm2071, %v2839, 0
      %2979 = vmatprep.subr.bf16.mxu0 0
      %2980 = vmatpush1.bf16.msra.mxu0 0
      %2981 = vmatprep.subr.bf16.mxu0 0
      %2982 = vmatpush1.bf16.msra.mxu0 0
      %2983 = vmatprep.subr.bf16.mxu0 0
      %2984 = vmatpush1.bf16.msra.mxu0 %v2882
      %2985 = vmatprep.subr.bf16.mxu0 0
      %2986 = vmatpush1.bf16.msra.mxu0 %v2881
      %2987 = vmatprep.subr.bf16.mxu0 0
      %2988 = vmatpush1.bf16.msra.mxu0 %v2880
      %2989 = vmatprep.subr.bf16.mxu0 0
      %2990 = vmatpush1.bf16.msra.mxu0 %v2879
      %2991 = vmatprep.subr.bf16.mxu0 0
      %2992 = vmatpush1.bf16.msra.mxu0 %v2878
      %2993 = vmatprep.subr.bf16.mxu0 0
      %2994 = vmatpush1.bf16.msra.mxu0 %v2877
      %2995 = vmatprep.subr.bf16.mxu0 0
      %2996 = vmatpush2.bf16.msra.mxu0 0
      %2997 = vmatprep.subr.bf16.mxu0 0
      %2998 = vmatpush2.bf16.msra.mxu0 0
      %2999 = vmatprep.subr.bf16.mxu0 0
      %3000 = vmatpush2.bf16.msra.mxu0 0
      %3001 = vmatprep.subr.bf16.mxu0 0
      %3002 = vmatpush2.bf16.msra.mxu0 0
      %3003 = vmatprep.subr.bf16.mxu0 0
      %3004 = vmatpush2.bf16.msra.mxu0 0
      %3005 = vmatprep.subr.bf16.mxu0 0
      %3006 = vmatpush2.bf16.msra.mxu0 0
      %3007 = vmatprep.subr.bf16.mxu0 0
      %3008 = vmatpush2.bf16.msra.mxu0 0
      %3009 = vmatprep.subr.bf16.mxu0 0
      %3010 = vmatpush2.bf16.msra.mxu0 0
      %3011 = vmatprep.mubr.bf16.mxu0 0
      %3012 = vmatmul.mubr.bf16.gmra.mxu0 %v2890
      %v3013 = vpop.f32.mrf.mxu0
      %v3014 = vadd.f32 0.0, %v3013
      %v3015 = vpop.f32.mrf.mxu0
      %v3016 = vpop.f32.mrf.mxu0
      %v3017 = vadd.f32 0.0, %v3016
      %v3018 = vpop.f32.mrf.mxu0
      %3019 = vmatprep.mubr.bf16.mxu0 0
      %3020 = vmatmul.mubr.bf16.gmra.mxu0 %v2893
      %v3021 = vpop.f32.mrf.mxu0
      %v3022 = vadd.f32 0.0, %v3021
      %v3023 = vpop.f32.mrf.mxu0
      %v3024 = vpop.f32.mrf.mxu0
      %v3025 = vadd.f32 0.0, %v3024
      %v3026 = vpop.f32.mrf.mxu0
      %3027 = vmatprep.mubr.bf16.mxu0 0
      %3028 = vmatmul.mubr.bf16.gmra.mxu0 %v2896
      %v3029 = vpop.f32.mrf.mxu0
      %v3030 = vadd.f32 0.0, %v3029
      %v3031 = vpop.f32.mrf.mxu0
      %v3032 = vpop.f32.mrf.mxu0
      %v3033 = vadd.f32 0.0, %v3032
      %v3034 = vpop.f32.mrf.mxu0
      %3035 = vmatprep.mubr.bf16.mxu0 0
      %3036 = vmatmul.mubr.bf16.gmra.mxu0 %v2899
      %v3037 = vpop.f32.mrf.mxu0
      %v3038 = vadd.f32 0.0, %v3037
      %v3039 = vpop.f32.mrf.mxu0
      %v3040 = vpop.f32.mrf.mxu0
      %v3041 = vadd.f32 0.0, %v3040
      %v3042 = vpop.f32.mrf.mxu0
      %3043 = vmatprep.mubr.bf16.mxu0 0
      %3044 = vmatmul.mubr.bf16.gmra.mxu0 %v2902
      %v3045 = vpop.f32.mrf.mxu0
      %v3046 = vadd.f32 0.0, %v3045
      %v3047 = vpop.f32.mrf.mxu0
      %v3048 = vpop.f32.mrf.mxu0
      %v3049 = vadd.f32 0.0, %v3048
      %v3050 = vpop.f32.mrf.mxu0
      %3051 = vmatprep.mubr.bf16.mxu0 0
      %3052 = vmatmul.mubr.bf16.gmra.mxu0 %v2905
      %v3053 = vpop.f32.mrf.mxu0
      %v3054 = vadd.f32 0.0, %v3053
      %v3055 = vpop.f32.mrf.mxu0
      %v3056 = vpop.f32.mrf.mxu0
      %v3057 = vadd.f32 0.0, %v3056
      %v3058 = vpop.f32.mrf.mxu0
      %3059 = vmatprep.mubr.bf16.mxu0 0
      %3060 = vmatmul.mubr.bf16.gmra.mxu0 %v2908
      %v3061 = vpop.f32.mrf.mxu0
      %v3062 = vadd.f32 0.0, %v3061
      %v3063 = vpop.f32.mrf.mxu0
      %v3064 = vpop.f32.mrf.mxu0
      %v3065 = vadd.f32 0.0, %v3064
      %v3066 = vpop.f32.mrf.mxu0
      %3067 = vmatprep.mubr.bf16.mxu0 0
      %3068 = vmatmul.mubr.bf16.gmra.mxu0 %v2911
      %v3069 = vpop.f32.mrf.mxu0
      %v3070 = vadd.f32 0.0, %v3069
      %v3071 = vpop.f32.mrf.mxu0
      %v3072 = vpop.f32.mrf.mxu0
      %v3073 = vadd.f32 0.0, %v3072
      %v3074 = vpop.f32.mrf.mxu0
      %3075 = vmatprep.mubr.bf16.mxu0 0
      %3076 = vmatmul.mubr.bf16.gmra.mxu0 %v2914
      %v3077 = vpop.f32.mrf.mxu0
      %v3078 = vadd.f32 0.0, %v3077
      %v3079 = vpop.f32.mrf.mxu0
      %v3080 = vpop.f32.mrf.mxu0
      %v3081 = vadd.f32 0.0, %v3080
      %v3082 = vpop.f32.mrf.mxu0
      %3083 = vmatprep.mubr.bf16.mxu0 0
      %3084 = vmatmul.mubr.bf16.gmra.mxu0 %v2917
      %v3085 = vpop.f32.mrf.mxu0
      %v3086 = vadd.f32 0.0, %v3085
      %v3087 = vpop.f32.mrf.mxu0
      %v3088 = vpop.f32.mrf.mxu0
      %v3089 = vadd.f32 0.0, %v3088
      %v3090 = vpop.f32.mrf.mxu0
      %3091 = vmatprep.mubr.bf16.mxu0 0
      %3092 = vmatmul.mubr.bf16.gmra.mxu0 %v2920
      %v3093 = vpop.f32.mrf.mxu0
      %v3094 = vadd.f32 0.0, %v3093
      %v3095 = vpop.f32.mrf.mxu0
      %v3096 = vpop.f32.mrf.mxu0
      %v3097 = vadd.f32 0.0, %v3096
      %v3098 = vpop.f32.mrf.mxu0
      %3099 = vmatprep.mubr.bf16.mxu0 0
      %3100 = vmatmul.mubr.bf16.gmra.mxu0 %v2923
      %v3101 = vpop.f32.mrf.mxu0
      %v3102 = vadd.f32 0.0, %v3101
      %v3103 = vpop.f32.mrf.mxu0
      %v3104 = vpop.f32.mrf.mxu0
      %v3105 = vadd.f32 0.0, %v3104
      %v3106 = vpop.f32.mrf.mxu0
      %3107 = vmatprep.mubr.bf16.mxu0 0
      %3108 = vmatmul.mubr.bf16.gmra.mxu0 %v2926
      %v3109 = vpop.f32.mrf.mxu0
      %v3110 = vadd.f32 0.0, %v3109
      %v3111 = vpop.f32.mrf.mxu0
      %v3112 = vpop.f32.mrf.mxu0
      %v3113 = vadd.f32 0.0, %v3112
      %v3114 = vpop.f32.mrf.mxu0
      %3115 = vmatprep.mubr.bf16.mxu0 0
      %3116 = vmatmul.mubr.bf16.gmra.mxu0 %v2929
      %v3117 = vpop.f32.mrf.mxu0
      %v3118 = vadd.f32 0.0, %v3117
      %v3119 = vpop.f32.mrf.mxu0
      %v3120 = vpop.f32.mrf.mxu0
      %v3121 = vadd.f32 0.0, %v3120
      %v3122 = vpop.f32.mrf.mxu0
      %3123 = vmatprep.mubr.bf16.mxu0 0
      %3124 = vmatmul.mubr.bf16.gmra.mxu0 %v2932
      %v3125 = vpop.f32.mrf.mxu0
      %v3126 = vadd.f32 0.0, %v3125
      %v3127 = vpop.f32.mrf.mxu0
      %v3128 = vpop.f32.mrf.mxu0
      %v3129 = vadd.f32 0.0, %v3128
      %v3130 = vpop.f32.mrf.mxu0
      %3131 = vmatprep.mubr.bf16.mxu0 0
      %3132 = vmatmul.mubr.bf16.gmra.mxu0 %v2935
      %v3133 = vpop.f32.mrf.mxu0
      %v3134 = vadd.f32 0.0, %v3133
      %v3135 = vpop.f32.mrf.mxu0
      %v3136 = vpop.f32.mrf.mxu0
      %v3137 = vadd.f32 0.0, %v3136
      %v3138 = vpop.f32.mrf.mxu0
      %3139 = vmatprep.mubr.bf16.mxu0 0
      %3140 = vmatmul.mubr.bf16.gmra.mxu0 %v2938
      %v3141 = vpop.f32.mrf.mxu0
      %v3142 = vadd.f32 0.0, %v3141
      %v3143 = vpop.f32.mrf.mxu0
      %v3144 = vpop.f32.mrf.mxu0
      %v3145 = vadd.f32 0.0, %v3144
      %v3146 = vpop.f32.mrf.mxu0
      %3147 = vmatprep.mubr.bf16.mxu0 0
      %3148 = vmatmul.mubr.bf16.gmra.mxu0 %v2941
      %v3149 = vpop.f32.mrf.mxu0
      %v3150 = vadd.f32 0.0, %v3149
      %v3151 = vpop.f32.mrf.mxu0
      %v3152 = vpop.f32.mrf.mxu0
      %v3153 = vadd.f32 0.0, %v3152
      %v3154 = vpop.f32.mrf.mxu0
      %3155 = vmatprep.mubr.bf16.mxu0 0
      %3156 = vmatmul.mubr.bf16.gmra.mxu0 %v2944
      %v3157 = vpop.f32.mrf.mxu0
      %v3158 = vadd.f32 0.0, %v3157
      %v3159 = vpop.f32.mrf.mxu0
      %v3160 = vpop.f32.mrf.mxu0
      %v3161 = vadd.f32 0.0, %v3160
      %v3162 = vpop.f32.mrf.mxu0
      %3163 = vmatprep.mubr.bf16.mxu0 0
      %3164 = vmatmul.mubr.bf16.gmra.mxu0 %v2947
      %v3165 = vpop.f32.mrf.mxu0
      %v3166 = vadd.f32 0.0, %v3165
      %v3167 = vpop.f32.mrf.mxu0
      %v3168 = vpop.f32.mrf.mxu0
      %v3169 = vadd.f32 0.0, %v3168
      %v3170 = vpop.f32.mrf.mxu0
      %3171 = vmatprep.mubr.bf16.mxu0 0
      %3172 = vmatmul.mubr.bf16.gmra.mxu0 %v2950
      %v3173 = vpop.f32.mrf.mxu0
      %v3174 = vadd.f32 0.0, %v3173
      %v3175 = vpop.f32.mrf.mxu0
      %v3176 = vpop.f32.mrf.mxu0
      %v3177 = vadd.f32 0.0, %v3176
      %v3178 = vpop.f32.mrf.mxu0
      %3179 = vmatprep.mubr.bf16.mxu0 0
      %3180 = vmatmul.mubr.bf16.gmra.mxu0 %v2953
      %v3181 = vpop.f32.mrf.mxu0
      %v3182 = vadd.f32 0.0, %v3181
      %v3183 = vpop.f32.mrf.mxu0
      %v3184 = vpop.f32.mrf.mxu0
      %v3185 = vadd.f32 0.0, %v3184
      %v3186 = vpop.f32.mrf.mxu0
      %3187 = vmatprep.mubr.bf16.mxu0 0
      %3188 = vmatmul.mubr.bf16.gmra.mxu0 %v2956
      %v3189 = vpop.f32.mrf.mxu0
      %v3190 = vadd.f32 0.0, %v3189
      %v3191 = vpop.f32.mrf.mxu0
      %v3192 = vpop.f32.mrf.mxu0
      %v3193 = vadd.f32 0.0, %v3192
      %v3194 = vpop.f32.mrf.mxu0
      %3195 = vmatprep.mubr.bf16.mxu0 0
      %3196 = vmatmul.mubr.bf16.gmra.mxu0 %v2959
      %v3197 = vpop.f32.mrf.mxu0
      %v3198 = vadd.f32 0.0, %v3197
      %v3199 = vpop.f32.mrf.mxu0
      %v3200 = vpop.f32.mrf.mxu0
      %v3201 = vadd.f32 0.0, %v3200
      %v3202 = vpop.f32.mrf.mxu0
      %3203 = vmatprep.mubr.bf16.mxu0 0
      %3204 = vmatmul.mubr.bf16.gmra.mxu0 %v2962
      %v3205 = vpop.f32.mrf.mxu0
      %v3206 = vadd.f32 0.0, %v3205
      %v3207 = vpop.f32.mrf.mxu0
      %v3208 = vpop.f32.mrf.mxu0
      %v3209 = vadd.f32 0.0, %v3208
      %v3210 = vpop.f32.mrf.mxu0
      %3211 = vmatprep.mubr.bf16.mxu0 0
      %3212 = vmatmul.mubr.bf16.gmra.mxu0 %v2965
      %v3213 = vpop.f32.mrf.mxu0
      %v3214 = vadd.f32 0.0, %v3213
      %v3215 = vpop.f32.mrf.mxu0
      %v3216 = vpop.f32.mrf.mxu0
      %v3217 = vadd.f32 0.0, %v3216
      %v3218 = vpop.f32.mrf.mxu0
      %3219 = vmatprep.mubr.bf16.mxu0 0
      %3220 = vmatmul.mubr.bf16.gmra.mxu0 %v2968
      %v3221 = vpop.f32.mrf.mxu0
      %v3222 = vadd.f32 0.0, %v3221
      %v3223 = vpop.f32.mrf.mxu0
      %v3224 = vpop.f32.mrf.mxu0
      %v3225 = vadd.f32 0.0, %v3224
      %v3226 = vpop.f32.mrf.mxu0
      %3227 = vmatprep.mubr.bf16.mxu0 0
      %3228 = vmatmul.mubr.bf16.gmra.mxu0 %v2971
      %v3229 = vpop.f32.mrf.mxu0
      %v3230 = vadd.f32 0.0, %v3229
      %v3231 = vpop.f32.mrf.mxu0
      %v3232 = vpop.f32.mrf.mxu0
      %v3233 = vadd.f32 0.0, %v3232
      %v3234 = vpop.f32.mrf.mxu0
      %3235 = vmatprep.mubr.bf16.mxu0 0
      %3236 = vmatmul.mubr.bf16.gmra.mxu0 %v2974
      %v3237 = vpop.f32.mrf.mxu0
      %v3238 = vadd.f32 0.0, %v3237
      %v3239 = vpop.f32.mrf.mxu0
      %v3240 = vpop.f32.mrf.mxu0
      %v3241 = vadd.f32 0.0, %v3240
      %v3242 = vpop.f32.mrf.mxu0
      %3243 = vmatprep.mubr.bf16.mxu0 0
      %3244 = vmatmul.mubr.bf16.gmra.mxu0 %v2977
      %v3245 = vpop.f32.mrf.mxu0
      %v3246 = vadd.f32 0.0, %v3245
      %v3247 = vpop.f32.mrf.mxu0
      %v3248 = vpop.f32.mrf.mxu0
      %v3249 = vadd.f32 0.0, %v3248
      %v3250 = vpop.f32.mrf.mxu0
      %3251 = vdwg.mxu0
      %v3252 = vadd.f32 %v2512, %v3014
      %v3253 = vadd.f32 %v2515, %v3017
      %v3254 = vadd.f32 %v2520, %v3022
      %v3255 = vadd.f32 %v2523, %v3025
      %v3256 = vadd.f32 %v2528, %v3030
      %v3257 = vadd.f32 %v2531, %v3033
      %v3258 = vadd.f32 %v2536, %v3038
      %v3259 = vadd.f32 %v2539, %v3041
      %v3260 = vadd.f32 %v2544, %v3046
      %v3261 = vadd.f32 %v2547, %v3049
      %v3262 = vadd.f32 %v2552, %v3054
      %v3263 = vadd.f32 %v2555, %v3057
      %v3264 = vadd.f32 %v2560, %v3062
      %v3265 = vadd.f32 %v2563, %v3065
      %v3266 = vadd.f32 %v2568, %v3070
      %v3267 = vadd.f32 %v2571, %v3073
      %v3268 = vadd.f32 %v2576, %v3078
      %v3269 = vadd.f32 %v2579, %v3081
      %v3270 = vadd.f32 %v2584, %v3086
      %v3271 = vadd.f32 %v2587, %v3089
      %v3272 = vadd.f32 %v2592, %v3094
      %v3273 = vadd.f32 %v2595, %v3097
      %v3274 = vadd.f32 %v2600, %v3102
      %v3275 = vadd.f32 %v2603, %v3105
      %v3276 = vadd.f32 %v2608, %v3110
      %v3277 = vadd.f32 %v2611, %v3113
      %v3278 = vadd.f32 %v2616, %v3118
      %v3279 = vadd.f32 %v2619, %v3121
      %v3280 = vadd.f32 %v2624, %v3126
      %v3281 = vadd.f32 %v2627, %v3129
      %v3282 = vadd.f32 %v2632, %v3134
      %v3283 = vadd.f32 %v2635, %v3137
      %v3284 = vadd.f32 %v2640, %v3142
      %v3285 = vadd.f32 %v2643, %v3145
      %v3286 = vadd.f32 %v2648, %v3150
      %v3287 = vadd.f32 %v2651, %v3153
      %v3288 = vadd.f32 %v2656, %v3158
      %v3289 = vadd.f32 %v2659, %v3161
      %v3290 = vadd.f32 %v2664, %v3166
      %v3291 = vadd.f32 %v2667, %v3169
      %v3292 = vadd.f32 %v2672, %v3174
      %v3293 = vadd.f32 %v2675, %v3177
      %v3294 = vadd.f32 %v2680, %v3182
      %v3295 = vadd.f32 %v2683, %v3185
      %v3296 = vadd.f32 %v2688, %v3190
      %v3297 = vadd.f32 %v2691, %v3193
      %v3298 = vadd.f32 %v2696, %v3198
      %v3299 = vadd.f32 %v2699, %v3201
      %v3300 = vadd.f32 %v2704, %v3206
      %v3301 = vadd.f32 %v2707, %v3209
      %v3302 = vadd.f32 %v2712, %v3214
      %v3303 = vadd.f32 %v2715, %v3217
      %v3304 = vadd.f32 %v2720, %v3222
      %v3305 = vadd.f32 %v2723, %v3225
      %v3306 = vadd.f32 %v2728, %v3230
      %v3307 = vadd.f32 %v2731, %v3233
      %v3308 = vadd.f32 %v2736, %v3238
      %v3309 = vadd.f32 %v2739, %v3241
      %v3310 = vadd.f32 %v2744, %v3246
      %v3311 = vadd.f32 %v2747, %v3249
      %v3312 = vlaneseq
      %v3313 = vshrl.u32 %v3312, 7
      %v3314 = vadd.s32 %v3313, 8
      %v3315 = vadd.s32 %v3313, 16
      %v3316 = vadd.s32 %v3313, 24
      %v3317 = vadd.s32 %v3313, 32
      %v3318 = vadd.s32 %v3313, 40
      %v3319 = vadd.s32 %v3313, 48
      %v3320 = vadd.s32 %v3313, 56
      %v3321 = vadd.s32 %v3313, 64
      %v3322 = vadd.s32 %v3313, 72
      %v3323 = vadd.s32 %v3313, 80
      %v3324 = vadd.s32 %v3313, 88
      %v3325 = vadd.s32 %v3313, 96
      %v3326 = vadd.s32 %v3313, 104
      %v3327 = vadd.s32 %v3313, 112
      %v3328 = vadd.s32 %v3313, 120
      %v3329 = vadd.s32 %v3313, 128
      %v3330 = vadd.s32 %v3313, 136
      %v3331 = vadd.s32 %v3313, 144
      %v3332 = vadd.s32 %v3313, 152
      %v3333 = vadd.s32 %v3313, 160
      %v3334 = vadd.s32 %v3313, 168
      %v3335 = vadd.s32 %v3313, 176
      %v3336 = vadd.s32 %v3313, 184
      %v3337 = vadd.s32 %v3313, 192
      %v3338 = vadd.s32 %v3313, 200
      %v3339 = vadd.s32 %v3313, 208
      %v3340 = vadd.s32 %v3313, 216
      %v3341 = vadd.s32 %v3313, 224
      %v3342 = vadd.s32 %v3313, 232
      %v3343 = vadd.s32 %v3313, 240
      %v3344 = vadd.s32 %v3313, 248
      %v3345 = vadd.s32 %v3313, 256
      %v3346 = vadd.s32 %v3313, 264
      %v3347 = vadd.s32 %v3313, 272
      %v3348 = vadd.s32 %v3313, 280
      %v3349 = vadd.s32 %v3313, 288
      %v3350 = vadd.s32 %v3313, 296
      %v3351 = vadd.s32 %v3313, 304
      %v3352 = vadd.s32 %v3313, 312
      %v3353 = vadd.s32 %v3313, 320
      %v3354 = vadd.s32 %v3313, 328
      %v3355 = vadd.s32 %v3313, 336
      %v3356 = vadd.s32 %v3313, 344
      %v3357 = vadd.s32 %v3313, 352
      %v3358 = vadd.s32 %v3313, 360
      %v3359 = vadd.s32 %v3313, 368
      %v3360 = vadd.s32 %v3313, 376
      %v3361 = vadd.s32 %v3313, 384
      %v3362 = vadd.s32 %v3313, 392
      %v3363 = vadd.s32 %v3313, 400
      %v3364 = vadd.s32 %v3313, 408
      %v3365 = vadd.s32 %v3313, 416
      %v3366 = vadd.s32 %v3313, 424
      %v3367 = vadd.s32 %v3313, 432
      %v3368 = vadd.s32 %v3313, 440
      %v3369 = vadd.s32 %v3313, 448
      %v3370 = vadd.s32 %v3313, 456
      %v3371 = vadd.s32 %v3313, 464
      %v3372 = vadd.s32 %v3313, 472
      %v3373 = vand.u32 %v3313, 31
      %v3374 = vand.u32 %v3314, 31
      %v3375 = vand.u32 %v3315, 31
      %v3376 = vand.u32 %v3316, 31
      %v3377 = vand.u32 %v3317, 31
      %v3378 = vand.u32 %v3318, 31
      %v3379 = vand.u32 %v3319, 31
      %v3380 = vand.u32 %v3320, 31
      %v3381 = vand.u32 %v3321, 31
      %v3382 = vand.u32 %v3322, 31
      %v3383 = vand.u32 %v3323, 31
      %v3384 = vand.u32 %v3324, 31
      %v3385 = vand.u32 %v3325, 31
      %v3386 = vand.u32 %v3326, 31
      %v3387 = vand.u32 %v3327, 31
      %v3388 = vand.u32 %v3328, 31
      %v3389 = vand.u32 %v3329, 31
      %v3390 = vand.u32 %v3330, 31
      %v3391 = vand.u32 %v3331, 31
      %v3392 = vand.u32 %v3332, 31
      %v3393 = vand.u32 %v3333, 31
      %v3394 = vand.u32 %v3334, 31
      %v3395 = vand.u32 %v3335, 31
      %v3396 = vand.u32 %v3336, 31
      %v3397 = vand.u32 %v3337, 31
      %v3398 = vand.u32 %v3338, 31
      %v3399 = vand.u32 %v3339, 31
      %v3400 = vand.u32 %v3340, 31
      %v3401 = vand.u32 %v3341, 31
      %v3402 = vand.u32 %v3342, 31
      %v3403 = vand.u32 %v3343, 31
      %v3404 = vand.u32 %v3344, 31
      %v3405 = vand.u32 %v3345, 31
      %v3406 = vand.u32 %v3346, 31
      %v3407 = vand.u32 %v3347, 31
      %v3408 = vand.u32 %v3348, 31
      %v3409 = vand.u32 %v3349, 31
      %v3410 = vand.u32 %v3350, 31
      %v3411 = vand.u32 %v3351, 31
      %v3412 = vand.u32 %v3352, 31
      %v3413 = vand.u32 %v3353, 31
      %v3414 = vand.u32 %v3354, 31
      %v3415 = vand.u32 %v3355, 31
      %v3416 = vand.u32 %v3356, 31
      %v3417 = vand.u32 %v3357, 31
      %v3418 = vand.u32 %v3358, 31
      %v3419 = vand.u32 %v3359, 31
      %v3420 = vand.u32 %v3360, 31
      %v3421 = vand.u32 %v3361, 31
      %v3422 = vand.u32 %v3362, 31
      %v3423 = vand.u32 %v3363, 31
      %v3424 = vand.u32 %v3364, 31
      %v3425 = vand.u32 %v3365, 31
      %v3426 = vand.u32 %v3366, 31
      %v3427 = vand.u32 %v3367, 31
      %v3428 = vand.u32 %v3368, 31
      %v3429 = vand.u32 %v3369, 31
      %v3430 = vand.u32 %v3370, 31
      %v3431 = vand.u32 %v3371, 31
      %v3432 = vand.u32 %v3372, 31
      %vm3433 = vcmp.lt.s32.totalorder %v3373, 15
      %vm3434 = vcmp.lt.s32.totalorder %v3374, 15
      %vm3435 = vcmp.lt.s32.totalorder %v3375, 15
      %vm3436 = vcmp.lt.s32.totalorder %v3376, 15
      %vm3437 = vcmp.lt.s32.totalorder %v3377, 15
      %vm3438 = vcmp.lt.s32.totalorder %v3378, 15
      %vm3439 = vcmp.lt.s32.totalorder %v3379, 15
      %vm3440 = vcmp.lt.s32.totalorder %v3380, 15
      %vm3441 = vcmp.lt.s32.totalorder %v3381, 15
      %vm3442 = vcmp.lt.s32.totalorder %v3382, 15
      %vm3443 = vcmp.lt.s32.totalorder %v3383, 15
      %vm3444 = vcmp.lt.s32.totalorder %v3384, 15
      %vm3445 = vcmp.lt.s32.totalorder %v3385, 15
      %vm3446 = vcmp.lt.s32.totalorder %v3386, 15
      %vm3447 = vcmp.lt.s32.totalorder %v3387, 15
      %vm3448 = vcmp.lt.s32.totalorder %v3388, 15
      %vm3449 = vcmp.lt.s32.totalorder %v3389, 15
      %vm3450 = vcmp.lt.s32.totalorder %v3390, 15
      %vm3451 = vcmp.lt.s32.totalorder %v3391, 15
      %vm3452 = vcmp.lt.s32.totalorder %v3392, 15
      %vm3453 = vcmp.lt.s32.totalorder %v3393, 15
      %vm3454 = vcmp.lt.s32.totalorder %v3394, 15
      %vm3455 = vcmp.lt.s32.totalorder %v3395, 15
      %vm3456 = vcmp.lt.s32.totalorder %v3396, 15
      %vm3457 = vcmp.lt.s32.totalorder %v3397, 15
      %vm3458 = vcmp.lt.s32.totalorder %v3398, 15
      %vm3459 = vcmp.lt.s32.totalorder %v3399, 15
      %vm3460 = vcmp.lt.s32.totalorder %v3400, 15
      %vm3461 = vcmp.lt.s32.totalorder %v3401, 15
      %vm3462 = vcmp.lt.s32.totalorder %v3402, 15
      %vm3463 = vcmp.lt.s32.totalorder %v3403, 15
      %vm3464 = vcmp.lt.s32.totalorder %v3404, 15
      %vm3465 = vcmp.lt.s32.totalorder %v3405, 15
      %vm3466 = vcmp.lt.s32.totalorder %v3406, 15
      %vm3467 = vcmp.lt.s32.totalorder %v3407, 15
      %vm3468 = vcmp.lt.s32.totalorder %v3408, 15
      %vm3469 = vcmp.lt.s32.totalorder %v3409, 15
      %vm3470 = vcmp.lt.s32.totalorder %v3410, 15
      %vm3471 = vcmp.lt.s32.totalorder %v3411, 15
      %vm3472 = vcmp.lt.s32.totalorder %v3412, 15
      %vm3473 = vcmp.lt.s32.totalorder %v3413, 15
      %vm3474 = vcmp.lt.s32.totalorder %v3414, 15
      %vm3475 = vcmp.lt.s32.totalorder %v3415, 15
      %vm3476 = vcmp.lt.s32.totalorder %v3416, 15
      %vm3477 = vcmp.lt.s32.totalorder %v3417, 15
      %vm3478 = vcmp.lt.s32.totalorder %v3418, 15
      %vm3479 = vcmp.lt.s32.totalorder %v3419, 15
      %vm3480 = vcmp.lt.s32.totalorder %v3420, 15
      %vm3481 = vcmp.lt.s32.totalorder %v3421, 15
      %vm3482 = vcmp.lt.s32.totalorder %v3422, 15
      %vm3483 = vcmp.lt.s32.totalorder %v3423, 15
      %vm3484 = vcmp.lt.s32.totalorder %v3424, 15
      %vm3485 = vcmp.lt.s32.totalorder %v3425, 15
      %vm3486 = vcmp.lt.s32.totalorder %v3426, 15
      %vm3487 = vcmp.lt.s32.totalorder %v3427, 15
      %vm3488 = vcmp.lt.s32.totalorder %v3428, 15
      %vm3489 = vcmp.lt.s32.totalorder %v3429, 15
      %vm3490 = vcmp.lt.s32.totalorder %v3430, 15
      %vm3491 = vcmp.lt.s32.totalorder %v3431, 15
      %vm3492 = vcmp.lt.s32.totalorder %v3432, 15
      %v3493 = vld [vmem:[%s5] sm:$0x1]
      %v3495 = vlaneseq
      %v3496 = vshrl.u32 %v3495, 7
      %v3497 = vsub.s32 0, %v3496
      %v3498 = vrot.slane %v3493, %v3497
      %v3500 = vadd.f32 %v3252, %v3498
      %v3501 = vadd.f32 %v3253, %v3498
      %v3502 = vadd.f32 %v3254, %v3498
      %v3503 = vadd.f32 %v3255, %v3498
      %v3504 = vadd.f32 %v3256, %v3498
      %v3505 = vadd.f32 %v3257, %v3498
      %v3506 = vadd.f32 %v3258, %v3498
      %v3507 = vadd.f32 %v3259, %v3498
      %v3508 = vadd.f32 %v3260, %v3498
      %v3509 = vadd.f32 %v3261, %v3498
      %v3510 = vadd.f32 %v3262, %v3498
      %v3511 = vadd.f32 %v3263, %v3498
      %v3512 = vadd.f32 %v3264, %v3498
      %v3513 = vadd.f32 %v3265, %v3498
      %v3514 = vadd.f32 %v3266, %v3498
      %v3515 = vadd.f32 %v3267, %v3498
      %v3516 = vadd.f32 %v3268, %v3498
      %v3517 = vadd.f32 %v3269, %v3498
      %v3518 = vadd.f32 %v3270, %v3498
      %v3519 = vadd.f32 %v3271, %v3498
      %v3520 = vadd.f32 %v3272, %v3498
      %v3521 = vadd.f32 %v3273, %v3498
      %v3522 = vadd.f32 %v3274, %v3498
      %v3523 = vadd.f32 %v3275, %v3498
      %v3524 = vadd.f32 %v3276, %v3498
      %v3525 = vadd.f32 %v3277, %v3498
      %v3526 = vadd.f32 %v3278, %v3498
      %v3527 = vadd.f32 %v3279, %v3498
      %v3528 = vadd.f32 %v3280, %v3498
      %v3529 = vadd.f32 %v3281, %v3498
      %v3530 = vadd.f32 %v3282, %v3498
      %v3531 = vadd.f32 %v3283, %v3498
      %v3532 = vadd.f32 %v3284, %v3498
      %v3533 = vadd.f32 %v3285, %v3498
      %v3534 = vadd.f32 %v3286, %v3498
      %v3535 = vadd.f32 %v3287, %v3498
      %v3536 = vadd.f32 %v3288, %v3498
      %v3537 = vadd.f32 %v3289, %v3498
      %v3538 = vadd.f32 %v3290, %v3498
      %v3539 = vadd.f32 %v3291, %v3498
      %v3540 = vadd.f32 %v3292, %v3498
      %v3541 = vadd.f32 %v3293, %v3498
      %v3542 = vadd.f32 %v3294, %v3498
      %v3543 = vadd.f32 %v3295, %v3498
      %v3544 = vadd.f32 %v3296, %v3498
      %v3545 = vadd.f32 %v3297, %v3498
      %v3546 = vadd.f32 %v3298, %v3498
      %v3547 = vadd.f32 %v3299, %v3498
      %v3548 = vadd.f32 %v3300, %v3498
      %v3549 = vadd.f32 %v3301, %v3498
      %v3550 = vadd.f32 %v3302, %v3498
      %v3551 = vadd.f32 %v3303, %v3498
      %v3552 = vadd.f32 %v3304, %v3498
      %v3553 = vadd.f32 %v3305, %v3498
      %v3554 = vadd.f32 %v3306, %v3498
      %v3555 = vadd.f32 %v3307, %v3498
      %v3556 = vadd.f32 %v3308, %v3498
      %v3557 = vadd.f32 %v3309, %v3498
      %v3558 = vadd.f32 %v3310, %v3498
      %v3559 = vadd.f32 %v3311, %v3498
      %v3560 = vmax.f32 %v3500, 0.0
      %v3561 = vmax.f32 %v3501, 0.0
      %v3562 = vmax.f32 %v3502, 0.0
      %v3563 = vmax.f32 %v3503, 0.0
      %v3564 = vmax.f32 %v3504, 0.0
      %v3565 = vmax.f32 %v3505, 0.0
      %v3566 = vmax.f32 %v3506, 0.0
      %v3567 = vmax.f32 %v3507, 0.0
      %v3568 = vmax.f32 %v3508, 0.0
      %v3569 = vmax.f32 %v3509, 0.0
      %v3570 = vmax.f32 %v3510, 0.0
      %v3571 = vmax.f32 %v3511, 0.0
      %v3572 = vmax.f32 %v3512, 0.0
      %v3573 = vmax.f32 %v3513, 0.0
      %v3574 = vmax.f32 %v3514, 0.0
      %v3575 = vmax.f32 %v3515, 0.0
      %v3576 = vmax.f32 %v3516, 0.0
      %v3577 = vmax.f32 %v3517, 0.0
      %v3578 = vmax.f32 %v3518, 0.0
      %v3579 = vmax.f32 %v3519, 0.0
      %v3580 = vmax.f32 %v3520, 0.0
      %v3581 = vmax.f32 %v3521, 0.0
      %v3582 = vmax.f32 %v3522, 0.0
      %v3583 = vmax.f32 %v3523, 0.0
      %v3584 = vmax.f32 %v3524, 0.0
      %v3585 = vmax.f32 %v3525, 0.0
      %v3586 = vmax.f32 %v3526, 0.0
      %v3587 = vmax.f32 %v3527, 0.0
      %v3588 = vmax.f32 %v3528, 0.0
      %v3589 = vmax.f32 %v3529, 0.0
      %v3590 = vmax.f32 %v3530, 0.0
      %v3591 = vmax.f32 %v3531, 0.0
      %v3592 = vmax.f32 %v3532, 0.0
      %v3593 = vmax.f32 %v3533, 0.0
      %v3594 = vmax.f32 %v3534, 0.0
      %v3595 = vmax.f32 %v3535, 0.0
      %v3596 = vmax.f32 %v3536, 0.0
      %v3597 = vmax.f32 %v3537, 0.0
      %v3598 = vmax.f32 %v3538, 0.0
      %v3599 = vmax.f32 %v3539, 0.0
      %v3600 = vmax.f32 %v3540, 0.0
      %v3601 = vmax.f32 %v3541, 0.0
      %v3602 = vmax.f32 %v3542, 0.0
      %v3603 = vmax.f32 %v3543, 0.0
      %v3604 = vmax.f32 %v3544, 0.0
      %v3605 = vmax.f32 %v3545, 0.0
      %v3606 = vmax.f32 %v3546, 0.0
      %v3607 = vmax.f32 %v3547, 0.0
      %v3608 = vmax.f32 %v3548, 0.0
      %v3609 = vmax.f32 %v3549, 0.0
      %v3610 = vmax.f32 %v3550, 0.0
      %v3611 = vmax.f32 %v3551, 0.0
      %v3612 = vmax.f32 %v3552, 0.0
      %v3613 = vmax.f32 %v3553, 0.0
      %v3614 = vmax.f32 %v3554, 0.0
      %v3615 = vmax.f32 %v3555, 0.0
      %v3616 = vmax.f32 %v3556, 0.0
      %v3617 = vmax.f32 %v3557, 0.0
      %v3618 = vmax.f32 %v3558, 0.0
      %v3619 = vmax.f32 %v3559, 0.0
      %v3620 = vsel %vm3433, %v3560, 0.0
      %v3621 = vsel %vm3434, %v3561, 0.0
      %v3622 = vsel %vm3435, %v3562, 0.0
      %v3623 = vsel %vm3436, %v3563, 0.0
      %v3624 = vsel %vm3437, %v3564, 0.0
      %v3625 = vsel %vm3438, %v3565, 0.0
      %v3626 = vsel %vm3439, %v3566, 0.0
      %v3627 = vsel %vm3440, %v3567, 0.0
      %v3628 = vsel %vm3441, %v3568, 0.0
      %v3629 = vsel %vm3442, %v3569, 0.0
      %v3630 = vsel %vm3443, %v3570, 0.0
      %v3631 = vsel %vm3444, %v3571, 0.0
      %v3632 = vsel %vm3445, %v3572, 0.0
      %v3633 = vsel %vm3446, %v3573, 0.0
      %v3634 = vsel %vm3447, %v3574, 0.0
      %v3635 = vsel %vm3448, %v3575, 0.0
      %v3636 = vsel %vm3449, %v3576, 0.0
      %v3637 = vsel %vm3450, %v3577, 0.0
      %v3638 = vsel %vm3451, %v3578, 0.0
      %v3639 = vsel %vm3452, %v3579, 0.0
      %v3640 = vsel %vm3453, %v3580, 0.0
      %v3641 = vsel %vm3454, %v3581, 0.0
      %v3642 = vsel %vm3455, %v3582, 0.0
      %v3643 = vsel %vm3456, %v3583, 0.0
      %v3644 = vsel %vm3457, %v3584, 0.0
      %v3645 = vsel %vm3458, %v3585, 0.0
      %v3646 = vsel %vm3459, %v3586, 0.0
      %v3647 = vsel %vm3460, %v3587, 0.0
      %v3648 = vsel %vm3461, %v3588, 0.0
      %v3649 = vsel %vm3462, %v3589, 0.0
      %v3650 = vsel %vm3463, %v3590, 0.0
      %v3651 = vsel %vm3464, %v3591, 0.0
      %v3652 = vsel %vm3465, %v3592, 0.0
      %v3653 = vsel %vm3466, %v3593, 0.0
      %v3654 = vsel %vm3467, %v3594, 0.0
      %v3655 = vsel %vm3468, %v3595, 0.0
      %v3656 = vsel %vm3469, %v3596, 0.0
      %v3657 = vsel %vm3470, %v3597, 0.0
      %v3658 = vsel %vm3471, %v3598, 0.0
      %v3659 = vsel %vm3472, %v3599, 0.0
      %v3660 = vsel %vm3473, %v3600, 0.0
      %v3661 = vsel %vm3474, %v3601, 0.0
      %v3662 = vsel %vm3475, %v3602, 0.0
      %v3663 = vsel %vm3476, %v3603, 0.0
      %v3664 = vsel %vm3477, %v3604, 0.0
      %v3665 = vsel %vm3478, %v3605, 0.0
      %v3666 = vsel %vm3479, %v3606, 0.0
      %v3667 = vsel %vm3480, %v3607, 0.0
      %v3668 = vsel %vm3481, %v3608, 0.0
      %v3669 = vsel %vm3482, %v3609, 0.0
      %v3670 = vsel %vm3483, %v3610, 0.0
      %v3671 = vsel %vm3484, %v3611, 0.0
      %v3672 = vsel %vm3485, %v3612, 0.0
      %v3673 = vsel %vm3486, %v3613, 0.0
      %v3674 = vsel %vm3487, %v3614, 0.0
      %v3675 = vsel %vm3488, %v3615, 0.0
      %v3676 = vsel %vm3489, %v3616, 0.0
      %v3677 = vsel %vm3490, %v3617, 0.0
      %v3678 = vsel %vm3491, %v3618, 0.0
      %v3679 = vsel %vm3492, %v3619, 0.0
      %3680 = vst.msk [vmem:[#allocation3] sm:$0xff] %vm2071, 0.0
      %3681 = vst.msk [vmem:[#allocation3 + $0x8] sm:$0xff] %vm2071, 0.0
      %3682 = vst.msk [vmem:[#allocation3 + $0x10] sm:$0xff] %vm2071, 0.0
      %3683 = vst.msk [vmem:[#allocation3 + $0x18] sm:$0xff] %vm2071, 0.0
      %3684 = vst.msk [vmem:[#allocation3 + $0x20] sm:$0xff] %vm2071, 0.0
      %3685 = vst.msk [vmem:[#allocation3 + $0x200] sm:$0xff] %vm2071, 0.0
      %3686 = vst.msk [vmem:[#allocation3 + $0x208] sm:$0xff] %vm2071, 0.0
      %3687 = vst.msk [vmem:[#allocation3 + $0x210] sm:$0xff] %vm2071, 0.0
      %3688 = vst.msk [vmem:[#allocation3 + $0x218] sm:$0xff] %vm2071, 0.0
      %3689 = vst.msk [vmem:[#allocation3 + $0x220] sm:$0xff] %vm2071, 0.0
      %3690 = vst.msk [vmem:[#allocation3 + $0x28] sm:$0xff] %vm1023, %v3620
      %3691 = vst.msk [vmem:[#allocation3 + $0x30] sm:$0xff] %vm1023, %v3621
      %3692 = vst.msk [vmem:[#allocation3 + $0x38] sm:$0xff] %vm1023, %v3622
      %3693 = vst.msk [vmem:[#allocation3 + $0x40] sm:$0xff] %vm1023, %v3623
      %3694 = vst.msk [vmem:[#allocation3 + $0x48] sm:$0xff] %vm1023, %v3624
      %3695 = vst.msk [vmem:[#allocation3 + $0x50] sm:$0xff] %vm1023, %v3625
      %3696 = vst.msk [vmem:[#allocation3 + $0x58] sm:$0xff] %vm1023, %v3626
      %3697 = vst.msk [vmem:[#allocation3 + $0x60] sm:$0xff] %vm1023, %v3627
      %3698 = vst.msk [vmem:[#allocation3 + $0x68] sm:$0xff] %vm1023, %v3628
      %3699 = vst.msk [vmem:[#allocation3 + $0x70] sm:$0xff] %vm1023, %v3629
      %3700 = vst.msk [vmem:[#allocation3 + $0x78] sm:$0xff] %vm1023, %v3630
      %3701 = vst.msk [vmem:[#allocation3 + $0x80] sm:$0xff] %vm1023, %v3631
      %3702 = vst.msk [vmem:[#allocation3 + $0x88] sm:$0xff] %vm1023, %v3632
      %3703 = vst.msk [vmem:[#allocation3 + $0x90] sm:$0xff] %vm1023, %v3633
      %3704 = vst.msk [vmem:[#allocation3 + $0x98] sm:$0xff] %vm1023, %v3634
      %3705 = vst.msk [vmem:[#allocation3 + $0xa0] sm:$0xff] %vm1023, %v3635
      %3706 = vst.msk [vmem:[#allocation3 + $0xa8] sm:$0xff] %vm1023, %v3636
      %3707 = vst.msk [vmem:[#allocation3 + $0xb0] sm:$0xff] %vm1023, %v3637
      %3708 = vst.msk [vmem:[#allocation3 + $0xb8] sm:$0xff] %vm1023, %v3638
      %3709 = vst.msk [vmem:[#allocation3 + $0xc0] sm:$0xff] %vm1023, %v3639
      %3710 = vst.msk [vmem:[#allocation3 + $0xc8] sm:$0xff] %vm1023, %v3640
      %3711 = vst.msk [vmem:[#allocation3 + $0xd0] sm:$0xff] %vm1023, %v3641
      %3712 = vst.msk [vmem:[#allocation3 + $0xd8] sm:$0xff] %vm1023, %v3642
      %3713 = vst.msk [vmem:[#allocation3 + $0xe0] sm:$0xff] %vm1023, %v3643
      %3714 = vst.msk [vmem:[#allocation3 + $0xe8] sm:$0xff] %vm1023, %v3644
      %3715 = vst.msk [vmem:[#allocation3 + $0xf0] sm:$0xff] %vm1023, %v3645
      %3716 = vst.msk [vmem:[#allocation3 + $0xf8] sm:$0xff] %vm1023, %v3646
      %3717 = vst.msk [vmem:[#allocation3 + $0x100] sm:$0xff] %vm1023, %v3647
      %3718 = vst.msk [vmem:[#allocation3 + $0x108] sm:$0xff] %vm1023, %v3648
      %3719 = vst.msk [vmem:[#allocation3 + $0x110] sm:$0xff] %vm1023, %v3649
      %3720 = vst.msk [vmem:[#allocation3 + $0x118] sm:$0xff] %vm1023, %v3650
      %3721 = vst.msk [vmem:[#allocation3 + $0x120] sm:$0xff] %vm1023, %v3651
      %3722 = vst.msk [vmem:[#allocation3 + $0x128] sm:$0xff] %vm1023, %v3652
      %3723 = vst.msk [vmem:[#allocation3 + $0x130] sm:$0xff] %vm1023, %v3653
      %3724 = vst.msk [vmem:[#allocation3 + $0x138] sm:$0xff] %vm1023, %v3654
      %3725 = vst.msk [vmem:[#allocation3 + $0x140] sm:$0xff] %vm1023, %v3655
      %3726 = vst.msk [vmem:[#allocation3 + $0x148] sm:$0xff] %vm1023, %v3656
      %3727 = vst.msk [vmem:[#allocation3 + $0x150] sm:$0xff] %vm1023, %v3657
      %3728 = vst.msk [vmem:[#allocation3 + $0x158] sm:$0xff] %vm1023, %v3658
      %3729 = vst.msk [vmem:[#allocation3 + $0x160] sm:$0xff] %vm1023, %v3659
      %3730 = vst.msk [vmem:[#allocation3 + $0x168] sm:$0xff] %vm1023, %v3660
      %3731 = vst.msk [vmem:[#allocation3 + $0x170] sm:$0xff] %vm1023, %v3661
      %3732 = vst.msk [vmem:[#allocation3 + $0x178] sm:$0xff] %vm1023, %v3662
      %3733 = vst.msk [vmem:[#allocation3 + $0x180] sm:$0xff] %vm1023, %v3663
      %3734 = vst.msk [vmem:[#allocation3 + $0x188] sm:$0xff] %vm1023, %v3664
      %3735 = vst.msk [vmem:[#allocation3 + $0x190] sm:$0xff] %vm1023, %v3665
      %3736 = vst.msk [vmem:[#allocation3 + $0x198] sm:$0xff] %vm1023, %v3666
      %3737 = vst.msk [vmem:[#allocation3 + $0x1a0] sm:$0xff] %vm1023, %v3667
      %3738 = vst.msk [vmem:[#allocation3 + $0x1a8] sm:$0xff] %vm1023, %v3668
      %3739 = vst.msk [vmem:[#allocation3 + $0x1b0] sm:$0xff] %vm1023, %v3669
      %3740 = vst.msk [vmem:[#allocation3 + $0x1b8] sm:$0xff] %vm1023, %v3670
      %3741 = vst.msk [vmem:[#allocation3 + $0x1c0] sm:$0xff] %vm1023, %v3671
      %3742 = vst.msk [vmem:[#allocation3 + $0x1c8] sm:$0xff] %vm1023, %v3672
      %3743 = vst.msk [vmem:[#allocation3 + $0x1d0] sm:$0xff] %vm1023, %v3673
      %3744 = vst.msk [vmem:[#allocation3 + $0x1d8] sm:$0xff] %vm1023, %v3674
      %3745 = vst.msk [vmem:[#allocation3 + $0x1e0] sm:$0xff] %vm1023, %v3675
      %3746 = vst.msk [vmem:[#allocation3 + $0x1e8] sm:$0xff] %vm1023, %v3676
      %3747 = vst.msk [vmem:[#allocation3 + $0x1f0] sm:$0xff] %vm1023, %v3677
      %3748 = vst.msk [vmem:[#allocation3 + $0x1f8] sm:$0xff] %vm1023, %v3678
      %3749 = vst.msk [vmem:[#allocation3 + $0x200] sm:$0xff] %vm1023, %v3679
      %v3750 = vld [vmem:[#allocation3 + $0x28] sm:$0xff]
      %v3751 = vld [vmem:[#allocation3 + $0x30] sm:$0xff]
      %v3752 = vld [vmem:[#allocation3 + $0x38] sm:$0xff]
      %v3753 = vld [vmem:[#allocation3 + $0x40] sm:$0xff]
      %v3754 = vld [vmem:[#allocation3 + $0x48] sm:$0xff]
      %v3755 = vld [vmem:[#allocation3 + $0x50] sm:$0xff]
      %v3756 = vld [vmem:[#allocation3 + $0x58] sm:$0xff]
      %v3757 = vld [vmem:[#allocation3 + $0x60] sm:$0xff]
      %v3758 = vld [vmem:[#allocation3 + $0x68] sm:$0xff]
      %v3759 = vld [vmem:[#allocation3 + $0x70] sm:$0xff]
      %v3760 = vld [vmem:[#allocation3 + $0x78] sm:$0xff]
      %v3761 = vld [vmem:[#allocation3 + $0x80] sm:$0xff]
      %v3762 = vld [vmem:[#allocation3 + $0x88] sm:$0xff]
      %v3763 = vld [vmem:[#allocation3 + $0x90] sm:$0xff]
      %v3764 = vld [vmem:[#allocation3 + $0x98] sm:$0xff]
      %v3765 = vld [vmem:[#allocation3 + $0xa0] sm:$0xff]
      %v3766 = vld [vmem:[#allocation3 + $0xa8] sm:$0xff]
      %v3767 = vld [vmem:[#allocation3 + $0xb0] sm:$0xff]
      %v3768 = vld [vmem:[#allocation3 + $0xb8] sm:$0xff]
      %v3769 = vld [vmem:[#allocation3 + $0xc0] sm:$0xff]
      %v3770 = vld [vmem:[#allocation3 + $0xc8] sm:$0xff]
      %v3771 = vld [vmem:[#allocation3 + $0xd0] sm:$0xff]
      %v3772 = vld [vmem:[#allocation3 + $0xd8] sm:$0xff]
      %v3773 = vld [vmem:[#allocation3 + $0xe0] sm:$0xff]
      %v3774 = vld [vmem:[#allocation3 + $0xe8] sm:$0xff]
      %v3775 = vld [vmem:[#allocation3 + $0xf0] sm:$0xff]
      %v3776 = vld [vmem:[#allocation3 + $0xf8] sm:$0xff]
      %v3777 = vld [vmem:[#allocation3 + $0x100] sm:$0xff]
      %v3778 = vld [vmem:[#allocation3 + $0x108] sm:$0xff]
      %v3779 = vld [vmem:[#allocation3 + $0x110] sm:$0xff]
      %v3780 = vld [vmem:[#allocation3 + $0x118] sm:$0xff]
      %v3781 = vld [vmem:[#allocation3 + $0x120] sm:$0xff]
      %v3782 = vld [vmem:[#allocation3 + $0x128] sm:$0xff]
      %v3783 = vld [vmem:[#allocation3 + $0x130] sm:$0xff]
      %v3784 = vld [vmem:[#allocation3 + $0x138] sm:$0xff]
      %v3785 = vld [vmem:[#allocation3 + $0x140] sm:$0xff]
      %v3786 = vld [vmem:[#allocation3 + $0x148] sm:$0xff]
      %v3787 = vld [vmem:[#allocation3 + $0x150] sm:$0xff]
      %v3788 = vld [vmem:[#allocation3 + $0x158] sm:$0xff]
      %v3789 = vld [vmem:[#allocation3 + $0x160] sm:$0xff]
      %v3790 = vld [vmem:[#allocation3 + $0x168] sm:$0xff]
      %v3791 = vld [vmem:[#allocation3 + $0x170] sm:$0xff]
      %v3792 = vld [vmem:[#allocation3 + $0x178] sm:$0xff]
      %v3793 = vld [vmem:[#allocation3 + $0x180] sm:$0xff]
      %v3794 = vld [vmem:[#allocation3 + $0x188] sm:$0xff]
      %v3795 = vld [vmem:[#allocation3 + $0x190] sm:$0xff]
      %v3796 = vld [vmem:[#allocation3 + $0x198] sm:$0xff]
      %v3797 = vld [vmem:[#allocation3 + $0x1a0] sm:$0xff]
      %v3798 = vld [vmem:[#allocation3 + $0x1a8] sm:$0xff]
      %v3799 = vld [vmem:[#allocation3 + $0x1b0] sm:$0xff]
      %v3800 = vld [vmem:[#allocation3 + $0x1b8] sm:$0xff]
      %v3801 = vld [vmem:[#allocation3 + $0x1c0] sm:$0xff]
      %v3802 = vld [vmem:[#allocation3 + $0x1c8] sm:$0xff]
      %v3803 = vld [vmem:[#allocation3 + $0x1d0] sm:$0xff]
      %v3804 = vld [vmem:[#allocation3 + $0x1d8] sm:$0xff]
      %v3805 = vld [vmem:[#allocation3 + $0x1e0] sm:$0xff]
      %v3806 = vld [vmem:[#allocation3 + $0x1e8] sm:$0xff]
      %v3807 = vld [vmem:[#allocation3 + $0x1f0] sm:$0xff]
      %v3808 = vld [vmem:[#allocation3 + $0x1f8] sm:$0xff]
      %v3809 = vld [vmem:[#allocation3 + $0x200] sm:$0xff]
      %3870 = vrot.lane.b32.xlu0 %v3750, 32
      %v3871 = vpop.permute.xlu0 %3870
      %3872 = vrot.lane.b32.xlu0 %v3751, 32
      %v3873 = vpop.permute.xlu0 %3872
      %3874 = vrot.lane.b32.xlu0 %v3752, 32
      %v3875 = vpop.permute.xlu0 %3874
      %3876 = vrot.lane.b32.xlu0 %v3753, 32
      %v3877 = vpop.permute.xlu0 %3876
      %3878 = vrot.lane.b32.xlu0 %v3754, 32
      %v3879 = vpop.permute.xlu0 %3878
      %3880 = vrot.lane.b32.xlu0 %v3755, 32
      %v3881 = vpop.permute.xlu0 %3880
      %3882 = vrot.lane.b32.xlu0 %v3756, 32
      %v3883 = vpop.permute.xlu0 %3882
      %3884 = vrot.lane.b32.xlu0 %v3757, 32
      %v3885 = vpop.permute.xlu0 %3884
      %3886 = vrot.lane.b32.xlu0 %v3758, 32
      %v3887 = vpop.permute.xlu0 %3886
      %3888 = vrot.lane.b32.xlu0 %v3759, 32
      %v3889 = vpop.permute.xlu0 %3888
      %3890 = vrot.lane.b32.xlu0 %v3760, 32
      %v3891 = vpop.permute.xlu0 %3890
      %3892 = vrot.lane.b32.xlu0 %v3761, 32
      %v3893 = vpop.permute.xlu0 %3892
      %3894 = vrot.lane.b32.xlu0 %v3762, 32
      %v3895 = vpop.permute.xlu0 %3894
      %3896 = vrot.lane.b32.xlu0 %v3763, 32
      %v3897 = vpop.permute.xlu0 %3896
      %3898 = vrot.lane.b32.xlu0 %v3764, 32
      %v3899 = vpop.permute.xlu0 %3898
      %3900 = vrot.lane.b32.xlu0 %v3765, 32
      %v3901 = vpop.permute.xlu0 %3900
      %3902 = vrot.lane.b32.xlu0 %v3766, 32
      %v3903 = vpop.permute.xlu0 %3902
      %3904 = vrot.lane.b32.xlu0 %v3767, 32
      %v3905 = vpop.permute.xlu0 %3904
      %3906 = vrot.lane.b32.xlu0 %v3768, 32
      %v3907 = vpop.permute.xlu0 %3906
      %3908 = vrot.lane.b32.xlu0 %v3769, 32
      %v3909 = vpop.permute.xlu0 %3908
      %3910 = vrot.lane.b32.xlu0 %v3770, 32
      %v3911 = vpop.permute.xlu0 %3910
      %3912 = vrot.lane.b32.xlu0 %v3771, 32
      %v3913 = vpop.permute.xlu0 %3912
      %3914 = vrot.lane.b32.xlu0 %v3772, 32
      %v3915 = vpop.permute.xlu0 %3914
      %3916 = vrot.lane.b32.xlu0 %v3773, 32
      %v3917 = vpop.permute.xlu0 %3916
      %3918 = vrot.lane.b32.xlu0 %v3774, 32
      %v3919 = vpop.permute.xlu0 %3918
      %3920 = vrot.lane.b32.xlu0 %v3775, 32
      %v3921 = vpop.permute.xlu0 %3920
      %3922 = vrot.lane.b32.xlu0 %v3776, 32
      %v3923 = vpop.permute.xlu0 %3922
      %3924 = vrot.lane.b32.xlu0 %v3777, 32
      %v3925 = vpop.permute.xlu0 %3924
      %3926 = vrot.lane.b32.xlu0 %v3778, 32
      %v3927 = vpop.permute.xlu0 %3926
      %3928 = vrot.lane.b32.xlu0 %v3779, 32
      %v3929 = vpop.permute.xlu0 %3928
      %3930 = vrot.lane.b32.xlu0 %v3780, 32
      %v3931 = vpop.permute.xlu0 %3930
      %3932 = vrot.lane.b32.xlu0 %v3781, 32
      %v3933 = vpop.permute.xlu0 %3932
      %3934 = vrot.lane.b32.xlu0 %v3782, 32
      %v3935 = vpop.permute.xlu0 %3934
      %3936 = vrot.lane.b32.xlu0 %v3783, 32
      %v3937 = vpop.permute.xlu0 %3936
      %3938 = vrot.lane.b32.xlu0 %v3784, 32
      %v3939 = vpop.permute.xlu0 %3938
      %3940 = vrot.lane.b32.xlu0 %v3785, 32
      %v3941 = vpop.permute.xlu0 %3940
      %3942 = vrot.lane.b32.xlu0 %v3786, 32
      %v3943 = vpop.permute.xlu0 %3942
      %3944 = vrot.lane.b32.xlu0 %v3787, 32
      %v3945 = vpop.permute.xlu0 %3944
      %3946 = vrot.lane.b32.xlu0 %v3788, 32
      %v3947 = vpop.permute.xlu0 %3946
      %3948 = vrot.lane.b32.xlu0 %v3789, 32
      %v3949 = vpop.permute.xlu0 %3948
      %3950 = vrot.lane.b32.xlu0 %v3790, 32
      %v3951 = vpop.permute.xlu0 %3950
      %3952 = vrot.lane.b32.xlu0 %v3791, 32
      %v3953 = vpop.permute.xlu0 %3952
      %3954 = vrot.lane.b32.xlu0 %v3792, 32
      %v3955 = vpop.permute.xlu0 %3954
      %3956 = vrot.lane.b32.xlu0 %v3793, 32
      %v3957 = vpop.permute.xlu0 %3956
      %3958 = vrot.lane.b32.xlu0 %v3794, 32
      %v3959 = vpop.permute.xlu0 %3958
      %3960 = vrot.lane.b32.xlu0 %v3795, 32
      %v3961 = vpop.permute.xlu0 %3960
      %3962 = vrot.lane.b32.xlu0 %v3796, 32
      %v3963 = vpop.permute.xlu0 %3962
      %3964 = vrot.lane.b32.xlu0 %v3797, 32
      %v3965 = vpop.permute.xlu0 %3964
      %3966 = vrot.lane.b32.xlu0 %v3798, 32
      %v3967 = vpop.permute.xlu0 %3966
      %3968 = vrot.lane.b32.xlu0 %v3799, 32
      %v3969 = vpop.permute.xlu0 %3968
      %3970 = vrot.lane.b32.xlu0 %v3800, 32
      %v3971 = vpop.permute.xlu0 %3970
      %3972 = vrot.lane.b32.xlu0 %v3801, 32
      %v3973 = vpop.permute.xlu0 %3972
      %3974 = vrot.lane.b32.xlu0 %v3802, 32
      %v3975 = vpop.permute.xlu0 %3974
      %3976 = vrot.lane.b32.xlu0 %v3803, 32
      %v3977 = vpop.permute.xlu0 %3976
      %3978 = vrot.lane.b32.xlu0 %v3804, 32
      %v3979 = vpop.permute.xlu0 %3978
      %3980 = vrot.lane.b32.xlu0 %v3805, 32
      %v3981 = vpop.permute.xlu0 %3980
      %3982 = vrot.lane.b32.xlu0 %v3806, 32
      %v3983 = vpop.permute.xlu0 %3982
      %3984 = vrot.lane.b32.xlu0 %v3807, 32
      %v3985 = vpop.permute.xlu0 %3984
      %3986 = vrot.lane.b32.xlu0 %v3808, 32
      %v3987 = vpop.permute.xlu0 %3986
      %3988 = vrot.lane.b32.xlu0 %v3809, 32
      %v3989 = vpop.permute.xlu0 %3988
      %4050 = vst.msk [vmem:[#allocation3 + $0x27] sm:$0xff] %vm1434, %v3871
      %4051 = vst.msk [vmem:[#allocation3 + $0x2f] sm:$0xff] %vm1434, %v3873
      %4052 = vst.msk [vmem:[#allocation3 + $0x37] sm:$0xff] %vm1434, %v3875
      %4053 = vst.msk [vmem:[#allocation3 + $0x3f] sm:$0xff] %vm1434, %v3877
      %4054 = vst.msk [vmem:[#allocation3 + $0x47] sm:$0xff] %vm1434, %v3879
      %4055 = vst.msk [vmem:[#allocation3 + $0x4f] sm:$0xff] %vm1434, %v3881
      %4056 = vst.msk [vmem:[#allocation3 + $0x57] sm:$0xff] %vm1434, %v3883
      %4057 = vst.msk [vmem:[#allocation3 + $0x5f] sm:$0xff] %vm1434, %v3885
      %4058 = vst.msk [vmem:[#allocation3 + $0x67] sm:$0xff] %vm1434, %v3887
      %4059 = vst.msk [vmem:[#allocation3 + $0x6f] sm:$0xff] %vm1434, %v3889
      %4060 = vst.msk [vmem:[#allocation3 + $0x77] sm:$0xff] %vm1434, %v3891
      %4061 = vst.msk [vmem:[#allocation3 + $0x7f] sm:$0xff] %vm1434, %v3893
      %4062 = vst.msk [vmem:[#allocation3 + $0x87] sm:$0xff] %vm1434, %v3895
      %4063 = vst.msk [vmem:[#allocation3 + $0x8f] sm:$0xff] %vm1434, %v3897
      %4064 = vst.msk [vmem:[#allocation3 + $0x97] sm:$0xff] %vm1434, %v3899
      %4065 = vst.msk [vmem:[#allocation3 + $0x9f] sm:$0xff] %vm1434, %v3901
      %4066 = vst.msk [vmem:[#allocation3 + $0xa7] sm:$0xff] %vm1434, %v3903
      %4067 = vst.msk [vmem:[#allocation3 + $0xaf] sm:$0xff] %vm1434, %v3905
      %4068 = vst.msk [vmem:[#allocation3 + $0xb7] sm:$0xff] %vm1434, %v3907
      %4069 = vst.msk [vmem:[#allocation3 + $0xbf] sm:$0xff] %vm1434, %v3909
      %4070 = vst.msk [vmem:[#allocation3 + $0xc7] sm:$0xff] %vm1434, %v3911
      %4071 = vst.msk [vmem:[#allocation3 + $0xcf] sm:$0xff] %vm1434, %v3913
      %4072 = vst.msk [vmem:[#allocation3 + $0xd7] sm:$0xff] %vm1434, %v3915
      %4073 = vst.msk [vmem:[#allocation3 + $0xdf] sm:$0xff] %vm1434, %v3917
      %4074 = vst.msk [vmem:[#allocation3 + $0xe7] sm:$0xff] %vm1434, %v3919
      %4075 = vst.msk [vmem:[#allocation3 + $0xef] sm:$0xff] %vm1434, %v3921
      %4076 = vst.msk [vmem:[#allocation3 + $0xf7] sm:$0xff] %vm1434, %v3923
      %4077 = vst.msk [vmem:[#allocation3 + $0xff] sm:$0xff] %vm1434, %v3925
      %4078 = vst.msk [vmem:[#allocation3 + $0x107] sm:$0xff] %vm1434, %v3927
      %4079 = vst.msk [vmem:[#allocation3 + $0x10f] sm:$0xff] %vm1434, %v3929
      %4080 = vst.msk [vmem:[#allocation3 + $0x117] sm:$0xff] %vm1434, %v3931
      %4081 = vst.msk [vmem:[#allocation3 + $0x11f] sm:$0xff] %vm1434, %v3933
      %4082 = vst.msk [vmem:[#allocation3 + $0x127] sm:$0xff] %vm1434, %v3935
      %4083 = vst.msk [vmem:[#allocation3 + $0x12f] sm:$0xff] %vm1434, %v3937
      %4084 = vst.msk [vmem:[#allocation3 + $0x137] sm:$0xff] %vm1434, %v3939
      %4085 = vst.msk [vmem:[#allocation3 + $0x13f] sm:$0xff] %vm1434, %v3941
      %4086 = vst.msk [vmem:[#allocation3 + $0x147] sm:$0xff] %vm1434, %v3943
      %4087 = vst.msk [vmem:[#allocation3 + $0x14f] sm:$0xff] %vm1434, %v3945
      %4088 = vst.msk [vmem:[#allocation3 + $0x157] sm:$0xff] %vm1434, %v3947
      %4089 = vst.msk [vmem:[#allocation3 + $0x15f] sm:$0xff] %vm1434, %v3949
      %4090 = vst.msk [vmem:[#allocation3 + $0x167] sm:$0xff] %vm1434, %v3951
      %4091 = vst.msk [vmem:[#allocation3 + $0x16f] sm:$0xff] %vm1434, %v3953
      %4092 = vst.msk [vmem:[#allocation3 + $0x177] sm:$0xff] %vm1434, %v3955
      %4093 = vst.msk [vmem:[#allocation3 + $0x17f] sm:$0xff] %vm1434, %v3957
      %4094 = vst.msk [vmem:[#allocation3 + $0x187] sm:$0xff] %vm1434, %v3959
      %4095 = vst.msk [vmem:[#allocation3 + $0x18f] sm:$0xff] %vm1434, %v3961
      %4096 = vst.msk [vmem:[#allocation3 + $0x197] sm:$0xff] %vm1434, %v3963
      %4097 = vst.msk [vmem:[#allocation3 + $0x19f] sm:$0xff] %vm1434, %v3965
      %4098 = vst.msk [vmem:[#allocation3 + $0x1a7] sm:$0xff] %vm1434, %v3967
      %4099 = vst.msk [vmem:[#allocation3 + $0x1af] sm:$0xff] %vm1434, %v3969
      %4100 = vst.msk [vmem:[#allocation3 + $0x1b7] sm:$0xff] %vm1434, %v3971
      %4101 = vst.msk [vmem:[#allocation3 + $0x1bf] sm:$0xff] %vm1434, %v3973
      %4102 = vst.msk [vmem:[#allocation3 + $0x1c7] sm:$0xff] %vm1434, %v3975
      %4103 = vst.msk [vmem:[#allocation3 + $0x1cf] sm:$0xff] %vm1434, %v3977
      %4104 = vst.msk [vmem:[#allocation3 + $0x1d7] sm:$0xff] %vm1434, %v3979
      %4105 = vst.msk [vmem:[#allocation3 + $0x1df] sm:$0xff] %vm1434, %v3981
      %4106 = vst.msk [vmem:[#allocation3 + $0x1e7] sm:$0xff] %vm1434, %v3983
      %4107 = vst.msk [vmem:[#allocation3 + $0x1ef] sm:$0xff] %vm1434, %v3985
      %4108 = vst.msk [vmem:[#allocation3 + $0x1f7] sm:$0xff] %vm1434, %v3987
      %4109 = vst.msk [vmem:[#allocation3 + $0x1ff] sm:$0xff] %vm1434, %v3989
      %v4110 = vld [vmem:[#allocation3 + $0x28] sm:$0xff]
      %v4111 = vld [vmem:[#allocation3 + $0x30] sm:$0xff]
      %v4112 = vld [vmem:[#allocation3 + $0x38] sm:$0xff]
      %v4113 = vld [vmem:[#allocation3 + $0x40] sm:$0xff]
      %v4114 = vld [vmem:[#allocation3 + $0x48] sm:$0xff]
      %v4115 = vld [vmem:[#allocation3 + $0x50] sm:$0xff]
      %v4116 = vld [vmem:[#allocation3 + $0x58] sm:$0xff]
      %v4117 = vld [vmem:[#allocation3 + $0x60] sm:$0xff]
      %v4118 = vld [vmem:[#allocation3 + $0x68] sm:$0xff]
      %v4119 = vld [vmem:[#allocation3 + $0x70] sm:$0xff]
      %v4120 = vld [vmem:[#allocation3 + $0x78] sm:$0xff]
      %v4121 = vld [vmem:[#allocation3 + $0x80] sm:$0xff]
      %v4122 = vld [vmem:[#allocation3 + $0x88] sm:$0xff]
      %v4123 = vld [vmem:[#allocation3 + $0x90] sm:$0xff]
      %v4124 = vld [vmem:[#allocation3 + $0x98] sm:$0xff]
      %v4125 = vld [vmem:[#allocation3 + $0xa0] sm:$0xff]
      %v4126 = vld [vmem:[#allocation3 + $0xa8] sm:$0xff]
      %v4127 = vld [vmem:[#allocation3 + $0xb0] sm:$0xff]
      %v4128 = vld [vmem:[#allocation3 + $0xb8] sm:$0xff]
      %v4129 = vld [vmem:[#allocation3 + $0xc0] sm:$0xff]
      %v4130 = vld [vmem:[#allocation3 + $0xc8] sm:$0xff]
      %v4131 = vld [vmem:[#allocation3 + $0xd0] sm:$0xff]
      %v4132 = vld [vmem:[#allocation3 + $0xd8] sm:$0xff]
      %v4133 = vld [vmem:[#allocation3 + $0xe0] sm:$0xff]
      %v4134 = vld [vmem:[#allocation3 + $0xe8] sm:$0xff]
      %v4135 = vld [vmem:[#allocation3 + $0xf0] sm:$0xff]
      %v4136 = vld [vmem:[#allocation3 + $0xf8] sm:$0xff]
      %v4137 = vld [vmem:[#allocation3 + $0x100] sm:$0xff]
      %v4138 = vld [vmem:[#allocation3 + $0x108] sm:$0xff]
      %v4139 = vld [vmem:[#allocation3 + $0x110] sm:$0xff]
      %v4140 = vld [vmem:[#allocation3 + $0x118] sm:$0xff]
      %v4141 = vld [vmem:[#allocation3 + $0x120] sm:$0xff]
      %v4142 = vld [vmem:[#allocation3 + $0x128] sm:$0xff]
      %v4143 = vld [vmem:[#allocation3 + $0x130] sm:$0xff]
      %v4144 = vld [vmem:[#allocation3 + $0x138] sm:$0xff]
      %v4145 = vld [vmem:[#allocation3 + $0x140] sm:$0xff]
      %v4146 = vld [vmem:[#allocation3 + $0x148] sm:$0xff]
      %v4147 = vld [vmem:[#allocation3 + $0x150] sm:$0xff]
      %v4148 = vld [vmem:[#allocation3 + $0x158] sm:$0xff]
      %v4149 = vld [vmem:[#allocation3 + $0x160] sm:$0xff]
      %v4150 = vld [vmem:[#allocation3 + $0x168] sm:$0xff]
      %v4151 = vld [vmem:[#allocation3 + $0x170] sm:$0xff]
      %v4152 = vld [vmem:[#allocation3 + $0x178] sm:$0xff]
      %v4153 = vld [vmem:[#allocation3 + $0x180] sm:$0xff]
      %v4154 = vld [vmem:[#allocation3 + $0x188] sm:$0xff]
      %v4155 = vld [vmem:[#allocation3 + $0x190] sm:$0xff]
      %v4156 = vld [vmem:[#allocation3 + $0x198] sm:$0xff]
      %v4157 = vld [vmem:[#allocation3 + $0x1a0] sm:$0xff]
      %v4158 = vld [vmem:[#allocation3 + $0x1a8] sm:$0xff]
      %v4159 = vld [vmem:[#allocation3 + $0x1b0] sm:$0xff]
      %v4160 = vld [vmem:[#allocation3 + $0x1b8] sm:$0xff]
      %v4161 = vld [vmem:[#allocation3 + $0x1c0] sm:$0xff]
      %v4162 = vld [vmem:[#allocation3 + $0x1c8] sm:$0xff]
      %v4163 = vld [vmem:[#allocation3 + $0x1d0] sm:$0xff]
      %v4164 = vld [vmem:[#allocation3 + $0x1d8] sm:$0xff]
      %v4165 = vld [vmem:[#allocation3 + $0x1e0] sm:$0xff]
      %v4166 = vld [vmem:[#allocation3 + $0x1e8] sm:$0xff]
      %v4167 = vld [vmem:[#allocation3 + $0x1f0] sm:$0xff]
      %v4168 = vld [vmem:[#allocation3 + $0x1f8] sm:$0xff]
      %v4169 = vld [vmem:[#allocation3 + $0x200] sm:$0xff]
      %4230 = vrot.lane.b32.xlu0 %v4110, 64
      %v4231 = vpop.permute.xlu0 %4230
      %4232 = vrot.lane.b32.xlu0 %v4111, 64
      %v4233 = vpop.permute.xlu0 %4232
      %4234 = vrot.lane.b32.xlu0 %v4112, 64
      %v4235 = vpop.permute.xlu0 %4234
      %4236 = vrot.lane.b32.xlu0 %v4113, 64
      %v4237 = vpop.permute.xlu0 %4236
      %4238 = vrot.lane.b32.xlu0 %v4114, 64
      %v4239 = vpop.permute.xlu0 %4238
      %4240 = vrot.lane.b32.xlu0 %v4115, 64
      %v4241 = vpop.permute.xlu0 %4240
      %4242 = vrot.lane.b32.xlu0 %v4116, 64
      %v4243 = vpop.permute.xlu0 %4242
      %4244 = vrot.lane.b32.xlu0 %v4117, 64
      %v4245 = vpop.permute.xlu0 %4244
      %4246 = vrot.lane.b32.xlu0 %v4118, 64
      %v4247 = vpop.permute.xlu0 %4246
      %4248 = vrot.lane.b32.xlu0 %v4119, 64
      %v4249 = vpop.permute.xlu0 %4248
      %4250 = vrot.lane.b32.xlu0 %v4120, 64
      %v4251 = vpop.permute.xlu0 %4250
      %4252 = vrot.lane.b32.xlu0 %v4121, 64
      %v4253 = vpop.permute.xlu0 %4252
      %4254 = vrot.lane.b32.xlu0 %v4122, 64
      %v4255 = vpop.permute.xlu0 %4254
      %4256 = vrot.lane.b32.xlu0 %v4123, 64
      %v4257 = vpop.permute.xlu0 %4256
      %4258 = vrot.lane.b32.xlu0 %v4124, 64
      %v4259 = vpop.permute.xlu0 %4258
      %4260 = vrot.lane.b32.xlu0 %v4125, 64
      %v4261 = vpop.permute.xlu0 %4260
      %4262 = vrot.lane.b32.xlu0 %v4126, 64
      %v4263 = vpop.permute.xlu0 %4262
      %4264 = vrot.lane.b32.xlu0 %v4127, 64
      %v4265 = vpop.permute.xlu0 %4264
      %4266 = vrot.lane.b32.xlu0 %v4128, 64
      %v4267 = vpop.permute.xlu0 %4266
      %4268 = vrot.lane.b32.xlu0 %v4129, 64
      %v4269 = vpop.permute.xlu0 %4268
      %4270 = vrot.lane.b32.xlu0 %v4130, 64
      %v4271 = vpop.permute.xlu0 %4270
      %4272 = vrot.lane.b32.xlu0 %v4131, 64
      %v4273 = vpop.permute.xlu0 %4272
      %4274 = vrot.lane.b32.xlu0 %v4132, 64
      %v4275 = vpop.permute.xlu0 %4274
      %4276 = vrot.lane.b32.xlu0 %v4133, 64
      %v4277 = vpop.permute.xlu0 %4276
      %4278 = vrot.lane.b32.xlu0 %v4134, 64
      %v4279 = vpop.permute.xlu0 %4278
      %4280 = vrot.lane.b32.xlu0 %v4135, 64
      %v4281 = vpop.permute.xlu0 %4280
      %4282 = vrot.lane.b32.xlu0 %v4136, 64
      %v4283 = vpop.permute.xlu0 %4282
      %4284 = vrot.lane.b32.xlu0 %v4137, 64
      %v4285 = vpop.permute.xlu0 %4284
      %4286 = vrot.lane.b32.xlu0 %v4138, 64
      %v4287 = vpop.permute.xlu0 %4286
      %4288 = vrot.lane.b32.xlu0 %v4139, 64
      %v4289 = vpop.permute.xlu0 %4288
      %4290 = vrot.lane.b32.xlu0 %v4140, 64
      %v4291 = vpop.permute.xlu0 %4290
      %4292 = vrot.lane.b32.xlu0 %v4141, 64
      %v4293 = vpop.permute.xlu0 %4292
      %4294 = vrot.lane.b32.xlu0 %v4142, 64
      %v4295 = vpop.permute.xlu0 %4294
      %4296 = vrot.lane.b32.xlu0 %v4143, 64
      %v4297 = vpop.permute.xlu0 %4296
      %4298 = vrot.lane.b32.xlu0 %v4144, 64
      %v4299 = vpop.permute.xlu0 %4298
      %4300 = vrot.lane.b32.xlu0 %v4145, 64
      %v4301 = vpop.permute.xlu0 %4300
      %4302 = vrot.lane.b32.xlu0 %v4146, 64
      %v4303 = vpop.permute.xlu0 %4302
      %4304 = vrot.lane.b32.xlu0 %v4147, 64
      %v4305 = vpop.permute.xlu0 %4304
      %4306 = vrot.lane.b32.xlu0 %v4148, 64
      %v4307 = vpop.permute.xlu0 %4306
      %4308 = vrot.lane.b32.xlu0 %v4149, 64
      %v4309 = vpop.permute.xlu0 %4308
      %4310 = vrot.lane.b32.xlu0 %v4150, 64
      %v4311 = vpop.permute.xlu0 %4310
      %4312 = vrot.lane.b32.xlu0 %v4151, 64
      %v4313 = vpop.permute.xlu0 %4312
      %4314 = vrot.lane.b32.xlu0 %v4152, 64
      %v4315 = vpop.permute.xlu0 %4314
      %4316 = vrot.lane.b32.xlu0 %v4153, 64
      %v4317 = vpop.permute.xlu0 %4316
      %4318 = vrot.lane.b32.xlu0 %v4154, 64
      %v4319 = vpop.permute.xlu0 %4318
      %4320 = vrot.lane.b32.xlu0 %v4155, 64
      %v4321 = vpop.permute.xlu0 %4320
      %4322 = vrot.lane.b32.xlu0 %v4156, 64
      %v4323 = vpop.permute.xlu0 %4322
      %4324 = vrot.lane.b32.xlu0 %v4157, 64
      %v4325 = vpop.permute.xlu0 %4324
      %4326 = vrot.lane.b32.xlu0 %v4158, 64
      %v4327 = vpop.permute.xlu0 %4326
      %4328 = vrot.lane.b32.xlu0 %v4159, 64
      %v4329 = vpop.permute.xlu0 %4328
      %4330 = vrot.lane.b32.xlu0 %v4160, 64
      %v4331 = vpop.permute.xlu0 %4330
      %4332 = vrot.lane.b32.xlu0 %v4161, 64
      %v4333 = vpop.permute.xlu0 %4332
      %4334 = vrot.lane.b32.xlu0 %v4162, 64
      %v4335 = vpop.permute.xlu0 %4334
      %4336 = vrot.lane.b32.xlu0 %v4163, 64
      %v4337 = vpop.permute.xlu0 %4336
      %4338 = vrot.lane.b32.xlu0 %v4164, 64
      %v4339 = vpop.permute.xlu0 %4338
      %4340 = vrot.lane.b32.xlu0 %v4165, 64
      %v4341 = vpop.permute.xlu0 %4340
      %4342 = vrot.lane.b32.xlu0 %v4166, 64
      %v4343 = vpop.permute.xlu0 %4342
      %4344 = vrot.lane.b32.xlu0 %v4167, 64
      %v4345 = vpop.permute.xlu0 %4344
      %4346 = vrot.lane.b32.xlu0 %v4168, 64
      %v4347 = vpop.permute.xlu0 %4346
      %4348 = vrot.lane.b32.xlu0 %v4169, 64
      %v4349 = vpop.permute.xlu0 %4348
      %4410 = vst.msk [vmem:[#allocation3 + $0x26] sm:$0xff] %vm1844, %v4231
      %4411 = vst.msk [vmem:[#allocation3 + $0x2e] sm:$0xff] %vm1844, %v4233
      %4412 = vst.msk [vmem:[#allocation3 + $0x36] sm:$0xff] %vm1844, %v4235
      %4413 = vst.msk [vmem:[#allocation3 + $0x3e] sm:$0xff] %vm1844, %v4237
      %4414 = vst.msk [vmem:[#allocation3 + $0x46] sm:$0xff] %vm1844, %v4239
      %4415 = vst.msk [vmem:[#allocation3 + $0x4e] sm:$0xff] %vm1844, %v4241
      %4416 = vst.msk [vmem:[#allocation3 + $0x56] sm:$0xff] %vm1844, %v4243
      %4417 = vst.msk [vmem:[#allocation3 + $0x5e] sm:$0xff] %vm1844, %v4245
      %4418 = vst.msk [vmem:[#allocation3 + $0x66] sm:$0xff] %vm1844, %v4247
      %4419 = vst.msk [vmem:[#allocation3 + $0x6e] sm:$0xff] %vm1844, %v4249
      %4420 = vst.msk [vmem:[#allocation3 + $0x76] sm:$0xff] %vm1844, %v4251
      %4421 = vst.msk [vmem:[#allocation3 + $0x7e] sm:$0xff] %vm1844, %v4253
      %4422 = vst.msk [vmem:[#allocation3 + $0x86] sm:$0xff] %vm1844, %v4255
      %4423 = vst.msk [vmem:[#allocation3 + $0x8e] sm:$0xff] %vm1844, %v4257
      %4424 = vst.msk [vmem:[#allocation3 + $0x96] sm:$0xff] %vm1844, %v4259
      %4425 = vst.msk [vmem:[#allocation3 + $0x9e] sm:$0xff] %vm1844, %v4261
      %4426 = vst.msk [vmem:[#allocation3 + $0xa6] sm:$0xff] %vm1844, %v4263
      %4427 = vst.msk [vmem:[#allocation3 + $0xae] sm:$0xff] %vm1844, %v4265
      %4428 = vst.msk [vmem:[#allocation3 + $0xb6] sm:$0xff] %vm1844, %v4267
      %4429 = vst.msk [vmem:[#allocation3 + $0xbe] sm:$0xff] %vm1844, %v4269
      %4430 = vst.msk [vmem:[#allocation3 + $0xc6] sm:$0xff] %vm1844, %v4271
      %4431 = vst.msk [vmem:[#allocation3 + $0xce] sm:$0xff] %vm1844, %v4273
      %4432 = vst.msk [vmem:[#allocation3 + $0xd6] sm:$0xff] %vm1844, %v4275
      %4433 = vst.msk [vmem:[#allocation3 + $0xde] sm:$0xff] %vm1844, %v4277
      %4434 = vst.msk [vmem:[#allocation3 + $0xe6] sm:$0xff] %vm1844, %v4279
      %4435 = vst.msk [vmem:[#allocation3 + $0xee] sm:$0xff] %vm1844, %v4281
      %4436 = vst.msk [vmem:[#allocation3 + $0xf6] sm:$0xff] %vm1844, %v4283
      %4437 = vst.msk [vmem:[#allocation3 + $0xfe] sm:$0xff] %vm1844, %v4285
      %4438 = vst.msk [vmem:[#allocation3 + $0x106] sm:$0xff] %vm1844, %v4287
      %4439 = vst.msk [vmem:[#allocation3 + $0x10e] sm:$0xff] %vm1844, %v4289
      %4440 = vst.msk [vmem:[#allocation3 + $0x116] sm:$0xff] %vm1844, %v4291
      %4441 = vst.msk [vmem:[#allocation3 + $0x11e] sm:$0xff] %vm1844, %v4293
      %4442 = vst.msk [vmem:[#allocation3 + $0x126] sm:$0xff] %vm1844, %v4295
      %4443 = vst.msk [vmem:[#allocation3 + $0x12e] sm:$0xff] %vm1844, %v4297
      %4444 = vst.msk [vmem:[#allocation3 + $0x136] sm:$0xff] %vm1844, %v4299
      %4445 = vst.msk [vmem:[#allocation3 + $0x13e] sm:$0xff] %vm1844, %v4301
      %4446 = vst.msk [vmem:[#allocation3 + $0x146] sm:$0xff] %vm1844, %v4303
      %4447 = vst.msk [vmem:[#allocation3 + $0x14e] sm:$0xff] %vm1844, %v4305
      %4448 = vst.msk [vmem:[#allocation3 + $0x156] sm:$0xff] %vm1844, %v4307
      %4449 = vst.msk [vmem:[#allocation3 + $0x15e] sm:$0xff] %vm1844, %v4309
      %4450 = vst.msk [vmem:[#allocation3 + $0x166] sm:$0xff] %vm1844, %v4311
      %4451 = vst.msk [vmem:[#allocation3 + $0x16e] sm:$0xff] %vm1844, %v4313
      %4452 = vst.msk [vmem:[#allocation3 + $0x176] sm:$0xff] %vm1844, %v4315
      %4453 = vst.msk [vmem:[#allocation3 + $0x17e] sm:$0xff] %vm1844, %v4317
      %4454 = vst.msk [vmem:[#allocation3 + $0x186] sm:$0xff] %vm1844, %v4319
      %4455 = vst.msk [vmem:[#allocation3 + $0x18e] sm:$0xff] %vm1844, %v4321
      %4456 = vst.msk [vmem:[#allocation3 + $0x196] sm:$0xff] %vm1844, %v4323
      %4457 = vst.msk [vmem:[#allocation3 + $0x19e] sm:$0xff] %vm1844, %v4325
      %4458 = vst.msk [vmem:[#allocation3 + $0x1a6] sm:$0xff] %vm1844, %v4327
      %4459 = vst.msk [vmem:[#allocation3 + $0x1ae] sm:$0xff] %vm1844, %v4329
      %4460 = vst.msk [vmem:[#allocation3 + $0x1b6] sm:$0xff] %vm1844, %v4331
      %4461 = vst.msk [vmem:[#allocation3 + $0x1be] sm:$0xff] %vm1844, %v4333
      %4462 = vst.msk [vmem:[#allocation3 + $0x1c6] sm:$0xff] %vm1844, %v4335
      %4463 = vst.msk [vmem:[#allocation3 + $0x1ce] sm:$0xff] %vm1844, %v4337
      %4464 = vst.msk [vmem:[#allocation3 + $0x1d6] sm:$0xff] %vm1844, %v4339
      %4465 = vst.msk [vmem:[#allocation3 + $0x1de] sm:$0xff] %vm1844, %v4341
      %4466 = vst.msk [vmem:[#allocation3 + $0x1e6] sm:$0xff] %vm1844, %v4343
      %4467 = vst.msk [vmem:[#allocation3 + $0x1ee] sm:$0xff] %vm1844, %v4345
      %4468 = vst.msk [vmem:[#allocation3 + $0x1f6] sm:$0xff] %vm1844, %v4347
      %4469 = vst.msk [vmem:[#allocation3 + $0x1fe] sm:$0xff] %vm1844, %v4349
      %v4470 = vld [vmem:[#allocation3 + $0x7] sm:$0xff]
      %v4471 = vld [vmem:[#allocation3 + $0xf] sm:$0xff]
      %v4472 = vld [vmem:[#allocation3 + $0x17] sm:$0xff]
      %v4473 = vld [vmem:[#allocation3 + $0x1f] sm:$0xff]
      %v4474 = vld [vmem:[#allocation3 + $0x27] sm:$0xff]
      %v4475 = vld [vmem:[#allocation3 + $0x2f] sm:$0xff]
      %v4476 = vld [vmem:[#allocation3 + $0x37] sm:$0xff]
      %v4477 = vld [vmem:[#allocation3 + $0x3f] sm:$0xff]
      %v4478 = vld [vmem:[#allocation3 + $0x47] sm:$0xff]
      %v4479 = vld [vmem:[#allocation3 + $0x4f] sm:$0xff]
      %v4480 = vld [vmem:[#allocation3 + $0x57] sm:$0xff]
      %v4481 = vld [vmem:[#allocation3 + $0x5f] sm:$0xff]
      %v4482 = vld [vmem:[#allocation3 + $0x67] sm:$0xff]
      %v4483 = vld [vmem:[#allocation3 + $0x6f] sm:$0xff]
      %v4484 = vld [vmem:[#allocation3 + $0x77] sm:$0xff]
      %v4485 = vld [vmem:[#allocation3 + $0x7f] sm:$0xff]
      %v4486 = vld [vmem:[#allocation3 + $0x87] sm:$0xff]
      %v4487 = vld [vmem:[#allocation3 + $0x8f] sm:$0xff]
      %v4488 = vld [vmem:[#allocation3 + $0x97] sm:$0xff]
      %v4489 = vld [vmem:[#allocation3 + $0x9f] sm:$0xff]
      %v4490 = vld [vmem:[#allocation3 + $0xa7] sm:$0xff]
      %v4491 = vld [vmem:[#allocation3 + $0xaf] sm:$0xff]
      %v4492 = vld [vmem:[#allocation3 + $0xb7] sm:$0xff]
      %v4493 = vld [vmem:[#allocation3 + $0xbf] sm:$0xff]
      %v4494 = vld [vmem:[#allocation3 + $0xc7] sm:$0xff]
      %v4495 = vld [vmem:[#allocation3 + $0xcf] sm:$0xff]
      %v4496 = vld [vmem:[#allocation3 + $0xd7] sm:$0xff]
      %v4497 = vld [vmem:[#allocation3 + $0xdf] sm:$0xff]
      %v4498 = vld [vmem:[#allocation3 + $0xe7] sm:$0xff]
      %v4499 = vld [vmem:[#allocation3 + $0xef] sm:$0xff]
      %v4500 = vld [vmem:[#allocation3 + $0xf7] sm:$0xff]
      %v4501 = vld [vmem:[#allocation3 + $0xff] sm:$0xff]
      %v4502 = vld [vmem:[#allocation3 + $0x107] sm:$0xff]
      %v4503 = vld [vmem:[#allocation3 + $0x10f] sm:$0xff]
      %v4504 = vld [vmem:[#allocation3 + $0x117] sm:$0xff]
      %v4505 = vld [vmem:[#allocation3 + $0x11f] sm:$0xff]
      %v4506 = vld [vmem:[#allocation3 + $0x127] sm:$0xff]
      %v4507 = vld [vmem:[#allocation3 + $0x12f] sm:$0xff]
      %v4508 = vld [vmem:[#allocation3 + $0x137] sm:$0xff]
      %v4509 = vld [vmem:[#allocation3 + $0x13f] sm:$0xff]
      %v4510 = vld [vmem:[#allocation3 + $0x147] sm:$0xff]
      %v4511 = vld [vmem:[#allocation3 + $0x14f] sm:$0xff]
      %v4512 = vld [vmem:[#allocation3 + $0x157] sm:$0xff]
      %v4513 = vld [vmem:[#allocation3 + $0x15f] sm:$0xff]
      %v4514 = vld [vmem:[#allocation3 + $0x167] sm:$0xff]
      %v4515 = vld [vmem:[#allocation3 + $0x16f] sm:$0xff]
      %v4516 = vld [vmem:[#allocation3 + $0x177] sm:$0xff]
      %v4517 = vld [vmem:[#allocation3 + $0x17f] sm:$0xff]
      %v4518 = vld [vmem:[#allocation3 + $0x187] sm:$0xff]
      %v4519 = vld [vmem:[#allocation3 + $0x18f] sm:$0xff]
      %v4520 = vld [vmem:[#allocation3 + $0x197] sm:$0xff]
      %v4521 = vld [vmem:[#allocation3 + $0x19f] sm:$0xff]
      %v4522 = vld [vmem:[#allocation3 + $0x1a7] sm:$0xff]
      %v4523 = vld [vmem:[#allocation3 + $0x1af] sm:$0xff]
      %v4524 = vld [vmem:[#allocation3 + $0x1b7] sm:$0xff]
      %v4525 = vld [vmem:[#allocation3 + $0x1bf] sm:$0xff]
      %v4526 = vld [vmem:[#allocation3 + $0x1c7] sm:$0xff]
      %v4527 = vld [vmem:[#allocation3 + $0x1cf] sm:$0xff]
      %v4528 = vld [vmem:[#allocation3 + $0x1d7] sm:$0xff]
      %v4529 = vld [vmem:[#allocation3 + $0x1df] sm:$0xff]
      %v4530 = vpack.c.bf16 %v4471, %v4470
      %v4531 = vpack.c.bf16 %v4473, %v4472
      %v4532 = vpack.c.bf16 %v4475, %v4474
      %v4533 = vpack.c.bf16 %v4477, %v4476
      %v4534 = vpack.c.bf16 %v4479, %v4478
      %v4535 = vpack.c.bf16 %v4481, %v4480
      %v4536 = vpack.c.bf16 %v4483, %v4482
      %v4537 = vpack.c.bf16 %v4485, %v4484
      %v4538 = vpack.c.bf16 %v4487, %v4486
      %v4539 = vpack.c.bf16 %v4489, %v4488
      %v4540 = vpack.c.bf16 %v4491, %v4490
      %v4541 = vpack.c.bf16 %v4493, %v4492
      %v4542 = vpack.c.bf16 %v4495, %v4494
      %v4543 = vpack.c.bf16 %v4497, %v4496
      %v4544 = vpack.c.bf16 %v4499, %v4498
      %v4545 = vpack.c.bf16 %v4501, %v4500
      %v4546 = vpack.c.bf16 %v4503, %v4502
      %v4547 = vpack.c.bf16 %v4505, %v4504
      %v4548 = vpack.c.bf16 %v4507, %v4506
      %v4549 = vpack.c.bf16 %v4509, %v4508
      %v4550 = vpack.c.bf16 %v4511, %v4510
      %v4551 = vpack.c.bf16 %v4513, %v4512
      %v4552 = vpack.c.bf16 %v4515, %v4514
      %v4553 = vpack.c.bf16 %v4517, %v4516
      %v4554 = vpack.c.bf16 %v4519, %v4518
      %v4555 = vpack.c.bf16 %v4521, %v4520
      %v4556 = vpack.c.bf16 %v4523, %v4522
      %v4557 = vpack.c.bf16 %v4525, %v4524
      %v4558 = vpack.c.bf16 %v4527, %v4526
      %v4559 = vpack.c.bf16 %v4529, %v4528
      %v4560 = vld [vmem:[%s3] sm:$0xf]
      %v4561 = vld [vmem:[%s3 + $0x4] sm:$0xf]
      %v4562 = vld [vmem:[%s3 + $0x8] sm:$0xf]
      %v4563 = vld [vmem:[%s3 + $0xc] sm:$0xf]
      %v4564 = vld [vmem:[%s3 + $0x10] sm:$0xf]
      %v4565 = vld [vmem:[%s3 + $0x14] sm:$0xf]
      %v4566 = vld [vmem:[%s3 + $0x18] sm:$0xf]
      %v4567 = vld [vmem:[%s3 + $0x1c] sm:$0xf]
      %v4568 = vld [vmem:[%s3 + $0x20] sm:$0xf]
      %v4569 = vld [vmem:[%s3 + $0x24] sm:$0xf]
      %v4570 = vld [vmem:[%s3 + $0x28] sm:$0xf]
      %v4571 = vld [vmem:[%s3 + $0x2c] sm:$0xf]
      %v4572 = vld [vmem:[#allocation3 + $0x1e7] sm:$0xff]
      %v4573 = vld [vmem:[#allocation3 + $0x1ef] sm:$0xff]
      %v4574 = vld [vmem:[#allocation3 + $0x1f7] sm:$0xff]
      %v4575 = vld [vmem:[#allocation3 + $0x1ff] sm:$0xff]
      %v4576 = vpack.c.bf16 %v4573, %v4572
      %v4577 = vpack.c.bf16 %v4575, %v4574
      %s4578 = scalar_lea.vmem %s3, 48
      %v4579 = vld [vmem:[%s4578] sm:$0xf]
      %v4580 = vld [vmem:[%s4578 + $0x4] sm:$0xf]
      %v4581 = vld [vmem:[%s4578 + $0x8] sm:$0xf]
      %v4582 = vld [vmem:[%s4578 + $0xc] sm:$0xf]
      %v4583 = vld [vmem:[%s4578 + $0x10] sm:$0xf]
      %v4584 = vld [vmem:[%s4578 + $0x14] sm:$0xf]
      %v4585 = vld [vmem:[%s4578 + $0x18] sm:$0xf]
      %v4586 = vld [vmem:[%s4578 + $0x1c] sm:$0xf]
      %v4587 = vld [vmem:[%s4578 + $0x20] sm:$0xf]
      %v4588 = vld [vmem:[%s4578 + $0x24] sm:$0xf]
      %v4589 = vld [vmem:[%s4578 + $0x28] sm:$0xf]
      %v4590 = vld [vmem:[%s4578 + $0x2c] sm:$0xf]
      %v4603 = vunpack.c.l.b16 %v4579
      %v4604 = vunpack.c.l.b16 %v4580
      %v4605 = vunpack.c.l.b16 %v4581
      %v4606 = vunpack.c.l.b16 %v4582
      %v4607 = vunpack.c.l.b16 %v4583
      %v4608 = vunpack.c.l.b16 %v4584
      %v4609 = vunpack.c.l.b16 %v4585
      %v4610 = vunpack.c.l.b16 %v4586
      %v4611 = vunpack.c.l.b16 %v4587
      %v4612 = vunpack.c.l.b16 %v4588
      %v4613 = vunpack.c.l.b16 %v4589
      %v4614 = vunpack.c.l.b16 %v4590
      %v4615 = vpack.c.b16 %v4604, %v4603
      %v4616 = vpack.c.b16 %v4606, %v4605
      %v4617 = vpack.c.b16 %v4608, %v4607
      %v4618 = vpack.c.b16 %v4610, %v4609
      %v4619 = vpack.c.b16 %v4612, %v4611
      %v4620 = vpack.c.b16 %v4614, %v4613
      %v4628 = vsel %vm2071, %v4532, 0
      %v4631 = vsel %vm2071, %v4533, 0
      %v4634 = vsel %vm2071, %v4534, 0
      %v4637 = vsel %vm2071, %v4535, 0
      %v4640 = vsel %vm2071, %v4536, 0
      %v4643 = vsel %vm2071, %v4537, 0
      %v4646 = vsel %vm2071, %v4538, 0
      %v4649 = vsel %vm2071, %v4539, 0
      %v4652 = vsel %vm2071, %v4540, 0
      %v4655 = vsel %vm2071, %v4541, 0
      %v4658 = vsel %vm2071, %v4542, 0
      %v4661 = vsel %vm2071, %v4543, 0
      %v4664 = vsel %vm2071, %v4544, 0
      %v4667 = vsel %vm2071, %v4545, 0
      %v4670 = vsel %vm2071, %v4546, 0
      %v4673 = vsel %vm2071, %v4547, 0
      %v4676 = vsel %vm2071, %v4548, 0
      %v4679 = vsel %vm2071, %v4549, 0
      %v4682 = vsel %vm2071, %v4550, 0
      %v4685 = vsel %vm2071, %v4551, 0
      %v4688 = vsel %vm2071, %v4552, 0
      %v4691 = vsel %vm2071, %v4553, 0
      %v4694 = vsel %vm2071, %v4554, 0
      %v4697 = vsel %vm2071, %v4555, 0
      %v4700 = vsel %vm2071, %v4556, 0
      %v4703 = vsel %vm2071, %v4557, 0
      %v4706 = vsel %vm2071, %v4558, 0
      %v4709 = vsel %vm2071, %v4559, 0
      %v4712 = vsel %vm2071, %v4576, 0
      %v4715 = vsel %vm2071, %v4577, 0
      %4717 = vmatprep.subr.bf16.mxu0 0
      %4718 = vmatpush1.bf16.msra.mxu0 0
      %4719 = vmatprep.subr.bf16.mxu0 0
      %4720 = vmatpush1.bf16.msra.mxu0 0
      %4721 = vmatprep.subr.bf16.mxu0 0
      %4722 = vmatpush1.bf16.msra.mxu0 %v4620
      %4723 = vmatprep.subr.bf16.mxu0 0
      %4724 = vmatpush1.bf16.msra.mxu0 %v4619
      %4725 = vmatprep.subr.bf16.mxu0 0
      %4726 = vmatpush1.bf16.msra.mxu0 %v4618
      %4727 = vmatprep.subr.bf16.mxu0 0
      %4728 = vmatpush1.bf16.msra.mxu0 %v4617
      %4729 = vmatprep.subr.bf16.mxu0 0
      %4730 = vmatpush1.bf16.msra.mxu0 %v4616
      %4731 = vmatprep.subr.bf16.mxu0 0
      %4732 = vmatpush1.bf16.msra.mxu0 %v4615
      %4733 = vmatprep.subr.bf16.mxu0 0
      %4734 = vmatpush2.bf16.msra.mxu0 0
      %4735 = vmatprep.subr.bf16.mxu0 0
      %4736 = vmatpush2.bf16.msra.mxu0 0
      %4737 = vmatprep.subr.bf16.mxu0 0
      %4738 = vmatpush2.bf16.msra.mxu0 0
      %4739 = vmatprep.subr.bf16.mxu0 0
      %4740 = vmatpush2.bf16.msra.mxu0 0
      %4741 = vmatprep.subr.bf16.mxu0 0
      %4742 = vmatpush2.bf16.msra.mxu0 0
      %4743 = vmatprep.subr.bf16.mxu0 0
      %4744 = vmatpush2.bf16.msra.mxu0 0
      %4745 = vmatprep.subr.bf16.mxu0 0
      %4746 = vmatpush2.bf16.msra.mxu0 0
      %4747 = vmatprep.subr.bf16.mxu0 0
      %4748 = vmatpush2.bf16.msra.mxu0 0
      %4749 = vmatprep.mubr.bf16.mxu0 0
      %4750 = vmatmul.mubr.bf16.gmra.mxu0 %v4628
      %v4751 = vpop.f32.mrf.mxu0
      %v4752 = vadd.f32 0.0, %v4751
      %v4753 = vpop.f32.mrf.mxu0
      %v4754 = vpop.f32.mrf.mxu0
      %v4755 = vadd.f32 0.0, %v4754
      %v4756 = vpop.f32.mrf.mxu0
      %4757 = vmatprep.mubr.bf16.mxu0 0
      %4758 = vmatmul.mubr.bf16.gmra.mxu0 %v4631
      %v4759 = vpop.f32.mrf.mxu0
      %v4760 = vadd.f32 0.0, %v4759
      %v4761 = vpop.f32.mrf.mxu0
      %v4762 = vpop.f32.mrf.mxu0
      %v4763 = vadd.f32 0.0, %v4762
      %v4764 = vpop.f32.mrf.mxu0
      %4765 = vmatprep.mubr.bf16.mxu0 0
      %4766 = vmatmul.mubr.bf16.gmra.mxu0 %v4634
      %v4767 = vpop.f32.mrf.mxu0
      %v4768 = vadd.f32 0.0, %v4767
      %v4769 = vpop.f32.mrf.mxu0
      %v4770 = vpop.f32.mrf.mxu0
      %v4771 = vadd.f32 0.0, %v4770
      %v4772 = vpop.f32.mrf.mxu0
      %4773 = vmatprep.mubr.bf16.mxu0 0
      %4774 = vmatmul.mubr.bf16.gmra.mxu0 %v4637
      %v4775 = vpop.f32.mrf.mxu0
      %v4776 = vadd.f32 0.0, %v4775
      %v4777 = vpop.f32.mrf.mxu0
      %v4778 = vpop.f32.mrf.mxu0
      %v4779 = vadd.f32 0.0, %v4778
      %v4780 = vpop.f32.mrf.mxu0
      %4781 = vmatprep.mubr.bf16.mxu0 0
      %4782 = vmatmul.mubr.bf16.gmra.mxu0 %v4640
      %v4783 = vpop.f32.mrf.mxu0
      %v4784 = vadd.f32 0.0, %v4783
      %v4785 = vpop.f32.mrf.mxu0
      %v4786 = vpop.f32.mrf.mxu0
      %v4787 = vadd.f32 0.0, %v4786
      %v4788 = vpop.f32.mrf.mxu0
      %4789 = vmatprep.mubr.bf16.mxu0 0
      %4790 = vmatmul.mubr.bf16.gmra.mxu0 %v4643
      %v4791 = vpop.f32.mrf.mxu0
      %v4792 = vadd.f32 0.0, %v4791
      %v4793 = vpop.f32.mrf.mxu0
      %v4794 = vpop.f32.mrf.mxu0
      %v4795 = vadd.f32 0.0, %v4794
      %v4796 = vpop.f32.mrf.mxu0
      %4797 = vmatprep.mubr.bf16.mxu0 0
      %4798 = vmatmul.mubr.bf16.gmra.mxu0 %v4646
      %v4799 = vpop.f32.mrf.mxu0
      %v4800 = vadd.f32 0.0, %v4799
      %v4801 = vpop.f32.mrf.mxu0
      %v4802 = vpop.f32.mrf.mxu0
      %v4803 = vadd.f32 0.0, %v4802
      %v4804 = vpop.f32.mrf.mxu0
      %4805 = vmatprep.mubr.bf16.mxu0 0
      %4806 = vmatmul.mubr.bf16.gmra.mxu0 %v4649
      %v4807 = vpop.f32.mrf.mxu0
      %v4808 = vadd.f32 0.0, %v4807
      %v4809 = vpop.f32.mrf.mxu0
      %v4810 = vpop.f32.mrf.mxu0
      %v4811 = vadd.f32 0.0, %v4810
      %v4812 = vpop.f32.mrf.mxu0
      %4813 = vmatprep.mubr.bf16.mxu0 0
      %4814 = vmatmul.mubr.bf16.gmra.mxu0 %v4652
      %v4815 = vpop.f32.mrf.mxu0
      %v4816 = vadd.f32 0.0, %v4815
      %v4817 = vpop.f32.mrf.mxu0
      %v4818 = vpop.f32.mrf.mxu0
      %v4819 = vadd.f32 0.0, %v4818
      %v4820 = vpop.f32.mrf.mxu0
      %4821 = vmatprep.mubr.bf16.mxu0 0
      %4822 = vmatmul.mubr.bf16.gmra.mxu0 %v4655
      %v4823 = vpop.f32.mrf.mxu0
      %v4824 = vadd.f32 0.0, %v4823
      %v4825 = vpop.f32.mrf.mxu0
      %v4826 = vpop.f32.mrf.mxu0
      %v4827 = vadd.f32 0.0, %v4826
      %v4828 = vpop.f32.mrf.mxu0
      %4829 = vmatprep.mubr.bf16.mxu0 0
      %4830 = vmatmul.mubr.bf16.gmra.mxu0 %v4658
      %v4831 = vpop.f32.mrf.mxu0
      %v4832 = vadd.f32 0.0, %v4831
      %v4833 = vpop.f32.mrf.mxu0
      %v4834 = vpop.f32.mrf.mxu0
      %v4835 = vadd.f32 0.0, %v4834
      %v4836 = vpop.f32.mrf.mxu0
      %4837 = vmatprep.mubr.bf16.mxu0 0
      %4838 = vmatmul.mubr.bf16.gmra.mxu0 %v4661
      %v4839 = vpop.f32.mrf.mxu0
      %v4840 = vadd.f32 0.0, %v4839
      %v4841 = vpop.f32.mrf.mxu0
      %v4842 = vpop.f32.mrf.mxu0
      %v4843 = vadd.f32 0.0, %v4842
      %v4844 = vpop.f32.mrf.mxu0
      %4845 = vmatprep.mubr.bf16.mxu0 0
      %4846 = vmatmul.mubr.bf16.gmra.mxu0 %v4664
      %v4847 = vpop.f32.mrf.mxu0
      %v4848 = vadd.f32 0.0, %v4847
      %v4849 = vpop.f32.mrf.mxu0
      %v4850 = vpop.f32.mrf.mxu0
      %v4851 = vadd.f32 0.0, %v4850
      %v4852 = vpop.f32.mrf.mxu0
      %4853 = vmatprep.mubr.bf16.mxu0 0
      %4854 = vmatmul.mubr.bf16.gmra.mxu0 %v4667
      %v4855 = vpop.f32.mrf.mxu0
      %v4856 = vadd.f32 0.0, %v4855
      %v4857 = vpop.f32.mrf.mxu0
      %v4858 = vpop.f32.mrf.mxu0
      %v4859 = vadd.f32 0.0, %v4858
      %v4860 = vpop.f32.mrf.mxu0
      %4861 = vmatprep.mubr.bf16.mxu0 0
      %4862 = vmatmul.mubr.bf16.gmra.mxu0 %v4670
      %v4863 = vpop.f32.mrf.mxu0
      %v4864 = vadd.f32 0.0, %v4863
      %v4865 = vpop.f32.mrf.mxu0
      %v4866 = vpop.f32.mrf.mxu0
      %v4867 = vadd.f32 0.0, %v4866
      %v4868 = vpop.f32.mrf.mxu0
      %4869 = vmatprep.mubr.bf16.mxu0 0
      %4870 = vmatmul.mubr.bf16.gmra.mxu0 %v4673
      %v4871 = vpop.f32.mrf.mxu0
      %v4872 = vadd.f32 0.0, %v4871
      %v4873 = vpop.f32.mrf.mxu0
      %v4874 = vpop.f32.mrf.mxu0
      %v4875 = vadd.f32 0.0, %v4874
      %v4876 = vpop.f32.mrf.mxu0
      %4877 = vmatprep.mubr.bf16.mxu0 0
      %4878 = vmatmul.mubr.bf16.gmra.mxu0 %v4676
      %v4879 = vpop.f32.mrf.mxu0
      %v4880 = vadd.f32 0.0, %v4879
      %v4881 = vpop.f32.mrf.mxu0
      %v4882 = vpop.f32.mrf.mxu0
      %v4883 = vadd.f32 0.0, %v4882
      %v4884 = vpop.f32.mrf.mxu0
      %4885 = vmatprep.mubr.bf16.mxu0 0
      %4886 = vmatmul.mubr.bf16.gmra.mxu0 %v4679
      %v4887 = vpop.f32.mrf.mxu0
      %v4888 = vadd.f32 0.0, %v4887
      %v4889 = vpop.f32.mrf.mxu0
      %v4890 = vpop.f32.mrf.mxu0
      %v4891 = vadd.f32 0.0, %v4890
      %v4892 = vpop.f32.mrf.mxu0
      %4893 = vmatprep.mubr.bf16.mxu0 0
      %4894 = vmatmul.mubr.bf16.gmra.mxu0 %v4682
      %v4895 = vpop.f32.mrf.mxu0
      %v4896 = vadd.f32 0.0, %v4895
      %v4897 = vpop.f32.mrf.mxu0
      %v4898 = vpop.f32.mrf.mxu0
      %v4899 = vadd.f32 0.0, %v4898
      %v4900 = vpop.f32.mrf.mxu0
      %4901 = vmatprep.mubr.bf16.mxu0 0
      %4902 = vmatmul.mubr.bf16.gmra.mxu0 %v4685
      %v4903 = vpop.f32.mrf.mxu0
      %v4904 = vadd.f32 0.0, %v4903
      %v4905 = vpop.f32.mrf.mxu0
      %v4906 = vpop.f32.mrf.mxu0
      %v4907 = vadd.f32 0.0, %v4906
      %v4908 = vpop.f32.mrf.mxu0
      %4909 = vmatprep.mubr.bf16.mxu0 0
      %4910 = vmatmul.mubr.bf16.gmra.mxu0 %v4688
      %v4911 = vpop.f32.mrf.mxu0
      %v4912 = vadd.f32 0.0, %v4911
      %v4913 = vpop.f32.mrf.mxu0
      %v4914 = vpop.f32.mrf.mxu0
      %v4915 = vadd.f32 0.0, %v4914
      %v4916 = vpop.f32.mrf.mxu0
      %4917 = vmatprep.mubr.bf16.mxu0 0
      %4918 = vmatmul.mubr.bf16.gmra.mxu0 %v4691
      %v4919 = vpop.f32.mrf.mxu0
      %v4920 = vadd.f32 0.0, %v4919
      %v4921 = vpop.f32.mrf.mxu0
      %v4922 = vpop.f32.mrf.mxu0
      %v4923 = vadd.f32 0.0, %v4922
      %v4924 = vpop.f32.mrf.mxu0
      %4925 = vmatprep.mubr.bf16.mxu0 0
      %4926 = vmatmul.mubr.bf16.gmra.mxu0 %v4694
      %v4927 = vpop.f32.mrf.mxu0
      %v4928 = vadd.f32 0.0, %v4927
      %v4929 = vpop.f32.mrf.mxu0
      %v4930 = vpop.f32.mrf.mxu0
      %v4931 = vadd.f32 0.0, %v4930
      %v4932 = vpop.f32.mrf.mxu0
      %4933 = vmatprep.mubr.bf16.mxu0 0
      %4934 = vmatmul.mubr.bf16.gmra.mxu0 %v4697
      %v4935 = vpop.f32.mrf.mxu0
      %v4936 = vadd.f32 0.0, %v4935
      %v4937 = vpop.f32.mrf.mxu0
      %v4938 = vpop.f32.mrf.mxu0
      %v4939 = vadd.f32 0.0, %v4938
      %v4940 = vpop.f32.mrf.mxu0
      %4941 = vmatprep.mubr.bf16.mxu0 0
      %4942 = vmatmul.mubr.bf16.gmra.mxu0 %v4700
      %v4943 = vpop.f32.mrf.mxu0
      %v4944 = vadd.f32 0.0, %v4943
      %v4945 = vpop.f32.mrf.mxu0
      %v4946 = vpop.f32.mrf.mxu0
      %v4947 = vadd.f32 0.0, %v4946
      %v4948 = vpop.f32.mrf.mxu0
      %4949 = vmatprep.mubr.bf16.mxu0 0
      %4950 = vmatmul.mubr.bf16.gmra.mxu0 %v4703
      %v4951 = vpop.f32.mrf.mxu0
      %v4952 = vadd.f32 0.0, %v4951
      %v4953 = vpop.f32.mrf.mxu0
      %v4954 = vpop.f32.mrf.mxu0
      %v4955 = vadd.f32 0.0, %v4954
      %v4956 = vpop.f32.mrf.mxu0
      %4957 = vmatprep.mubr.bf16.mxu0 0
      %4958 = vmatmul.mubr.bf16.gmra.mxu0 %v4706
      %v4959 = vpop.f32.mrf.mxu0
      %v4960 = vadd.f32 0.0, %v4959
      %v4961 = vpop.f32.mrf.mxu0
      %v4962 = vpop.f32.mrf.mxu0
      %v4963 = vadd.f32 0.0, %v4962
      %v4964 = vpop.f32.mrf.mxu0
      %4965 = vmatprep.mubr.bf16.mxu0 0
      %4966 = vmatmul.mubr.bf16.gmra.mxu0 %v4709
      %v4967 = vpop.f32.mrf.mxu0
      %v4968 = vadd.f32 0.0, %v4967
      %v4969 = vpop.f32.mrf.mxu0
      %v4970 = vpop.f32.mrf.mxu0
      %v4971 = vadd.f32 0.0, %v4970
      %v4972 = vpop.f32.mrf.mxu0
      %4973 = vmatprep.mubr.bf16.mxu0 0
      %4974 = vmatmul.mubr.bf16.gmra.mxu0 %v4712
      %v4975 = vpop.f32.mrf.mxu0
      %v4976 = vadd.f32 0.0, %v4975
      %v4977 = vpop.f32.mrf.mxu0
      %v4978 = vpop.f32.mrf.mxu0
      %v4979 = vadd.f32 0.0, %v4978
      %v4980 = vpop.f32.mrf.mxu0
      %4981 = vmatprep.mubr.bf16.mxu0 0
      %4982 = vmatmul.mubr.bf16.gmra.mxu0 %v4715
      %v4983 = vpop.f32.mrf.mxu0
      %v4984 = vadd.f32 0.0, %v4983
      %v4985 = vpop.f32.mrf.mxu0
      %v4986 = vpop.f32.mrf.mxu0
      %v4987 = vadd.f32 0.0, %v4986
      %v4988 = vpop.f32.mrf.mxu0
      %4989 = vdwg.mxu0
      %v5002 = vunpack.c.l.b16 %v4560
      %v5003 = vunpack.c.l.b16 %v4561
      %v5004 = vunpack.c.l.b16 %v4562
      %v5005 = vunpack.c.l.b16 %v4563
      %v5006 = vunpack.c.l.b16 %v4564
      %v5007 = vunpack.c.l.b16 %v4565
      %v5008 = vunpack.c.l.b16 %v4566
      %v5009 = vunpack.c.l.b16 %v4567
      %v5010 = vunpack.c.l.b16 %v4568
      %v5011 = vunpack.c.l.b16 %v4569
      %v5012 = vunpack.c.l.b16 %v4570
      %v5013 = vunpack.c.l.b16 %v4571
      %v5014 = vpack.c.b16 %v5003, %v5002
      %v5015 = vpack.c.b16 %v5005, %v5004
      %v5016 = vpack.c.b16 %v5007, %v5006
      %v5017 = vpack.c.b16 %v5009, %v5008
      %v5018 = vpack.c.b16 %v5011, %v5010
      %v5019 = vpack.c.b16 %v5013, %v5012
      %v5027 = vsel %vm2071, %v4530, 0
      %v5030 = vsel %vm2071, %v4531, 0
      %5032 = vmatprep.subr.bf16.mxu0 0
      %5033 = vmatpush1.bf16.msra.mxu0 0
      %5034 = vmatprep.subr.bf16.mxu0 0
      %5035 = vmatpush1.bf16.msra.mxu0 0
      %5036 = vmatprep.subr.bf16.mxu0 0
      %5037 = vmatpush1.bf16.msra.mxu0 %v5019
      %5038 = vmatprep.subr.bf16.mxu0 0
      %5039 = vmatpush1.bf16.msra.mxu0 %v5018
      %5040 = vmatprep.subr.bf16.mxu0 0
      %5041 = vmatpush1.bf16.msra.mxu0 %v5017
      %5042 = vmatprep.subr.bf16.mxu0 0
      %5043 = vmatpush1.bf16.msra.mxu0 %v5016
      %5044 = vmatprep.subr.bf16.mxu0 0
      %5045 = vmatpush1.bf16.msra.mxu0 %v5015
      %5046 = vmatprep.subr.bf16.mxu0 0
      %5047 = vmatpush1.bf16.msra.mxu0 %v5014
      %5048 = vmatprep.subr.bf16.mxu0 0
      %5049 = vmatpush2.bf16.msra.mxu0 0
      %5050 = vmatprep.subr.bf16.mxu0 0
      %5051 = vmatpush2.bf16.msra.mxu0 0
      %5052 = vmatprep.subr.bf16.mxu0 0
      %5053 = vmatpush2.bf16.msra.mxu0 0
      %5054 = vmatprep.subr.bf16.mxu0 0
      %5055 = vmatpush2.bf16.msra.mxu0 0
      %5056 = vmatprep.subr.bf16.mxu0 0
      %5057 = vmatpush2.bf16.msra.mxu0 0
      %5058 = vmatprep.subr.bf16.mxu0 0
      %5059 = vmatpush2.bf16.msra.mxu0 0
      %5060 = vmatprep.subr.bf16.mxu0 0
      %5061 = vmatpush2.bf16.msra.mxu0 0
      %5062 = vmatprep.subr.bf16.mxu0 0
      %5063 = vmatpush2.bf16.msra.mxu0 0
      %5064 = vmatprep.mubr.bf16.mxu0 0
      %5065 = vmatmul.mubr.bf16.gmra.mxu0 %v5027
      %v5066 = vpop.f32.mrf.mxu0
      %v5067 = vadd.f32 %v4752, %v5066
      %v5068 = vpop.f32.mrf.mxu0
      %v5069 = vpop.f32.mrf.mxu0
      %v5070 = vadd.f32 %v4755, %v5069
      %v5071 = vpop.f32.mrf.mxu0
      %5072 = vmatprep.mubr.bf16.mxu0 0
      %5073 = vmatmul.mubr.bf16.gmra.mxu0 %v5030
      %v5074 = vpop.f32.mrf.mxu0
      %v5075 = vadd.f32 %v4760, %v5074
      %v5076 = vpop.f32.mrf.mxu0
      %v5077 = vpop.f32.mrf.mxu0
      %v5078 = vadd.f32 %v4763, %v5077
      %v5079 = vpop.f32.mrf.mxu0
      %5080 = vmatprep.mubr.bf16.mxu0 0
      %5081 = vmatmul.mubr.bf16.gmra.mxu0 %v4628
      %v5082 = vpop.f32.mrf.mxu0
      %v5083 = vadd.f32 %v4768, %v5082
      %v5084 = vpop.f32.mrf.mxu0
      %v5085 = vpop.f32.mrf.mxu0
      %v5086 = vadd.f32 %v4771, %v5085
      %v5087 = vpop.f32.mrf.mxu0
      %5088 = vmatprep.mubr.bf16.mxu0 0
      %5089 = vmatmul.mubr.bf16.gmra.mxu0 %v4631
      %v5090 = vpop.f32.mrf.mxu0
      %v5091 = vadd.f32 %v4776, %v5090
      %v5092 = vpop.f32.mrf.mxu0
      %v5093 = vpop.f32.mrf.mxu0
      %v5094 = vadd.f32 %v4779, %v5093
      %v5095 = vpop.f32.mrf.mxu0
      %5096 = vmatprep.mubr.bf16.mxu0 0
      %5097 = vmatmul.mubr.bf16.gmra.mxu0 %v4634
      %v5098 = vpop.f32.mrf.mxu0
      %v5099 = vadd.f32 %v4784, %v5098
      %v5100 = vpop.f32.mrf.mxu0
      %v5101 = vpop.f32.mrf.mxu0
      %v5102 = vadd.f32 %v4787, %v5101
      %v5103 = vpop.f32.mrf.mxu0
      %5104 = vmatprep.mubr.bf16.mxu0 0
      %5105 = vmatmul.mubr.bf16.gmra.mxu0 %v4637
      %v5106 = vpop.f32.mrf.mxu0
      %v5107 = vadd.f32 %v4792, %v5106
      %v5108 = vpop.f32.mrf.mxu0
      %v5109 = vpop.f32.mrf.mxu0
      %v5110 = vadd.f32 %v4795, %v5109
      %v5111 = vpop.f32.mrf.mxu0
      %5112 = vmatprep.mubr.bf16.mxu0 0
      %5113 = vmatmul.mubr.bf16.gmra.mxu0 %v4640
      %v5114 = vpop.f32.mrf.mxu0
      %v5115 = vadd.f32 %v4800, %v5114
      %v5116 = vpop.f32.mrf.mxu0
      %v5117 = vpop.f32.mrf.mxu0
      %v5118 = vadd.f32 %v4803, %v5117
      %v5119 = vpop.f32.mrf.mxu0
      %5120 = vmatprep.mubr.bf16.mxu0 0
      %5121 = vmatmul.mubr.bf16.gmra.mxu0 %v4643
      %v5122 = vpop.f32.mrf.mxu0
      %v5123 = vadd.f32 %v4808, %v5122
      %v5124 = vpop.f32.mrf.mxu0
      %v5125 = vpop.f32.mrf.mxu0
      %v5126 = vadd.f32 %v4811, %v5125
      %v5127 = vpop.f32.mrf.mxu0
      %5128 = vmatprep.mubr.bf16.mxu0 0
      %5129 = vmatmul.mubr.bf16.gmra.mxu0 %v4646
      %v5130 = vpop.f32.mrf.mxu0
      %v5131 = vadd.f32 %v4816, %v5130
      %v5132 = vpop.f32.mrf.mxu0
      %v5133 = vpop.f32.mrf.mxu0
      %v5134 = vadd.f32 %v4819, %v5133
      %v5135 = vpop.f32.mrf.mxu0
      %5136 = vmatprep.mubr.bf16.mxu0 0
      %5137 = vmatmul.mubr.bf16.gmra.mxu0 %v4649
      %v5138 = vpop.f32.mrf.mxu0
      %v5139 = vadd.f32 %v4824, %v5138
      %v5140 = vpop.f32.mrf.mxu0
      %v5141 = vpop.f32.mrf.mxu0
      %v5142 = vadd.f32 %v4827, %v5141
      %v5143 = vpop.f32.mrf.mxu0
      %5144 = vmatprep.mubr.bf16.mxu0 0
      %5145 = vmatmul.mubr.bf16.gmra.mxu0 %v4652
      %v5146 = vpop.f32.mrf.mxu0
      %v5147 = vadd.f32 %v4832, %v5146
      %v5148 = vpop.f32.mrf.mxu0
      %v5149 = vpop.f32.mrf.mxu0
      %v5150 = vadd.f32 %v4835, %v5149
      %v5151 = vpop.f32.mrf.mxu0
      %5152 = vmatprep.mubr.bf16.mxu0 0
      %5153 = vmatmul.mubr.bf16.gmra.mxu0 %v4655
      %v5154 = vpop.f32.mrf.mxu0
      %v5155 = vadd.f32 %v4840, %v5154
      %v5156 = vpop.f32.mrf.mxu0
      %v5157 = vpop.f32.mrf.mxu0
      %v5158 = vadd.f32 %v4843, %v5157
      %v5159 = vpop.f32.mrf.mxu0
      %5160 = vmatprep.mubr.bf16.mxu0 0
      %5161 = vmatmul.mubr.bf16.gmra.mxu0 %v4658
      %v5162 = vpop.f32.mrf.mxu0
      %v5163 = vadd.f32 %v4848, %v5162
      %v5164 = vpop.f32.mrf.mxu0
      %v5165 = vpop.f32.mrf.mxu0
      %v5166 = vadd.f32 %v4851, %v5165
      %v5167 = vpop.f32.mrf.mxu0
      %5168 = vmatprep.mubr.bf16.mxu0 0
      %5169 = vmatmul.mubr.bf16.gmra.mxu0 %v4661
      %v5170 = vpop.f32.mrf.mxu0
      %v5171 = vadd.f32 %v4856, %v5170
      %v5172 = vpop.f32.mrf.mxu0
      %v5173 = vpop.f32.mrf.mxu0
      %v5174 = vadd.f32 %v4859, %v5173
      %v5175 = vpop.f32.mrf.mxu0
      %5176 = vmatprep.mubr.bf16.mxu0 0
      %5177 = vmatmul.mubr.bf16.gmra.mxu0 %v4664
      %v5178 = vpop.f32.mrf.mxu0
      %v5179 = vadd.f32 %v4864, %v5178
      %v5180 = vpop.f32.mrf.mxu0
      %v5181 = vpop.f32.mrf.mxu0
      %v5182 = vadd.f32 %v4867, %v5181
      %v5183 = vpop.f32.mrf.mxu0
      %5184 = vmatprep.mubr.bf16.mxu0 0
      %5185 = vmatmul.mubr.bf16.gmra.mxu0 %v4667
      %v5186 = vpop.f32.mrf.mxu0
      %v5187 = vadd.f32 %v4872, %v5186
      %v5188 = vpop.f32.mrf.mxu0
      %v5189 = vpop.f32.mrf.mxu0
      %v5190 = vadd.f32 %v4875, %v5189
      %v5191 = vpop.f32.mrf.mxu0
      %5192 = vmatprep.mubr.bf16.mxu0 0
      %5193 = vmatmul.mubr.bf16.gmra.mxu0 %v4670
      %v5194 = vpop.f32.mrf.mxu0
      %v5195 = vadd.f32 %v4880, %v5194
      %v5196 = vpop.f32.mrf.mxu0
      %v5197 = vpop.f32.mrf.mxu0
      %v5198 = vadd.f32 %v4883, %v5197
      %v5199 = vpop.f32.mrf.mxu0
      %5200 = vmatprep.mubr.bf16.mxu0 0
      %5201 = vmatmul.mubr.bf16.gmra.mxu0 %v4673
      %v5202 = vpop.f32.mrf.mxu0
      %v5203 = vadd.f32 %v4888, %v5202
      %v5204 = vpop.f32.mrf.mxu0
      %v5205 = vpop.f32.mrf.mxu0
      %v5206 = vadd.f32 %v4891, %v5205
      %v5207 = vpop.f32.mrf.mxu0
      %5208 = vmatprep.mubr.bf16.mxu0 0
      %5209 = vmatmul.mubr.bf16.gmra.mxu0 %v4676
      %v5210 = vpop.f32.mrf.mxu0
      %v5211 = vadd.f32 %v4896, %v5210
      %v5212 = vpop.f32.mrf.mxu0
      %v5213 = vpop.f32.mrf.mxu0
      %v5214 = vadd.f32 %v4899, %v5213
      %v5215 = vpop.f32.mrf.mxu0
      %5216 = vmatprep.mubr.bf16.mxu0 0
      %5217 = vmatmul.mubr.bf16.gmra.mxu0 %v4679
      %v5218 = vpop.f32.mrf.mxu0
      %v5219 = vadd.f32 %v4904, %v5218
      %v5220 = vpop.f32.mrf.mxu0
      %v5221 = vpop.f32.mrf.mxu0
      %v5222 = vadd.f32 %v4907, %v5221
      %v5223 = vpop.f32.mrf.mxu0
      %5224 = vmatprep.mubr.bf16.mxu0 0
      %5225 = vmatmul.mubr.bf16.gmra.mxu0 %v4682
      %v5226 = vpop.f32.mrf.mxu0
      %v5227 = vadd.f32 %v4912, %v5226
      %v5228 = vpop.f32.mrf.mxu0
      %v5229 = vpop.f32.mrf.mxu0
      %v5230 = vadd.f32 %v4915, %v5229
      %v5231 = vpop.f32.mrf.mxu0
      %5232 = vmatprep.mubr.bf16.mxu0 0
      %5233 = vmatmul.mubr.bf16.gmra.mxu0 %v4685
      %v5234 = vpop.f32.mrf.mxu0
      %v5235 = vadd.f32 %v4920, %v5234
      %v5236 = vpop.f32.mrf.mxu0
      %v5237 = vpop.f32.mrf.mxu0
      %v5238 = vadd.f32 %v4923, %v5237
      %v5239 = vpop.f32.mrf.mxu0
      %5240 = vmatprep.mubr.bf16.mxu0 0
      %5241 = vmatmul.mubr.bf16.gmra.mxu0 %v4688
      %v5242 = vpop.f32.mrf.mxu0
      %v5243 = vadd.f32 %v4928, %v5242
      %v5244 = vpop.f32.mrf.mxu0
      %v5245 = vpop.f32.mrf.mxu0
      %v5246 = vadd.f32 %v4931, %v5245
      %v5247 = vpop.f32.mrf.mxu0
      %5248 = vmatprep.mubr.bf16.mxu0 0
      %5249 = vmatmul.mubr.bf16.gmra.mxu0 %v4691
      %v5250 = vpop.f32.mrf.mxu0
      %v5251 = vadd.f32 %v4936, %v5250
      %v5252 = vpop.f32.mrf.mxu0
      %v5253 = vpop.f32.mrf.mxu0
      %v5254 = vadd.f32 %v4939, %v5253
      %v5255 = vpop.f32.mrf.mxu0
      %5256 = vmatprep.mubr.bf16.mxu0 0
      %5257 = vmatmul.mubr.bf16.gmra.mxu0 %v4694
      %v5258 = vpop.f32.mrf.mxu0
      %v5259 = vadd.f32 %v4944, %v5258
      %v5260 = vpop.f32.mrf.mxu0
      %v5261 = vpop.f32.mrf.mxu0
      %v5262 = vadd.f32 %v4947, %v5261
      %v5263 = vpop.f32.mrf.mxu0
      %5264 = vmatprep.mubr.bf16.mxu0 0
      %5265 = vmatmul.mubr.bf16.gmra.mxu0 %v4697
      %v5266 = vpop.f32.mrf.mxu0
      %v5267 = vadd.f32 %v4952, %v5266
      %v5268 = vpop.f32.mrf.mxu0
      %v5269 = vpop.f32.mrf.mxu0
      %v5270 = vadd.f32 %v4955, %v5269
      %v5271 = vpop.f32.mrf.mxu0
      %5272 = vmatprep.mubr.bf16.mxu0 0
      %5273 = vmatmul.mubr.bf16.gmra.mxu0 %v4700
      %v5274 = vpop.f32.mrf.mxu0
      %v5275 = vadd.f32 %v4960, %v5274
      %v5276 = vpop.f32.mrf.mxu0
      %v5277 = vpop.f32.mrf.mxu0
      %v5278 = vadd.f32 %v4963, %v5277
      %v5279 = vpop.f32.mrf.mxu0
      %5280 = vmatprep.mubr.bf16.mxu0 0
      %5281 = vmatmul.mubr.bf16.gmra.mxu0 %v4703
      %v5282 = vpop.f32.mrf.mxu0
      %v5283 = vadd.f32 %v4968, %v5282
      %v5284 = vpop.f32.mrf.mxu0
      %v5285 = vpop.f32.mrf.mxu0
      %v5286 = vadd.f32 %v4971, %v5285
      %v5287 = vpop.f32.mrf.mxu0
      %5288 = vmatprep.mubr.bf16.mxu0 0
      %5289 = vmatmul.mubr.bf16.gmra.mxu0 %v4706
      %v5290 = vpop.f32.mrf.mxu0
      %v5291 = vadd.f32 %v4976, %v5290
      %v5292 = vpop.f32.mrf.mxu0
      %v5293 = vpop.f32.mrf.mxu0
      %v5294 = vadd.f32 %v4979, %v5293
      %v5295 = vpop.f32.mrf.mxu0
      %5296 = vmatprep.mubr.bf16.mxu0 0
      %5297 = vmatmul.mubr.bf16.gmra.mxu0 %v4709
      %v5298 = vpop.f32.mrf.mxu0
      %v5299 = vadd.f32 %v4984, %v5298
      %v5300 = vpop.f32.mrf.mxu0
      %v5301 = vpop.f32.mrf.mxu0
      %v5302 = vadd.f32 %v4987, %v5301
      %v5303 = vpop.f32.mrf.mxu0
      %5304 = vdwg.mxu0
      %v5305 = vld [vmem:[#allocation3 + $0x47] sm:$0xff]
      %v5306 = vld [vmem:[#allocation3 + $0x4f] sm:$0xff]
      %v5307 = vld [vmem:[#allocation3 + $0x57] sm:$0xff]
      %v5308 = vld [vmem:[#allocation3 + $0x5f] sm:$0xff]
      %v5309 = vld [vmem:[#allocation3 + $0x67] sm:$0xff]
      %v5310 = vld [vmem:[#allocation3 + $0x6f] sm:$0xff]
      %v5311 = vld [vmem:[#allocation3 + $0x77] sm:$0xff]
      %v5312 = vld [vmem:[#allocation3 + $0x7f] sm:$0xff]
      %v5313 = vld [vmem:[#allocation3 + $0x87] sm:$0xff]
      %v5314 = vld [vmem:[#allocation3 + $0x8f] sm:$0xff]
      %v5315 = vld [vmem:[#allocation3 + $0x97] sm:$0xff]
      %v5316 = vld [vmem:[#allocation3 + $0x9f] sm:$0xff]
      %v5317 = vld [vmem:[#allocation3 + $0xa7] sm:$0xff]
      %v5318 = vld [vmem:[#allocation3 + $0xaf] sm:$0xff]
      %v5319 = vld [vmem:[#allocation3 + $0xb7] sm:$0xff]
      %v5320 = vld [vmem:[#allocation3 + $0xbf] sm:$0xff]
      %v5321 = vld [vmem:[#allocation3 + $0xc7] sm:$0xff]
      %v5322 = vld [vmem:[#allocation3 + $0xcf] sm:$0xff]
      %v5323 = vld [vmem:[#allocation3 + $0xd7] sm:$0xff]
      %v5324 = vld [vmem:[#allocation3 + $0xdf] sm:$0xff]
      %v5325 = vld [vmem:[#allocation3 + $0xe7] sm:$0xff]
      %v5326 = vld [vmem:[#allocation3 + $0xef] sm:$0xff]
      %v5327 = vld [vmem:[#allocation3 + $0xf7] sm:$0xff]
      %v5328 = vld [vmem:[#allocation3 + $0xff] sm:$0xff]
      %v5329 = vld [vmem:[#allocation3 + $0x107] sm:$0xff]
      %v5330 = vld [vmem:[#allocation3 + $0x10f] sm:$0xff]
      %v5331 = vld [vmem:[#allocation3 + $0x117] sm:$0xff]
      %v5332 = vld [vmem:[#allocation3 + $0x11f] sm:$0xff]
      %v5333 = vld [vmem:[#allocation3 + $0x127] sm:$0xff]
      %v5334 = vld [vmem:[#allocation3 + $0x12f] sm:$0xff]
      %v5335 = vld [vmem:[#allocation3 + $0x137] sm:$0xff]
      %v5336 = vld [vmem:[#allocation3 + $0x13f] sm:$0xff]
      %v5337 = vld [vmem:[#allocation3 + $0x147] sm:$0xff]
      %v5338 = vld [vmem:[#allocation3 + $0x14f] sm:$0xff]
      %v5339 = vld [vmem:[#allocation3 + $0x157] sm:$0xff]
      %v5340 = vld [vmem:[#allocation3 + $0x15f] sm:$0xff]
      %v5341 = vld [vmem:[#allocation3 + $0x167] sm:$0xff]
      %v5342 = vld [vmem:[#allocation3 + $0x16f] sm:$0xff]
      %v5343 = vld [vmem:[#allocation3 + $0x177] sm:$0xff]
      %v5344 = vld [vmem:[#allocation3 + $0x17f] sm:$0xff]
      %v5345 = vld [vmem:[#allocation3 + $0x187] sm:$0xff]
      %v5346 = vld [vmem:[#allocation3 + $0x18f] sm:$0xff]
      %v5347 = vld [vmem:[#allocation3 + $0x197] sm:$0xff]
      %v5348 = vld [vmem:[#allocation3 + $0x19f] sm:$0xff]
      %v5349 = vld [vmem:[#allocation3 + $0x1a7] sm:$0xff]
      %v5350 = vld [vmem:[#allocation3 + $0x1af] sm:$0xff]
      %v5351 = vld [vmem:[#allocation3 + $0x1b7] sm:$0xff]
      %v5352 = vld [vmem:[#allocation3 + $0x1bf] sm:$0xff]
      %v5353 = vld [vmem:[#allocation3 + $0x1c7] sm:$0xff]
      %v5354 = vld [vmem:[#allocation3 + $0x1cf] sm:$0xff]
      %v5355 = vld [vmem:[#allocation3 + $0x1d7] sm:$0xff]
      %v5356 = vld [vmem:[#allocation3 + $0x1df] sm:$0xff]
      %v5357 = vld [vmem:[#allocation3 + $0x1e7] sm:$0xff]
      %v5358 = vld [vmem:[#allocation3 + $0x1ef] sm:$0xff]
      %v5359 = vld [vmem:[#allocation3 + $0x1f7] sm:$0xff]
      %v5360 = vld [vmem:[#allocation3 + $0x1ff] sm:$0xff]
      %v5361 = vld [vmem:[#allocation3 + $0x207] sm:$0xff]
      %v5362 = vld [vmem:[#allocation3 + $0x20f] sm:$0xff]
      %v5363 = vld [vmem:[#allocation3 + $0x217] sm:$0xff]
      %v5364 = vld [vmem:[#allocation3 + $0x21f] sm:$0xff]
      %v5365 = vpack.c.bf16 %v5306, %v5305
      %v5366 = vpack.c.bf16 %v5308, %v5307
      %v5367 = vpack.c.bf16 %v5310, %v5309
      %v5368 = vpack.c.bf16 %v5312, %v5311
      %v5369 = vpack.c.bf16 %v5314, %v5313
      %v5370 = vpack.c.bf16 %v5316, %v5315
      %v5371 = vpack.c.bf16 %v5318, %v5317
      %v5372 = vpack.c.bf16 %v5320, %v5319
      %v5373 = vpack.c.bf16 %v5322, %v5321
      %v5374 = vpack.c.bf16 %v5324, %v5323
      %v5375 = vpack.c.bf16 %v5326, %v5325
      %v5376 = vpack.c.bf16 %v5328, %v5327
      %v5377 = vpack.c.bf16 %v5330, %v5329
      %v5378 = vpack.c.bf16 %v5332, %v5331
      %v5379 = vpack.c.bf16 %v5334, %v5333
      %v5380 = vpack.c.bf16 %v5336, %v5335
      %v5381 = vpack.c.bf16 %v5338, %v5337
      %v5382 = vpack.c.bf16 %v5340, %v5339
      %v5383 = vpack.c.bf16 %v5342, %v5341
      %v5384 = vpack.c.bf16 %v5344, %v5343
      %v5385 = vpack.c.bf16 %v5346, %v5345
      %v5386 = vpack.c.bf16 %v5348, %v5347
      %v5387 = vpack.c.bf16 %v5350, %v5349
      %v5388 = vpack.c.bf16 %v5352, %v5351
      %v5389 = vpack.c.bf16 %v5354, %v5353
      %v5390 = vpack.c.bf16 %v5356, %v5355
      %v5391 = vpack.c.bf16 %v5358, %v5357
      %v5392 = vpack.c.bf16 %v5360, %v5359
      %v5393 = vpack.c.bf16 %v5362, %v5361
      %v5394 = vpack.c.bf16 %v5364, %v5363
      %s5395 = scalar_lea.vmem %s3, 96
      %v5396 = vld [vmem:[%s5395] sm:$0xf]
      %v5397 = vld [vmem:[%s5395 + $0x4] sm:$0xf]
      %v5398 = vld [vmem:[%s5395 + $0x8] sm:$0xf]
      %v5399 = vld [vmem:[%s5395 + $0xc] sm:$0xf]
      %v5400 = vld [vmem:[%s5395 + $0x10] sm:$0xf]
      %v5401 = vld [vmem:[%s5395 + $0x14] sm:$0xf]
      %v5402 = vld [vmem:[%s5395 + $0x18] sm:$0xf]
      %v5403 = vld [vmem:[%s5395 + $0x1c] sm:$0xf]
      %v5404 = vld [vmem:[%s5395 + $0x20] sm:$0xf]
      %v5405 = vld [vmem:[%s5395 + $0x24] sm:$0xf]
      %v5406 = vld [vmem:[%s5395 + $0x28] sm:$0xf]
      %v5407 = vld [vmem:[%s5395 + $0x2c] sm:$0xf]
      %v5420 = vunpack.c.l.b16 %v5396
      %v5421 = vunpack.c.l.b16 %v5397
      %v5422 = vunpack.c.l.b16 %v5398
      %v5423 = vunpack.c.l.b16 %v5399
      %v5424 = vunpack.c.l.b16 %v5400
      %v5425 = vunpack.c.l.b16 %v5401
      %v5426 = vunpack.c.l.b16 %v5402
      %v5427 = vunpack.c.l.b16 %v5403
      %v5428 = vunpack.c.l.b16 %v5404
      %v5429 = vunpack.c.l.b16 %v5405
      %v5430 = vunpack.c.l.b16 %v5406
      %v5431 = vunpack.c.l.b16 %v5407
      %v5432 = vpack.c.b16 %v5421, %v5420
      %v5433 = vpack.c.b16 %v5423, %v5422
      %v5434 = vpack.c.b16 %v5425, %v5424
      %v5435 = vpack.c.b16 %v5427, %v5426
      %v5436 = vpack.c.b16 %v5429, %v5428
      %v5437 = vpack.c.b16 %v5431, %v5430
      %v5445 = vsel %vm2071, %v5365, 0
      %v5448 = vsel %vm2071, %v5366, 0
      %v5451 = vsel %vm2071, %v5367, 0
      %v5454 = vsel %vm2071, %v5368, 0
      %v5457 = vsel %vm2071, %v5369, 0
      %v5460 = vsel %vm2071, %v5370, 0
      %v5463 = vsel %vm2071, %v5371, 0
      %v5466 = vsel %vm2071, %v5372, 0
      %v5469 = vsel %vm2071, %v5373, 0
      %v5472 = vsel %vm2071, %v5374, 0
      %v5475 = vsel %vm2071, %v5375, 0
      %v5478 = vsel %vm2071, %v5376, 0
      %v5481 = vsel %vm2071, %v5377, 0
      %v5484 = vsel %vm2071, %v5378, 0
      %v5487 = vsel %vm2071, %v5379, 0
      %v5490 = vsel %vm2071, %v5380, 0
      %v5493 = vsel %vm2071, %v5381, 0
      %v5496 = vsel %vm2071, %v5382, 0
      %v5499 = vsel %vm2071, %v5383, 0
      %v5502 = vsel %vm2071, %v5384, 0
      %v5505 = vsel %vm2071, %v5385, 0
      %v5508 = vsel %vm2071, %v5386, 0
      %v5511 = vsel %vm2071, %v5387, 0
      %v5514 = vsel %vm2071, %v5388, 0
      %v5517 = vsel %vm2071, %v5389, 0
      %v5520 = vsel %vm2071, %v5390, 0
      %v5523 = vsel %vm2071, %v5391, 0
      %v5526 = vsel %vm2071, %v5392, 0
      %v5529 = vsel %vm2071, %v5393, 0
      %v5532 = vsel %vm2071, %v5394, 0
      %5534 = vmatprep.subr.bf16.mxu0 0
      %5535 = vmatpush1.bf16.msra.mxu0 0
      %5536 = vmatprep.subr.bf16.mxu0 0
      %5537 = vmatpush1.bf16.msra.mxu0 0
      %5538 = vmatprep.subr.bf16.mxu0 0
      %5539 = vmatpush1.bf16.msra.mxu0 %v5437
      %5540 = vmatprep.subr.bf16.mxu0 0
      %5541 = vmatpush1.bf16.msra.mxu0 %v5436
      %5542 = vmatprep.subr.bf16.mxu0 0
      %5543 = vmatpush1.bf16.msra.mxu0 %v5435
      %5544 = vmatprep.subr.bf16.mxu0 0
      %5545 = vmatpush1.bf16.msra.mxu0 %v5434
      %5546 = vmatprep.subr.bf16.mxu0 0
      %5547 = vmatpush1.bf16.msra.mxu0 %v5433
      %5548 = vmatprep.subr.bf16.mxu0 0
      %5549 = vmatpush1.bf16.msra.mxu0 %v5432
      %5550 = vmatprep.subr.bf16.mxu0 0
      %5551 = vmatpush2.bf16.msra.mxu0 0
      %5552 = vmatprep.subr.bf16.mxu0 0
      %5553 = vmatpush2.bf16.msra.mxu0 0
      %5554 = vmatprep.subr.bf16.mxu0 0
      %5555 = vmatpush2.bf16.msra.mxu0 0
      %5556 = vmatprep.subr.bf16.mxu0 0
      %5557 = vmatpush2.bf16.msra.mxu0 0
      %5558 = vmatprep.subr.bf16.mxu0 0
      %5559 = vmatpush2.bf16.msra.mxu0 0
      %5560 = vmatprep.subr.bf16.mxu0 0
      %5561 = vmatpush2.bf16.msra.mxu0 0
      %5562 = vmatprep.subr.bf16.mxu0 0
      %5563 = vmatpush2.bf16.msra.mxu0 0
      %5564 = vmatprep.subr.bf16.mxu0 0
      %5565 = vmatpush2.bf16.msra.mxu0 0
      %5566 = vmatprep.mubr.bf16.mxu0 0
      %5567 = vmatmul.mubr.bf16.gmra.mxu0 %v5445
      %v5568 = vpop.f32.mrf.mxu0
      %v5569 = vadd.f32 0.0, %v5568
      %v5570 = vpop.f32.mrf.mxu0
      %v5571 = vpop.f32.mrf.mxu0
      %v5572 = vadd.f32 0.0, %v5571
      %v5573 = vpop.f32.mrf.mxu0
      %5574 = vmatprep.mubr.bf16.mxu0 0
      %5575 = vmatmul.mubr.bf16.gmra.mxu0 %v5448
      %v5576 = vpop.f32.mrf.mxu0
      %v5577 = vadd.f32 0.0, %v5576
      %v5578 = vpop.f32.mrf.mxu0
      %v5579 = vpop.f32.mrf.mxu0
      %v5580 = vadd.f32 0.0, %v5579
      %v5581 = vpop.f32.mrf.mxu0
      %5582 = vmatprep.mubr.bf16.mxu0 0
      %5583 = vmatmul.mubr.bf16.gmra.mxu0 %v5451
      %v5584 = vpop.f32.mrf.mxu0
      %v5585 = vadd.f32 0.0, %v5584
      %v5586 = vpop.f32.mrf.mxu0
      %v5587 = vpop.f32.mrf.mxu0
      %v5588 = vadd.f32 0.0, %v5587
      %v5589 = vpop.f32.mrf.mxu0
      %5590 = vmatprep.mubr.bf16.mxu0 0
      %5591 = vmatmul.mubr.bf16.gmra.mxu0 %v5454
      %v5592 = vpop.f32.mrf.mxu0
      %v5593 = vadd.f32 0.0, %v5592
      %v5594 = vpop.f32.mrf.mxu0
      %v5595 = vpop.f32.mrf.mxu0
      %v5596 = vadd.f32 0.0, %v5595
      %v5597 = vpop.f32.mrf.mxu0
      %5598 = vmatprep.mubr.bf16.mxu0 0
      %5599 = vmatmul.mubr.bf16.gmra.mxu0 %v5457
      %v5600 = vpop.f32.mrf.mxu0
      %v5601 = vadd.f32 0.0, %v5600
      %v5602 = vpop.f32.mrf.mxu0
      %v5603 = vpop.f32.mrf.mxu0
      %v5604 = vadd.f32 0.0, %v5603
      %v5605 = vpop.f32.mrf.mxu0
      %5606 = vmatprep.mubr.bf16.mxu0 0
      %5607 = vmatmul.mubr.bf16.gmra.mxu0 %v5460
      %v5608 = vpop.f32.mrf.mxu0
      %v5609 = vadd.f32 0.0, %v5608
      %v5610 = vpop.f32.mrf.mxu0
      %v5611 = vpop.f32.mrf.mxu0
      %v5612 = vadd.f32 0.0, %v5611
      %v5613 = vpop.f32.mrf.mxu0
      %5614 = vmatprep.mubr.bf16.mxu0 0
      %5615 = vmatmul.mubr.bf16.gmra.mxu0 %v5463
      %v5616 = vpop.f32.mrf.mxu0
      %v5617 = vadd.f32 0.0, %v5616
      %v5618 = vpop.f32.mrf.mxu0
      %v5619 = vpop.f32.mrf.mxu0
      %v5620 = vadd.f32 0.0, %v5619
      %v5621 = vpop.f32.mrf.mxu0
      %5622 = vmatprep.mubr.bf16.mxu0 0
      %5623 = vmatmul.mubr.bf16.gmra.mxu0 %v5466
      %v5624 = vpop.f32.mrf.mxu0
      %v5625 = vadd.f32 0.0, %v5624
      %v5626 = vpop.f32.mrf.mxu0
      %v5627 = vpop.f32.mrf.mxu0
      %v5628 = vadd.f32 0.0, %v5627
      %v5629 = vpop.f32.mrf.mxu0
      %5630 = vmatprep.mubr.bf16.mxu0 0
      %5631 = vmatmul.mubr.bf16.gmra.mxu0 %v5469
      %v5632 = vpop.f32.mrf.mxu0
      %v5633 = vadd.f32 0.0, %v5632
      %v5634 = vpop.f32.mrf.mxu0
      %v5635 = vpop.f32.mrf.mxu0
      %v5636 = vadd.f32 0.0, %v5635
      %v5637 = vpop.f32.mrf.mxu0
      %5638 = vmatprep.mubr.bf16.mxu0 0
      %5639 = vmatmul.mubr.bf16.gmra.mxu0 %v5472
      %v5640 = vpop.f32.mrf.mxu0
      %v5641 = vadd.f32 0.0, %v5640
      %v5642 = vpop.f32.mrf.mxu0
      %v5643 = vpop.f32.mrf.mxu0
      %v5644 = vadd.f32 0.0, %v5643
      %v5645 = vpop.f32.mrf.mxu0
      %5646 = vmatprep.mubr.bf16.mxu0 0
      %5647 = vmatmul.mubr.bf16.gmra.mxu0 %v5475
      %v5648 = vpop.f32.mrf.mxu0
      %v5649 = vadd.f32 0.0, %v5648
      %v5650 = vpop.f32.mrf.mxu0
      %v5651 = vpop.f32.mrf.mxu0
      %v5652 = vadd.f32 0.0, %v5651
      %v5653 = vpop.f32.mrf.mxu0
      %5654 = vmatprep.mubr.bf16.mxu0 0
      %5655 = vmatmul.mubr.bf16.gmra.mxu0 %v5478
      %v5656 = vpop.f32.mrf.mxu0
      %v5657 = vadd.f32 0.0, %v5656
      %v5658 = vpop.f32.mrf.mxu0
      %v5659 = vpop.f32.mrf.mxu0
      %v5660 = vadd.f32 0.0, %v5659
      %v5661 = vpop.f32.mrf.mxu0
      %5662 = vmatprep.mubr.bf16.mxu0 0
      %5663 = vmatmul.mubr.bf16.gmra.mxu0 %v5481
      %v5664 = vpop.f32.mrf.mxu0
      %v5665 = vadd.f32 0.0, %v5664
      %v5666 = vpop.f32.mrf.mxu0
      %v5667 = vpop.f32.mrf.mxu0
      %v5668 = vadd.f32 0.0, %v5667
      %v5669 = vpop.f32.mrf.mxu0
      %5670 = vmatprep.mubr.bf16.mxu0 0
      %5671 = vmatmul.mubr.bf16.gmra.mxu0 %v5484
      %v5672 = vpop.f32.mrf.mxu0
      %v5673 = vadd.f32 0.0, %v5672
      %v5674 = vpop.f32.mrf.mxu0
      %v5675 = vpop.f32.mrf.mxu0
      %v5676 = vadd.f32 0.0, %v5675
      %v5677 = vpop.f32.mrf.mxu0
      %5678 = vmatprep.mubr.bf16.mxu0 0
      %5679 = vmatmul.mubr.bf16.gmra.mxu0 %v5487
      %v5680 = vpop.f32.mrf.mxu0
      %v5681 = vadd.f32 0.0, %v5680
      %v5682 = vpop.f32.mrf.mxu0
      %v5683 = vpop.f32.mrf.mxu0
      %v5684 = vadd.f32 0.0, %v5683
      %v5685 = vpop.f32.mrf.mxu0
      %5686 = vmatprep.mubr.bf16.mxu0 0
      %5687 = vmatmul.mubr.bf16.gmra.mxu0 %v5490
      %v5688 = vpop.f32.mrf.mxu0
      %v5689 = vadd.f32 0.0, %v5688
      %v5690 = vpop.f32.mrf.mxu0
      %v5691 = vpop.f32.mrf.mxu0
      %v5692 = vadd.f32 0.0, %v5691
      %v5693 = vpop.f32.mrf.mxu0
      %5694 = vmatprep.mubr.bf16.mxu0 0
      %5695 = vmatmul.mubr.bf16.gmra.mxu0 %v5493
      %v5696 = vpop.f32.mrf.mxu0
      %v5697 = vadd.f32 0.0, %v5696
      %v5698 = vpop.f32.mrf.mxu0
      %v5699 = vpop.f32.mrf.mxu0
      %v5700 = vadd.f32 0.0, %v5699
      %v5701 = vpop.f32.mrf.mxu0
      %5702 = vmatprep.mubr.bf16.mxu0 0
      %5703 = vmatmul.mubr.bf16.gmra.mxu0 %v5496
      %v5704 = vpop.f32.mrf.mxu0
      %v5705 = vadd.f32 0.0, %v5704
      %v5706 = vpop.f32.mrf.mxu0
      %v5707 = vpop.f32.mrf.mxu0
      %v5708 = vadd.f32 0.0, %v5707
      %v5709 = vpop.f32.mrf.mxu0
      %5710 = vmatprep.mubr.bf16.mxu0 0
      %5711 = vmatmul.mubr.bf16.gmra.mxu0 %v5499
      %v5712 = vpop.f32.mrf.mxu0
      %v5713 = vadd.f32 0.0, %v5712
      %v5714 = vpop.f32.mrf.mxu0
      %v5715 = vpop.f32.mrf.mxu0
      %v5716 = vadd.f32 0.0, %v5715
      %v5717 = vpop.f32.mrf.mxu0
      %5718 = vmatprep.mubr.bf16.mxu0 0
      %5719 = vmatmul.mubr.bf16.gmra.mxu0 %v5502
      %v5720 = vpop.f32.mrf.mxu0
      %v5721 = vadd.f32 0.0, %v5720
      %v5722 = vpop.f32.mrf.mxu0
      %v5723 = vpop.f32.mrf.mxu0
      %v5724 = vadd.f32 0.0, %v5723
      %v5725 = vpop.f32.mrf.mxu0
      %5726 = vmatprep.mubr.bf16.mxu0 0
      %5727 = vmatmul.mubr.bf16.gmra.mxu0 %v5505
      %v5728 = vpop.f32.mrf.mxu0
      %v5729 = vadd.f32 0.0, %v5728
      %v5730 = vpop.f32.mrf.mxu0
      %v5731 = vpop.f32.mrf.mxu0
      %v5732 = vadd.f32 0.0, %v5731
      %v5733 = vpop.f32.mrf.mxu0
      %5734 = vmatprep.mubr.bf16.mxu0 0
      %5735 = vmatmul.mubr.bf16.gmra.mxu0 %v5508
      %v5736 = vpop.f32.mrf.mxu0
      %v5737 = vadd.f32 0.0, %v5736
      %v5738 = vpop.f32.mrf.mxu0
      %v5739 = vpop.f32.mrf.mxu0
      %v5740 = vadd.f32 0.0, %v5739
      %v5741 = vpop.f32.mrf.mxu0
      %5742 = vmatprep.mubr.bf16.mxu0 0
      %5743 = vmatmul.mubr.bf16.gmra.mxu0 %v5511
      %v5744 = vpop.f32.mrf.mxu0
      %v5745 = vadd.f32 0.0, %v5744
      %v5746 = vpop.f32.mrf.mxu0
      %v5747 = vpop.f32.mrf.mxu0
      %v5748 = vadd.f32 0.0, %v5747
      %v5749 = vpop.f32.mrf.mxu0
      %5750 = vmatprep.mubr.bf16.mxu0 0
      %5751 = vmatmul.mubr.bf16.gmra.mxu0 %v5514
      %v5752 = vpop.f32.mrf.mxu0
      %v5753 = vadd.f32 0.0, %v5752
      %v5754 = vpop.f32.mrf.mxu0
      %v5755 = vpop.f32.mrf.mxu0
      %v5756 = vadd.f32 0.0, %v5755
      %v5757 = vpop.f32.mrf.mxu0
      %5758 = vmatprep.mubr.bf16.mxu0 0
      %5759 = vmatmul.mubr.bf16.gmra.mxu0 %v5517
      %v5760 = vpop.f32.mrf.mxu0
      %v5761 = vadd.f32 0.0, %v5760
      %v5762 = vpop.f32.mrf.mxu0
      %v5763 = vpop.f32.mrf.mxu0
      %v5764 = vadd.f32 0.0, %v5763
      %v5765 = vpop.f32.mrf.mxu0
      %5766 = vmatprep.mubr.bf16.mxu0 0
      %5767 = vmatmul.mubr.bf16.gmra.mxu0 %v5520
      %v5768 = vpop.f32.mrf.mxu0
      %v5769 = vadd.f32 0.0, %v5768
      %v5770 = vpop.f32.mrf.mxu0
      %v5771 = vpop.f32.mrf.mxu0
      %v5772 = vadd.f32 0.0, %v5771
      %v5773 = vpop.f32.mrf.mxu0
      %5774 = vmatprep.mubr.bf16.mxu0 0
      %5775 = vmatmul.mubr.bf16.gmra.mxu0 %v5523
      %v5776 = vpop.f32.mrf.mxu0
      %v5777 = vadd.f32 0.0, %v5776
      %v5778 = vpop.f32.mrf.mxu0
      %v5779 = vpop.f32.mrf.mxu0
      %v5780 = vadd.f32 0.0, %v5779
      %v5781 = vpop.f32.mrf.mxu0
      %5782 = vmatprep.mubr.bf16.mxu0 0
      %5783 = vmatmul.mubr.bf16.gmra.mxu0 %v5526
      %v5784 = vpop.f32.mrf.mxu0
      %v5785 = vadd.f32 0.0, %v5784
      %v5786 = vpop.f32.mrf.mxu0
      %v5787 = vpop.f32.mrf.mxu0
      %v5788 = vadd.f32 0.0, %v5787
      %v5789 = vpop.f32.mrf.mxu0
      %5790 = vmatprep.mubr.bf16.mxu0 0
      %5791 = vmatmul.mubr.bf16.gmra.mxu0 %v5529
      %v5792 = vpop.f32.mrf.mxu0
      %v5793 = vadd.f32 0.0, %v5792
      %v5794 = vpop.f32.mrf.mxu0
      %v5795 = vpop.f32.mrf.mxu0
      %v5796 = vadd.f32 0.0, %v5795
      %v5797 = vpop.f32.mrf.mxu0
      %5798 = vmatprep.mubr.bf16.mxu0 0
      %5799 = vmatmul.mubr.bf16.gmra.mxu0 %v5532
      %v5800 = vpop.f32.mrf.mxu0
      %v5801 = vadd.f32 0.0, %v5800
      %v5802 = vpop.f32.mrf.mxu0
      %v5803 = vpop.f32.mrf.mxu0
      %v5804 = vadd.f32 0.0, %v5803
      %v5805 = vpop.f32.mrf.mxu0
      %5806 = vdwg.mxu0
      %v5807 = vadd.f32 %v5067, %v5569
      %v5808 = vadd.f32 %v5070, %v5572
      %v5809 = vadd.f32 %v5075, %v5577
      %v5810 = vadd.f32 %v5078, %v5580
      %v5811 = vadd.f32 %v5083, %v5585
      %v5812 = vadd.f32 %v5086, %v5588
      %v5813 = vadd.f32 %v5091, %v5593
      %v5814 = vadd.f32 %v5094, %v5596
      %v5815 = vadd.f32 %v5099, %v5601
      %v5816 = vadd.f32 %v5102, %v5604
      %v5817 = vadd.f32 %v5107, %v5609
      %v5818 = vadd.f32 %v5110, %v5612
      %v5819 = vadd.f32 %v5115, %v5617
      %v5820 = vadd.f32 %v5118, %v5620
      %v5821 = vadd.f32 %v5123, %v5625
      %v5822 = vadd.f32 %v5126, %v5628
      %v5823 = vadd.f32 %v5131, %v5633
      %v5824 = vadd.f32 %v5134, %v5636
      %v5825 = vadd.f32 %v5139, %v5641
      %v5826 = vadd.f32 %v5142, %v5644
      %v5827 = vadd.f32 %v5147, %v5649
      %v5828 = vadd.f32 %v5150, %v5652
      %v5829 = vadd.f32 %v5155, %v5657
      %v5830 = vadd.f32 %v5158, %v5660
      %v5831 = vadd.f32 %v5163, %v5665
      %v5832 = vadd.f32 %v5166, %v5668
      %v5833 = vadd.f32 %v5171, %v5673
      %v5834 = vadd.f32 %v5174, %v5676
      %v5835 = vadd.f32 %v5179, %v5681
      %v5836 = vadd.f32 %v5182, %v5684
      %v5837 = vadd.f32 %v5187, %v5689
      %v5838 = vadd.f32 %v5190, %v5692
      %v5839 = vadd.f32 %v5195, %v5697
      %v5840 = vadd.f32 %v5198, %v5700
      %v5841 = vadd.f32 %v5203, %v5705
      %v5842 = vadd.f32 %v5206, %v5708
      %v5843 = vadd.f32 %v5211, %v5713
      %v5844 = vadd.f32 %v5214, %v5716
      %v5845 = vadd.f32 %v5219, %v5721
      %v5846 = vadd.f32 %v5222, %v5724
      %v5847 = vadd.f32 %v5227, %v5729
      %v5848 = vadd.f32 %v5230, %v5732
      %v5849 = vadd.f32 %v5235, %v5737
      %v5850 = vadd.f32 %v5238, %v5740
      %v5851 = vadd.f32 %v5243, %v5745
      %v5852 = vadd.f32 %v5246, %v5748
      %v5853 = vadd.f32 %v5251, %v5753
      %v5854 = vadd.f32 %v5254, %v5756
      %v5855 = vadd.f32 %v5259, %v5761
      %v5856 = vadd.f32 %v5262, %v5764
      %v5857 = vadd.f32 %v5267, %v5769
      %v5858 = vadd.f32 %v5270, %v5772
      %v5859 = vadd.f32 %v5275, %v5777
      %v5860 = vadd.f32 %v5278, %v5780
      %v5861 = vadd.f32 %v5283, %v5785
      %v5862 = vadd.f32 %v5286, %v5788
      %v5863 = vadd.f32 %v5291, %v5793
      %v5864 = vadd.f32 %v5294, %v5796
      %v5865 = vadd.f32 %v5299, %v5801
      %v5866 = vadd.f32 %v5302, %v5804
      %v5867 = vld [vmem:[%s6] sm:$0x1]
      %v5869 = vlaneseq
      %v5870 = vshrl.u32 %v5869, 7
      %v5871 = vsub.s32 0, %v5870
      %v5872 = vrot.slane %v5867, %v5871
      %v5874 = vadd.f32 %v5807, %v5872
      %v5875 = vadd.f32 %v5808, %v5872
      %v5876 = vadd.f32 %v5809, %v5872
      %v5877 = vadd.f32 %v5810, %v5872
      %v5878 = vadd.f32 %v5811, %v5872
      %v5879 = vadd.f32 %v5812, %v5872
      %v5880 = vadd.f32 %v5813, %v5872
      %v5881 = vadd.f32 %v5814, %v5872
      %v5882 = vadd.f32 %v5815, %v5872
      %v5883 = vadd.f32 %v5816, %v5872
      %v5884 = vadd.f32 %v5817, %v5872
      %v5885 = vadd.f32 %v5818, %v5872
      %v5886 = vadd.f32 %v5819, %v5872
      %v5887 = vadd.f32 %v5820, %v5872
      %v5888 = vadd.f32 %v5821, %v5872
      %v5889 = vadd.f32 %v5822, %v5872
      %v5890 = vadd.f32 %v5823, %v5872
      %v5891 = vadd.f32 %v5824, %v5872
      %v5892 = vadd.f32 %v5825, %v5872
      %v5893 = vadd.f32 %v5826, %v5872
      %v5894 = vadd.f32 %v5827, %v5872
      %v5895 = vadd.f32 %v5828, %v5872
      %v5896 = vadd.f32 %v5829, %v5872
      %v5897 = vadd.f32 %v5830, %v5872
      %v5898 = vadd.f32 %v5831, %v5872
      %v5899 = vadd.f32 %v5832, %v5872
      %v5900 = vadd.f32 %v5833, %v5872
      %v5901 = vadd.f32 %v5834, %v5872
      %v5902 = vadd.f32 %v5835, %v5872
      %v5903 = vadd.f32 %v5836, %v5872
      %v5904 = vadd.f32 %v5837, %v5872
      %v5905 = vadd.f32 %v5838, %v5872
      %v5906 = vadd.f32 %v5839, %v5872
      %v5907 = vadd.f32 %v5840, %v5872
      %v5908 = vadd.f32 %v5841, %v5872
      %v5909 = vadd.f32 %v5842, %v5872
      %v5910 = vadd.f32 %v5843, %v5872
      %v5911 = vadd.f32 %v5844, %v5872
      %v5912 = vadd.f32 %v5845, %v5872
      %v5913 = vadd.f32 %v5846, %v5872
      %v5914 = vadd.f32 %v5847, %v5872
      %v5915 = vadd.f32 %v5848, %v5872
      %v5916 = vadd.f32 %v5849, %v5872
      %v5917 = vadd.f32 %v5850, %v5872
      %v5918 = vadd.f32 %v5851, %v5872
      %v5919 = vadd.f32 %v5852, %v5872
      %v5920 = vadd.f32 %v5853, %v5872
      %v5921 = vadd.f32 %v5854, %v5872
      %v5922 = vadd.f32 %v5855, %v5872
      %v5923 = vadd.f32 %v5856, %v5872
      %v5924 = vadd.f32 %v5857, %v5872
      %v5925 = vadd.f32 %v5858, %v5872
      %v5926 = vadd.f32 %v5859, %v5872
      %v5927 = vadd.f32 %v5860, %v5872
      %v5928 = vadd.f32 %v5861, %v5872
      %v5929 = vadd.f32 %v5862, %v5872
      %v5930 = vadd.f32 %v5863, %v5872
      %v5931 = vadd.f32 %v5864, %v5872
      %v5932 = vadd.f32 %v5865, %v5872
      %v5933 = vadd.f32 %v5866, %v5872
      %v5934 = vmax.f32 %v5874, 0.0
      %v5935 = vmax.f32 %v5875, 0.0
      %v5936 = vmax.f32 %v5876, 0.0
      %v5937 = vmax.f32 %v5877, 0.0
      %v5938 = vmax.f32 %v5878, 0.0
      %v5939 = vmax.f32 %v5879, 0.0
      %v5940 = vmax.f32 %v5880, 0.0
      %v5941 = vmax.f32 %v5881, 0.0
      %v5942 = vmax.f32 %v5882, 0.0
      %v5943 = vmax.f32 %v5883, 0.0
      %v5944 = vmax.f32 %v5884, 0.0
      %v5945 = vmax.f32 %v5885, 0.0
      %v5946 = vmax.f32 %v5886, 0.0
      %v5947 = vmax.f32 %v5887, 0.0
      %v5948 = vmax.f32 %v5888, 0.0
      %v5949 = vmax.f32 %v5889, 0.0
      %v5950 = vmax.f32 %v5890, 0.0
      %v5951 = vmax.f32 %v5891, 0.0
      %v5952 = vmax.f32 %v5892, 0.0
      %v5953 = vmax.f32 %v5893, 0.0
      %v5954 = vmax.f32 %v5894, 0.0
      %v5955 = vmax.f32 %v5895, 0.0
      %v5956 = vmax.f32 %v5896, 0.0
      %v5957 = vmax.f32 %v5897, 0.0
      %v5958 = vmax.f32 %v5898, 0.0
      %v5959 = vmax.f32 %v5899, 0.0
      %v5960 = vmax.f32 %v5900, 0.0
      %v5961 = vmax.f32 %v5901, 0.0
      %v5962 = vmax.f32 %v5902, 0.0
      %v5963 = vmax.f32 %v5903, 0.0
      %v5964 = vmax.f32 %v5904, 0.0
      %v5965 = vmax.f32 %v5905, 0.0
      %v5966 = vmax.f32 %v5906, 0.0
      %v5967 = vmax.f32 %v5907, 0.0
      %v5968 = vmax.f32 %v5908, 0.0
      %v5969 = vmax.f32 %v5909, 0.0
      %v5970 = vmax.f32 %v5910, 0.0
      %v5971 = vmax.f32 %v5911, 0.0
      %v5972 = vmax.f32 %v5912, 0.0
      %v5973 = vmax.f32 %v5913, 0.0
      %v5974 = vmax.f32 %v5914, 0.0
      %v5975 = vmax.f32 %v5915, 0.0
      %v5976 = vmax.f32 %v5916, 0.0
      %v5977 = vmax.f32 %v5917, 0.0
      %v5978 = vmax.f32 %v5918, 0.0
      %v5979 = vmax.f32 %v5919, 0.0
      %v5980 = vmax.f32 %v5920, 0.0
      %v5981 = vmax.f32 %v5921, 0.0
      %v5982 = vmax.f32 %v5922, 0.0
      %v5983 = vmax.f32 %v5923, 0.0
      %v5984 = vmax.f32 %v5924, 0.0
      %v5985 = vmax.f32 %v5925, 0.0
      %v5986 = vmax.f32 %v5926, 0.0
      %v5987 = vmax.f32 %v5927, 0.0
      %v5988 = vmax.f32 %v5928, 0.0
      %v5989 = vmax.f32 %v5929, 0.0
      %v5990 = vmax.f32 %v5930, 0.0
      %v5991 = vmax.f32 %v5931, 0.0
      %v5992 = vmax.f32 %v5932, 0.0
      %v5993 = vmax.f32 %v5933, 0.0
      %vm5994 = vcmask 523264
      %5995 = vst.msk [vmem:[%s278] sm:$0xff] %vm5994, %v5934
      %5996 = vst.msk [vmem:[%s278 + $0x8] sm:$0xff] %vm5994, %v5935
      %5997 = vst.msk [vmem:[%s278 + $0x10] sm:$0xff] %vm5994, %v5936
      %5998 = vst.msk [vmem:[%s278 + $0x18] sm:$0xff] %vm5994, %v5937
      %5999 = vst.msk [vmem:[%s278 + $0x20] sm:$0xff] %vm5994, %v5938
      %6000 = vst.msk [vmem:[%s278 + $0x28] sm:$0xff] %vm5994, %v5939
      %6001 = vst.msk [vmem:[%s278 + $0x30] sm:$0xff] %vm5994, %v5940
      %6002 = vst.msk [vmem:[%s278 + $0x38] sm:$0xff] %vm5994, %v5941
      %6003 = vst.msk [vmem:[%s278 + $0x40] sm:$0xff] %vm5994, %v5942
      %6004 = vst.msk [vmem:[%s278 + $0x48] sm:$0xff] %vm5994, %v5943
      %6005 = vst.msk [vmem:[%s278 + $0x50] sm:$0xff] %vm5994, %v5944
      %6006 = vst.msk [vmem:[%s278 + $0x58] sm:$0xff] %vm5994, %v5945
      %6007 = vst.msk [vmem:[%s278 + $0x60] sm:$0xff] %vm5994, %v5946
      %6008 = vst.msk [vmem:[%s278 + $0x68] sm:$0xff] %vm5994, %v5947
      %6009 = vst.msk [vmem:[%s278 + $0x70] sm:$0xff] %vm5994, %v5948
      %6010 = vst.msk [vmem:[%s278 + $0x78] sm:$0xff] %vm5994, %v5949
      %6011 = vst.msk [vmem:[%s278 + $0x80] sm:$0xff] %vm5994, %v5950
      %6012 = vst.msk [vmem:[%s278 + $0x88] sm:$0xff] %vm5994, %v5951
      %6013 = vst.msk [vmem:[%s278 + $0x90] sm:$0xff] %vm5994, %v5952
      %6014 = vst.msk [vmem:[%s278 + $0x98] sm:$0xff] %vm5994, %v5953
      %6015 = vst.msk [vmem:[%s278 + $0xa0] sm:$0xff] %vm5994, %v5954
      %6016 = vst.msk [vmem:[%s278 + $0xa8] sm:$0xff] %vm5994, %v5955
      %6017 = vst.msk [vmem:[%s278 + $0xb0] sm:$0xff] %vm5994, %v5956
      %6018 = vst.msk [vmem:[%s278 + $0xb8] sm:$0xff] %vm5994, %v5957
      %6019 = vst.msk [vmem:[%s278 + $0xc0] sm:$0xff] %vm5994, %v5958
      %6020 = vst.msk [vmem:[%s278 + $0xc8] sm:$0xff] %vm5994, %v5959
      %6021 = vst.msk [vmem:[%s278 + $0xd0] sm:$0xff] %vm5994, %v5960
      %6022 = vst.msk [vmem:[%s278 + $0xd8] sm:$0xff] %vm5994, %v5961
      %6023 = vst.msk [vmem:[%s278 + $0xe0] sm:$0xff] %vm5994, %v5962
      %6024 = vst.msk [vmem:[%s278 + $0xe8] sm:$0xff] %vm5994, %v5963
      %6025 = vst.msk [vmem:[%s278 + $0xf0] sm:$0xff] %vm5994, %v5964
      %6026 = vst.msk [vmem:[%s278 + $0xf8] sm:$0xff] %vm5994, %v5965
      %6027 = vst.msk [vmem:[%s278 + $0x100] sm:$0xff] %vm5994, %v5966
      %6028 = vst.msk [vmem:[%s278 + $0x108] sm:$0xff] %vm5994, %v5967
      %6029 = vst.msk [vmem:[%s278 + $0x110] sm:$0xff] %vm5994, %v5968
      %6030 = vst.msk [vmem:[%s278 + $0x118] sm:$0xff] %vm5994, %v5969
      %6031 = vst.msk [vmem:[%s278 + $0x120] sm:$0xff] %vm5994, %v5970
      %6032 = vst.msk [vmem:[%s278 + $0x128] sm:$0xff] %vm5994, %v5971
      %6033 = vst.msk [vmem:[%s278 + $0x130] sm:$0xff] %vm5994, %v5972
      %6034 = vst.msk [vmem:[%s278 + $0x138] sm:$0xff] %vm5994, %v5973
      %6035 = vst.msk [vmem:[%s278 + $0x140] sm:$0xff] %vm5994, %v5974
      %6036 = vst.msk [vmem:[%s278 + $0x148] sm:$0xff] %vm5994, %v5975
      %6037 = vst.msk [vmem:[%s278 + $0x150] sm:$0xff] %vm5994, %v5976
      %6038 = vst.msk [vmem:[%s278 + $0x158] sm:$0xff] %vm5994, %v5977
      %6039 = vst.msk [vmem:[%s278 + $0x160] sm:$0xff] %vm5994, %v5978
      %6040 = vst.msk [vmem:[%s278 + $0x168] sm:$0xff] %vm5994, %v5979
      %6041 = vst.msk [vmem:[%s278 + $0x170] sm:$0xff] %vm5994, %v5980
      %6042 = vst.msk [vmem:[%s278 + $0x178] sm:$0xff] %vm5994, %v5981
      %6043 = vst.msk [vmem:[%s278 + $0x180] sm:$0xff] %vm5994, %v5982
      %6044 = vst.msk [vmem:[%s278 + $0x188] sm:$0xff] %vm5994, %v5983
      %6045 = vst.msk [vmem:[%s278 + $0x190] sm:$0xff] %vm5994, %v5984
      %6046 = vst.msk [vmem:[%s278 + $0x198] sm:$0xff] %vm5994, %v5985
      %6047 = vst.msk [vmem:[%s278 + $0x1a0] sm:$0xff] %vm5994, %v5986
      %6048 = vst.msk [vmem:[%s278 + $0x1a8] sm:$0xff] %vm5994, %v5987
      %6049 = vst.msk [vmem:[%s278 + $0x1b0] sm:$0xff] %vm5994, %v5988
      %6050 = vst.msk [vmem:[%s278 + $0x1b8] sm:$0xff] %vm5994, %v5989
      %6051 = vst.msk [vmem:[%s278 + $0x1c0] sm:$0xff] %vm5994, %v5990
      %6052 = vst.msk [vmem:[%s278 + $0x1c8] sm:$0xff] %vm5994, %v5991
      %6053 = vst.msk [vmem:[%s278 + $0x1d0] sm:$0xff] %vm5994, %v5992
      %6054 = vst.msk [vmem:[%s278 + $0x1d8] sm:$0xff] %vm5994, %v5993
      %p6055 = scmp.lt.s32.totalorder %s18, 1
      %s6056 = scalar_select %p6055, %s18, 1
      %s6057 = smul.addr %s6056, 60
      %s6058 = smul.addr %s6057, 8
      %s6059 = scalar_lea.vmem %s7, %s6058
      // Predicated region
      $region49: #{prefeatures_pallas.1} parent=47 // pred_check
        %p6060 = pneg %p188
      $region50: #{prefeatures_pallas.1} parent=47 // pred_check_branch
        %6062 = sbr.rel (%p6060) target = $region52
      $region51: #{prefeatures_pallas.1} parent=47 // pred_region
        _
      $region52: #{prefeatures_pallas.1} parent=47 // pred_fallthru
        _
    $region48: #{prefeatures_pallas.1} parent=5 // pred_fallthru
      _
    %p6063 = scmp.le.s32.totalorder 2, %s13
    // Predicated region
    $region53: #{prefeatures_pallas.1} parent=5 // pred_check
      %p6064 = pneg %p6063
    $region54: #{prefeatures_pallas.1} parent=5 // pred_check_branch
      %6066 = sbr.rel (%p6064) target = $region56
    $region55: #{prefeatures_pallas.1} parent=5 // pred_region
      %s6067 = ssub.s32 %s13, 2
      // Predicated region
      $region57: #{prefeatures_pallas.1} parent=55 // pred_check
        %p6068 = pneg %p194
      $region58: #{prefeatures_pallas.1} parent=55 // pred_check_branch
        %6070 = sbr.rel (%p6068) target = $region60
      $region59: #{prefeatures_pallas.1} parent=55 // pred_region
        %p6071 = scmp.lt.s32.totalorder %s19, 1
        %s6072 = scalar_select %p6071, %s19, 1
        %s6073 = smul.addr %s6072, 60
        %s6074 = smul.addr %s6073, 8
        %s6075 = scalar_lea.vmem %s7, %s6074
      $region60: #{prefeatures_pallas.1} parent=55 // pred_fallthru
        _
    $region56: #{prefeatures_pallas.1} parent=5 // pred_fallthru
      _
  $region6: #{prefeatures_pallas.1} parent=0 // loop_footer
    %s17 = sadd.s32 1, %s13
  $region7: #{prefeatures_pallas.1} parent=0 // loop_footer_branch
    %12 = sbr.rel target = $region3
  $region8: #{prefeatures_pallas.1} parent=0 // loop_exit
    _

</llo_original>
